<compile_context>
chip_gen: v7x
topology: tpu7x:2x2x1
jax: 0.10.0
libtpu: 0.0.40
codegen_flags: <defaults>
</compile_context>

<pallas_src>
from types import SimpleNamespace

import jax
import jax.numpy as jnp
from jax.experimental import pallas as pl
from jax.experimental.pallas import tpu as pltpu


def _round_up(x, m):
    return (x + m - 1) // m * m


# ----------------------------------------------------------------------------
# Pallas kernel: one LSTM direction per grid step, full time loop in-kernel.
# ----------------------------------------------------------------------------
def lstm_dir_kernel(x_ref, w_ih_ref, w_hh_ref, b_ref, out_ref, gx_ref):
    d = pl.program_id(0)                      # direction index (0=fwd, 1=bwd)
    T, Bp, DinP = x_ref.shape
    HP = gx_ref.shape[-1] // 4

    # ---- Hoisted input projection: one (T*Bp, DinP) @ (DinP, 4*HP) GEMM ----
    x_flat = x_ref[...].reshape(T * Bp, DinP)
    gx_ref[...] = (
        jnp.dot(x_flat, w_ih_ref[...], preferred_element_type=jnp.float32)
        + b_ref[...]                          # (1, 4*HP) broadcasts over rows
    )

    # ---- Serial time recurrence; h/c carried in vregs across unrolled loop ----
    def step(t, carry):
        h, c = carry
        # Backward direction walks the sequence in reverse via the index only.
        tt = jnp.where(d == 1, T - 1 - t, t)
        row = pl.multiple_of(tt * Bp, Bp)     # Bp is a multiple of 8 sublanes
        gates = gx_ref[pl.ds(row, Bp), :] + jnp.dot(
            h, w_hh_ref[...], preferred_element_type=jnp.float32)
        # Each gate occupies its own 128-lane block -> vreg-aligned slices.
        i_g = jax.nn.sigmoid(gates[:, 0 * HP:1 * HP])
        f_g = jax.nn.sigmoid(gates[:, 1 * HP:2 * HP])
        g_g = jnp.tanh(gates[:, 2 * HP:3 * HP])
        o_g = jax.nn.sigmoid(gates[:, 3 * HP:4 * HP])
        c_new = f_g * c + i_g * g_g
        h_new = o_g * jnp.tanh(c_new)
        out_ref[tt] = h_new                   # lane-dense (Bp, HP) store
        return h_new, c_new

    h0 = jnp.zeros((Bp, HP), jnp.float32)
    c0 = jnp.zeros((Bp, HP), jnp.float32)
    jax.lax.fori_loop(0, T, step, (h0, c0), unroll=True)


# ----------------------------------------------------------------------------
# Weight packing: transpose, split gates, pad each gate to its own 128-lane tile.
# ----------------------------------------------------------------------------
def _pack_direction(w_ih, w_hh, b_ih, b_hh, din_p, h_p):
    four_h, din = w_ih.shape
    h = four_h // 4
    bias = (b_ih + b_hh).astype(jnp.float32)
    w_ih_t = jnp.zeros((din_p, 4 * h_p), jnp.float32)
    w_hh_t = jnp.zeros((h_p, 4 * h_p), jnp.float32)
    b_row = jnp.zeros((1, 4 * h_p), jnp.float32)
    for k in range(4):
        w_ih_t = w_ih_t.at[:din, k * h_p:k * h_p + h].set(
            jnp.transpose(w_ih[k * h:(k + 1) * h, :]).astype(jnp.float32))
        w_hh_t = w_hh_t.at[:h, k * h_p:k * h_p + h].set(
            jnp.transpose(w_hh[k * h:(k + 1) * h, :]).astype(jnp.float32))
        b_row = b_row.at[0, k * h_p:k * h_p + h].set(bias[k * h:(k + 1) * h])
    return w_ih_t, w_hh_t, b_row


def lstm_layer_pallas(x, dir_params):
    """x: (T, B, Din). dir_params: list of (w_ih, w_hh, b_ih, b_hh) per direction.

    Returns (out_seq, h_last) with out_seq: (num_dirs, T, B, H) in original time
    order and h_last: (num_dirs, B, H) = final hidden state per direction.
    """
    T, B, Din = x.shape
    H = dir_params[0][1].shape[1]
    ND = len(dir_params)

    HP = _round_up(H, 128)
    DinP = _round_up(Din, 128)
    Bp = _round_up(B, 8)

    x_p = jnp.zeros((T, Bp, DinP), jnp.float32).at[:, :B, :Din].set(
        x.astype(jnp.float32))

    w_ih_l, w_hh_l, b_l = [], [], []
    for (w_ih, w_hh, b_ih, b_hh) in dir_params:
        wi, wh, bb = _pack_direction(w_ih, w_hh, b_ih, b_hh, DinP, HP)
        w_ih_l.append(wi)
        w_hh_l.append(wh)
        b_l.append(bb)
    w_ih_all = jnp.stack(w_ih_l)   # (ND, DinP, 4*HP)
    w_hh_all = jnp.stack(w_hh_l)   # (ND, HP, 4*HP)
    b_all = jnp.stack(b_l)         # (ND, 1, 4*HP)

    out_p = pl.pallas_call(
        lstm_dir_kernel,
        out_shape=jax.ShapeDtypeStruct((ND, T, Bp, HP), jnp.float32),
        grid=(ND,),
        in_specs=[
            pl.BlockSpec((T, Bp, DinP), lambda d: (0, 0, 0)),        # x (shared)
            pl.BlockSpec((None, DinP, 4 * HP), lambda d: (d, 0, 0)),  # W_ih^T
            pl.BlockSpec((None, HP, 4 * HP), lambda d: (d, 0, 0)),    # W_hh^T
            pl.BlockSpec((None, 1, 4 * HP), lambda d: (d, 0, 0)),     # bias
        ],
        out_specs=pl.BlockSpec((None, T, Bp, HP), lambda d: (d, 0, 0, 0)),
        scratch_shapes=[
            pltpu.VMEM((T * Bp, 4 * HP), jnp.float32),   # hoisted gates slab
        ],
        compiler_params=pltpu.CompilerParams(
            dimension_semantics=("parallel",)),   # directions are independent
    )(x_p, w_ih_all, w_hh_all, b_all)

    out_seq = out_p[:, :, :B, :H]                 # (ND, T, B, H), original order
    h_fwd = out_seq[0, T - 1]
    if ND == 2:
        h_last = jnp.stack([h_fwd, out_seq[1, 0]])
    else:
        h_last = h_fwd[None]
    return out_seq, h_last


# ----------------------------------------------------------------------------
# Encoder forward (matches the PyTorch module semantics).
# ----------------------------------------------------------------------------
def encoder_forward(inputs, params, config):
    """inputs: (seq_len, batch, input_size) float32."""
    num_dirs = 2 if config.birnn else 1
    layer_in = inputs
    h_last = None
    for layer in range(config.n_layers):
        dir_params = [params[(layer, d)] for d in range(num_dirs)]
        out_seq, h_last = lstm_layer_pallas(layer_in, dir_params)
        layer_in = (jnp.concatenate([out_seq[0], out_seq[1]], axis=-1)
                    if num_dirs == 2 else out_seq[0])
        # TODO(synk): inter-layer dropout (only active for n_layers > 1 in
        # training mode) is not applied; exact for n_layers == 1 / eval.

    if not config.birnn:
        return h_last[0]
    # ht[-2:].transpose(0,1).view(batch, -1) -> [h_fwd, h_bwd] concatenated
    return jnp.concatenate([h_last[0], h_last[1]], axis=-1)


# ----------------------------------------------------------------------------
# Pure-JAX reference LSTM (for correctness check of the kernel).
# ----------------------------------------------------------------------------
def lstm_layer_ref(x, w_ih, w_hh, b_ih, b_hh):
    T, B, _ = x.shape
    H = w_hh.shape[1]

    def step(carry, x_t):
        h, c = carry
        gates = x_t @ w_ih.T + b_ih + h @ w_hh.T + b_hh
        i, f, g, o = jnp.split(gates, 4, axis=-1)
        i = jax.nn.sigmoid(i)
        f = jax.nn.sigmoid(f)
        g = jnp.tanh(g)
        o = jax.nn.sigmoid(o)
        c = f * c + i * g
        h = o * jnp.tanh(c)
        return (h, c), h

    (h, _), outs = jax.lax.scan(
        step, (jnp.zeros((B, H), jnp.float32), jnp.zeros((B, H), jnp.float32)), x)
    return outs, h


def encoder_ref(inputs, params, config):
    num_dirs = 2 if config.birnn else 1
    layer_in = inputs
    last_h = []
    for layer in range(config.n_layers):
        dir_outs = []
        last_h = []
        for d in range(num_dirs):
            w_ih, w_hh, b_ih, b_hh = params[(layer, d)]
            x = layer_in if d == 0 else layer_in[::-1]
            out_seq, h_fin = lstm_layer_ref(x, w_ih, w_hh, b_ih, b_hh)
            if d == 1:
                out_seq = out_seq[::-1]
            dir_outs.append(out_seq)
            last_h.append(h_fin)
        layer_in = (jnp.concatenate(dir_outs, axis=-1)
                    if num_dirs == 2 else dir_outs[0])
    if not config.birnn:
        return last_h[0]
    return jnp.concatenate([last_h[0], last_h[1]], axis=-1)


# ----------------------------------------------------------------------------
# Deterministic parameter init (PyTorch nn.LSTM shapes & uniform(-1/sqrt(H), ..)).
# ----------------------------------------------------------------------------
def init_params(key, config):
    num_dirs = 2 if config.birnn else 1
    input_size = config.d_proj if config.projection else config.d_embed
    H = config.d_hidden
    bound = 1.0 / (H ** 0.5)
    params = {}
    for layer in range(config.n_layers):
        lin = input_size if layer == 0 else H * num_dirs
        for d in range(num_dirs):
            key, k1, k2, k3, k4 = jax.random.split(key, 5)
            params[(layer, d)] = (
                jax.random.uniform(k1, (4 * H, lin), jnp.float32, -bound, bound),
                jax.random.uniform(k2, (4 * H, H), jnp.float32, -bound, bound),
                jax.random.uniform(k3, (4 * H,), jnp.float32, -bound, bound),
                jax.random.uniform(k4, (4 * H,), jnp.float32, -bound, bound),
            )
    return params


if __name__ == "__main__":
    seq_len, batch = 8, 4
    key = jax.random.PRNGKey(0)
    key, k_in, k_par, k_par2 = jax.random.split(key, 4)

    # --- bidirectional config (matches the module's typical usage) ---
    config = SimpleNamespace(
        d_embed=32, d_proj=32, projection=False,
        d_hidden=32, n_layers=1, dp_ratio=0.2,
        birnn=True, n_cells=2,   # n_cells = n_layers * (2 if birnn else 1)
    )
    inputs = jax.random.normal(k_in, (seq_len, batch, config.d_embed), jnp.float32)
    params = init_params(k_par, config)

    out = encoder_forward(inputs, params, config)
    out = jax.block_until_ready(out)
    ref = encoder_ref(inputs, params, config)
    expected_feat = config.d_hidden * 2
    assert out.shape == (batch, expected_feat), out.shape
    assert jnp.allclose(out, ref, atol=1e-4, rtol=1e-4), \
        float(jnp.max(jnp.abs(out - ref)))

    # --- unidirectional sanity check (exercises the num_dirs == 1 path) ---
    config_uni = SimpleNamespace(
        d_embed=32, d_proj=32, projection=False,
        d_hidden=32, n_layers=1, dp_ratio=0.2,
        birnn=False, n_cells=1,
    )
    params_uni = init_params(k_par2, config_uni)
    out_u = jax.block_until_ready(encoder_forward(inputs, params_uni, config_uni))
    ref_u = encoder_ref(inputs, params_uni, config_uni)
    assert out_u.shape == (batch, config_uni.d_hidden), out_u.shape
    assert jnp.allclose(out_u, ref_u, atol=1e-4, rtol=1e-4), \
        float(jnp.max(jnp.abs(out_u - ref_u)))

    print("KERNEL_OK")
</pallas_src>

<mosaic_0001>
module attributes {stable_mosaic.version = 11 : i64} {
  func.func @lstm_dir_kernel(%arg0: i32, %arg1: memref<8x8x128xf32, #tpu.memory_space<vmem>>, %arg2: memref<1x128x512xf32, #tpu.memory_space<vmem>>, %arg3: memref<1x128x512xf32, #tpu.memory_space<vmem>>, %arg4: memref<1x1x512xf32, #tpu.memory_space<vmem>>, %arg5: memref<1x8x8x128xf32, #tpu.memory_space<vmem>>, %arg6: memref<64x512xf32, #tpu.memory_space<vmem>>) attributes {dimension_semantics = [#tpu.dimension_semantics<parallel>], iteration_bounds = array<i64: 2>, scalar_prefetch = 0 : i64, scratch_operands = 1 : i64, tpu.core_type = #tpu.core_type<tc>, window_params = [{pipeline_mode = #tpu.pipeline_mode<synchronous>, transform_indices = @transform_0, window_bounds = array<i64: 8, 8, 128>}, {transform_indices = @transform_1, window_bounds = array<i64: 1, 128, 512>}, {transform_indices = @transform_2, window_bounds = array<i64: 1, 128, 512>}, {transform_indices = @transform_3, window_bounds = array<i64: 1, 1, 512>}, {transform_indices = @transform_4, window_bounds = array<i64: 1, 8, 8, 128>}]} {
    %c0 = arith.constant 0 : index
    %c0_0 = arith.constant 0 : index
    %c0_1 = arith.constant 0 : index
    %0 = vector.load %arg1[%c0, %c0_0, %c0_1] : memref<8x8x128xf32, #tpu.memory_space<vmem>>, vector<8x8x128xf32>
    %1 = vector.shape_cast %0 : vector<8x8x128xf32> to vector<64x128xf32>
    %c0_2 = arith.constant 0 : index
    %c0_3 = arith.constant 0 : index
    %c0_4 = arith.constant 0 : index
    %2 = vector.load %arg2[%c0_2, %c0_3, %c0_4] : memref<1x128x512xf32, #tpu.memory_space<vmem>>, vector<1x128x512xf32>
    %3 = vector.shape_cast %2 : vector<1x128x512xf32> to vector<128x512xf32>
    %cst = arith.constant dense<0.000000e+00> : vector<64x512xf32>
    %4 = tpu.matmul %1, %3, %cst {dimension_numbers = #tpu.dot_dimension_numbers<[1], [0], [0], [1], [0, 0, 1, 1], [], []>} : vector<64x128xf32>, vector<128x512xf32>, vector<64x512xf32> -> vector<64x512xf32>
    %c0_5 = arith.constant 0 : index
    %c0_6 = arith.constant 0 : index
    %c0_7 = arith.constant 0 : index
    %5 = vector.load %arg4[%c0_5, %c0_6, %c0_7] : memref<1x1x512xf32, #tpu.memory_space<vmem>>, vector<1x1x512xf32>
    %6 = vector.shape_cast %5 : vector<1x1x512xf32> to vector<1x512xf32>
    %7 = vector.broadcast %6 : vector<1x512xf32> to vector<64x512xf32>
    %8 = arith.addf %4, %7 : vector<64x512xf32>
    %c0_8 = arith.constant 0 : index
    %c0_9 = arith.constant 0 : index
    %9 = vector.load %arg6[%c0_8, %c0_9] : memref<64x512xf32, #tpu.memory_space<vmem>>, vector<64x512xf32>
    tpu.vector_store %arg6[%c0_8, %c0_9], %8 {strides = array<i32>} : memref<64x512xf32, #tpu.memory_space<vmem>>, vector<64x512xf32>,
    %cst_10 = arith.constant 0.000000e+00 : f32
    %10 = vector.broadcast %cst_10 : f32 to vector<8x128xf32>
    %cst_11 = arith.constant 0.000000e+00 : f32
    %11 = vector.broadcast %cst_11 : f32 to vector<8x128xf32>
    %c0_i32 = arith.constant 0 : i32
    %c1_i32 = arith.constant 1 : i32
    %12 = arith.cmpi eq, %arg0, %c1_i32 : i32
    %c7_i32 = arith.constant 7 : i32
    %13 = arith.subi %c7_i32, %c0_i32 : i32
    %14 = arith.select %12, %13, %c0_i32 : i32
    %c8_i32 = arith.constant 8 : i32
    %15 = arith.muli %14, %c8_i32 : i32
    %16 = tpu.assume_multiple %15, 8 : i32
    %17 = arith.index_cast %16 : i32 to index
    %c0_12 = arith.constant 0 : index
    %18 = vector.load %arg6[%17, %c0_12] : memref<64x512xf32, #tpu.memory_space<vmem>>, vector<8x512xf32>
    %c0_13 = arith.constant 0 : index
    %c0_14 = arith.constant 0 : index
    %c0_15 = arith.constant 0 : index
    %19 = vector.load %arg3[%c0_13, %c0_14, %c0_15] : memref<1x128x512xf32, #tpu.memory_space<vmem>>, vector<1x128x512xf32>
    %20 = vector.shape_cast %19 : vector<1x128x512xf32> to vector<128x512xf32>
    %cst_16 = arith.constant dense<0.000000e+00> : vector<8x512xf32>
    %21 = tpu.matmul %10, %20, %cst_16 {dimension_numbers = #tpu.dot_dimension_numbers<[1], [0], [0], [1], [0, 0, 1, 1], [], []>} : vector<8x128xf32>, vector<128x512xf32>, vector<8x512xf32> -> vector<8x512xf32>
    %22 = arith.addf %18, %21 : vector<8x512xf32>
    %23 = vector.extract_strided_slice %22 {offsets = [0, 0], sizes = [8, 128], strides = [1, 1]} : vector<8x512xf32> to vector<8x128xf32>
    %24 = arith.negf %23 : vector<8x128xf32>
    %25 = math.exp %24 : vector<8x128xf32>
    %cst_17 = arith.constant 1.000000e+00 : f32
    %26 = vector.broadcast %cst_17 : f32 to vector<8x128xf32>
    %27 = arith.addf %26, %25 : vector<8x128xf32>
    %28 = arith.divf %26, %27 : vector<8x128xf32>
    %29 = vector.extract_strided_slice %22 {offsets = [0, 128], sizes = [8, 128], strides = [1, 1]} : vector<8x512xf32> to vector<8x128xf32>
    %30 = arith.negf %29 : vector<8x128xf32>
    %31 = math.exp %30 : vector<8x128xf32>
    %cst_18 = arith.constant 1.000000e+00 : f32
    %32 = vector.broadcast %cst_18 : f32 to vector<8x128xf32>
    %33 = arith.addf %32, %31 : vector<8x128xf32>
    %34 = arith.divf %32, %33 : vector<8x128xf32>
    %35 = vector.extract_strided_slice %22 {offsets = [0, 256], sizes = [8, 128], strides = [1, 1]} : vector<8x512xf32> to vector<8x128xf32>
    %36 = math.tanh %35 : vector<8x128xf32>
    %37 = vector.extract_strided_slice %22 {offsets = [0, 384], sizes = [8, 128], strides = [1, 1]} : vector<8x512xf32> to vector<8x128xf32>
    %38 = arith.negf %37 : vector<8x128xf32>
    %39 = math.exp %38 : vector<8x128xf32>
    %cst_19 = arith.constant 1.000000e+00 : f32
    %40 = vector.broadcast %cst_19 : f32 to vector<8x128xf32>
    %41 = arith.addf %40, %39 : vector<8x128xf32>
    %42 = arith.divf %40, %41 : vector<8x128xf32>
    %43 = arith.mulf %34, %11 : vector<8x128xf32>
    %44 = arith.mulf %28, %36 : vector<8x128xf32>
    %45 = arith.addf %43, %44 : vector<8x128xf32>
    %46 = math.tanh %45 : vector<8x128xf32>
    %47 = arith.mulf %42, %46 : vector<8x128xf32>
    %c0_20 = arith.constant 0 : index
    %48 = arith.index_cast %14 : i32 to index
    %c0_21 = arith.constant 0 : index
    %c0_22 = arith.constant 0 : index
    %49 = vector.load %arg5[%c0_20, %48, %c0_21, %c0_22] : memref<1x8x8x128xf32, #tpu.memory_space<vmem>>, vector<1x1x8x128xf32>
    %50 = vector.shape_cast %49 : vector<1x1x8x128xf32> to vector<8x128xf32>
    %51 = vector.shape_cast %47 : vector<8x128xf32> to vector<1x1x8x128xf32>
    tpu.vector_store %arg5[%c0_20, %48, %c0_21, %c0_22], %51 {strides = array<i32>} : memref<1x8x8x128xf32, #tpu.memory_space<vmem>>, vector<1x1x8x128xf32>,
    %c1_i32_23 = arith.constant 1 : i32
    %c1_i32_24 = arith.constant 1 : i32
    %52 = arith.cmpi eq, %arg0, %c1_i32_24 : i32
    %c7_i32_25 = arith.constant 7 : i32
    %53 = arith.subi %c7_i32_25, %c1_i32_23 : i32
    %54 = arith.select %52, %53, %c1_i32_23 : i32
    %c8_i32_26 = arith.constant 8 : i32
    %55 = arith.muli %54, %c8_i32_26 : i32
    %56 = tpu.assume_multiple %55, 8 : i32
    %57 = arith.index_cast %56 : i32 to index
    %c0_27 = arith.constant 0 : index
    %58 = vector.load %arg6[%57, %c0_27] : memref<64x512xf32, #tpu.memory_space<vmem>>, vector<8x512xf32>
    %c0_28 = arith.constant 0 : index
    %c0_29 = arith.constant 0 : index
    %c0_30 = arith.constant 0 : index
    %59 = vector.load %arg3[%c0_28, %c0_29, %c0_30] : memref<1x128x512xf32, #tpu.memory_space<vmem>>, vector<1x128x512xf32>
    %60 = vector.shape_cast %59 : vector<1x128x512xf32> to vector<128x512xf32>
    %cst_31 = arith.constant dense<0.000000e+00> : vector<8x512xf32>
    %61 = tpu.matmul %47, %60, %cst_31 {dimension_numbers = #tpu.dot_dimension_numbers<[1], [0], [0], [1], [0, 0, 1, 1], [], []>} : vector<8x128xf32>, vector<128x512xf32>, vector<8x512xf32> -> vector<8x512xf32>
    %62 = arith.addf %58, %61 : vector<8x512xf32>
    %63 = vector.extract_strided_slice %62 {offsets = [0, 0], sizes = [8, 128], strides = [1, 1]} : vector<8x512xf32> to vector<8x128xf32>
    %64 = arith.negf %63 : vector<8x128xf32>
    %65 = math.exp %64 : vector<8x128xf32>
    %cst_32 = arith.constant 1.000000e+00 : f32
    %66 = vector.broadcast %cst_32 : f32 to vector<8x128xf32>
    %67 = arith.addf %66, %65 : vector<8x128xf32>
    %68 = arith.divf %66, %67 : vector<8x128xf32>
    %69 = vector.extract_strided_slice %62 {offsets = [0, 128], sizes = [8, 128], strides = [1, 1]} : vector<8x512xf32> to vector<8x128xf32>
    %70 = arith.negf %69 : vector<8x128xf32>
    %71 = math.exp %70 : vector<8x128xf32>
    %cst_33 = arith.constant 1.000000e+00 : f32
    %72 = vector.broadcast %cst_33 : f32 to vector<8x128xf32>
    %73 = arith.addf %72, %71 : vector<8x128xf32>
    %74 = arith.divf %72, %73 : vector<8x128xf32>
    %75 = vector.extract_strided_slice %62 {offsets = [0, 256], sizes = [8, 128], strides = [1, 1]} : vector<8x512xf32> to vector<8x128xf32>
    %76 = math.tanh %75 : vector<8x128xf32>
    %77 = vector.extract_strided_slice %62 {offsets = [0, 384], sizes = [8, 128], strides = [1, 1]} : vector<8x512xf32> to vector<8x128xf32>
    %78 = arith.negf %77 : vector<8x128xf32>
    %79 = math.exp %78 : vector<8x128xf32>
    %cst_34 = arith.constant 1.000000e+00 : f32
    %80 = vector.broadcast %cst_34 : f32 to vector<8x128xf32>
    %81 = arith.addf %80, %79 : vector<8x128xf32>
    %82 = arith.divf %80, %81 : vector<8x128xf32>
    %83 = arith.mulf %74, %45 : vector<8x128xf32>
    %84 = arith.mulf %68, %76 : vector<8x128xf32>
    %85 = arith.addf %83, %84 : vector<8x128xf32>
    %86 = math.tanh %85 : vector<8x128xf32>
    %87 = arith.mulf %82, %86 : vector<8x128xf32>
    %c0_35 = arith.constant 0 : index
    %88 = arith.index_cast %54 : i32 to index
    %c0_36 = arith.constant 0 : index
    %c0_37 = arith.constant 0 : index
    %89 = vector.load %arg5[%c0_35, %88, %c0_36, %c0_37] : memref<1x8x8x128xf32, #tpu.memory_space<vmem>>, vector<1x1x8x128xf32>
    %90 = vector.shape_cast %89 : vector<1x1x8x128xf32> to vector<8x128xf32>
    %91 = vector.shape_cast %87 : vector<8x128xf32> to vector<1x1x8x128xf32>
    tpu.vector_store %arg5[%c0_35, %88, %c0_36, %c0_37], %91 {strides = array<i32>} : memref<1x8x8x128xf32, #tpu.memory_space<vmem>>, vector<1x1x8x128xf32>,
    %c2_i32 = arith.constant 2 : i32
    %c1_i32_38 = arith.constant 1 : i32
    %92 = arith.cmpi eq, %arg0, %c1_i32_38 : i32
    %c7_i32_39 = arith.constant 7 : i32
    %93 = arith.subi %c7_i32_39, %c2_i32 : i32
    %94 = arith.select %92, %93, %c2_i32 : i32
    %c8_i32_40 = arith.constant 8 : i32
    %95 = arith.muli %94, %c8_i32_40 : i32
    %96 = tpu.assume_multiple %95, 8 : i32
    %97 = arith.index_cast %96 : i32 to index
    %c0_41 = arith.constant 0 : index
    %98 = vector.load %arg6[%97, %c0_41] : memref<64x512xf32, #tpu.memory_space<vmem>>, vector<8x512xf32>
    %c0_42 = arith.constant 0 : index
    %c0_43 = arith.constant 0 : index
    %c0_44 = arith.constant 0 : index
    %99 = vector.load %arg3[%c0_42, %c0_43, %c0_44] : memref<1x128x512xf32, #tpu.memory_space<vmem>>, vector<1x128x512xf32>
    %100 = vector.shape_cast %99 : vector<1x128x512xf32> to vector<128x512xf32>
    %cst_45 = arith.constant dense<0.000000e+00> : vector<8x512xf32>
    %101 = tpu.matmul %87, %100, %cst_45 {dimension_numbers = #tpu.dot_dimension_numbers<[1], [0], [0], [1], [0, 0, 1, 1], [], []>} : vector<8x128xf32>, vector<128x512xf32>, vector<8x512xf32> -> vector<8x512xf32>
    %102 = arith.addf %98, %101 : vector<8x512xf32>
    %103 = vector.extract_strided_slice %102 {offsets = [0, 0], sizes = [8, 128], strides = [1, 1]} : vector<8x512xf32> to vector<8x128xf32>
    %104 = arith.negf %103 : vector<8x128xf32>
    %105 = math.exp %104 : vector<8x128xf32>
    %cst_46 = arith.constant 1.000000e+00 : f32
    %106 = vector.broadcast %cst_46 : f32 to vector<8x128xf32>
    %107 = arith.addf %106, %105 : vector<8x128xf32>
    %108 = arith.divf %106, %107 : vector<8x128xf32>
    %109 = vector.extract_strided_slice %102 {offsets = [0, 128], sizes = [8, 128], strides = [1, 1]} : vector<8x512xf32> to vector<8x128xf32>
    %110 = arith.negf %109 : vector<8x128xf32>
    %111 = math.exp %110 : vector<8x128xf32>
    %cst_47 = arith.constant 1.000000e+00 : f32
    %112 = vector.broadcast %cst_47 : f32 to vector<8x128xf32>
    %113 = arith.addf %112, %111 : vector<8x128xf32>
    %114 = arith.divf %112, %113 : vector<8x128xf32>
    %115 = vector.extract_strided_slice %102 {offsets = [0, 256], sizes = [8, 128], strides = [1, 1]} : vector<8x512xf32> to vector<8x128xf32>
    %116 = math.tanh %115 : vector<8x128xf32>
    %117 = vector.extract_strided_slice %102 {offsets = [0, 384], sizes = [8, 128], strides = [1, 1]} : vector<8x512xf32> to vector<8x128xf32>
    %118 = arith.negf %117 : vector<8x128xf32>
    %119 = math.exp %118 : vector<8x128xf32>
    %cst_48 = arith.constant 1.000000e+00 : f32
    %120 = vector.broadcast %cst_48 : f32 to vector<8x128xf32>
    %121 = arith.addf %120, %119 : vector<8x128xf32>
    %122 = arith.divf %120, %121 : vector<8x128xf32>
    %123 = arith.mulf %114, %85 : vector<8x128xf32>
    %124 = arith.mulf %108, %116 : vector<8x128xf32>
    %125 = arith.addf %123, %124 : vector<8x128xf32>
    %126 = math.tanh %125 : vector<8x128xf32>
    %127 = arith.mulf %122, %126 : vector<8x128xf32>
    %c0_49 = arith.constant 0 : index
    %128 = arith.index_cast %94 : i32 to index
    %c0_50 = arith.constant 0 : index
    %c0_51 = arith.constant 0 : index
    %129 = vector.load %arg5[%c0_49, %128, %c0_50, %c0_51] : memref<1x8x8x128xf32, #tpu.memory_space<vmem>>, vector<1x1x8x128xf32>
    %130 = vector.shape_cast %129 : vector<1x1x8x128xf32> to vector<8x128xf32>
    %131 = vector.shape_cast %127 : vector<8x128xf32> to vector<1x1x8x128xf32>
    tpu.vector_store %arg5[%c0_49, %128, %c0_50, %c0_51], %131 {strides = array<i32>} : memref<1x8x8x128xf32, #tpu.memory_space<vmem>>, vector<1x1x8x128xf32>,
    %c3_i32 = arith.constant 3 : i32
    %c1_i32_52 = arith.constant 1 : i32
    %132 = arith.cmpi eq, %arg0, %c1_i32_52 : i32
    %c7_i32_53 = arith.constant 7 : i32
    %133 = arith.subi %c7_i32_53, %c3_i32 : i32
    %134 = arith.select %132, %133, %c3_i32 : i32
    %c8_i32_54 = arith.constant 8 : i32
    %135 = arith.muli %134, %c8_i32_54 : i32
    %136 = tpu.assume_multiple %135, 8 : i32
    %137 = arith.index_cast %136 : i32 to index
    %c0_55 = arith.constant 0 : index
    %138 = vector.load %arg6[%137, %c0_55] : memref<64x512xf32, #tpu.memory_space<vmem>>, vector<8x512xf32>
    %c0_56 = arith.constant 0 : index
    %c0_57 = arith.constant 0 : index
    %c0_58 = arith.constant 0 : index
    %139 = vector.load %arg3[%c0_56, %c0_57, %c0_58] : memref<1x128x512xf32, #tpu.memory_space<vmem>>, vector<1x128x512xf32>
    %140 = vector.shape_cast %139 : vector<1x128x512xf32> to vector<128x512xf32>
    %cst_59 = arith.constant dense<0.000000e+00> : vector<8x512xf32>
    %141 = tpu.matmul %127, %140, %cst_59 {dimension_numbers = #tpu.dot_dimension_numbers<[1], [0], [0], [1], [0, 0, 1, 1], [], []>} : vector<8x128xf32>, vector<128x512xf32>, vector<8x512xf32> -> vector<8x512xf32>
    %142 = arith.addf %138, %141 : vector<8x512xf32>
    %143 = vector.extract_strided_slice %142 {offsets = [0, 0], sizes = [8, 128], strides = [1, 1]} : vector<8x512xf32> to vector<8x128xf32>
    %144 = arith.negf %143 : vector<8x128xf32>
    %145 = math.exp %144 : vector<8x128xf32>
    %cst_60 = arith.constant 1.000000e+00 : f32
    %146 = vector.broadcast %cst_60 : f32 to vector<8x128xf32>
    %147 = arith.addf %146, %145 : vector<8x128xf32>
    %148 = arith.divf %146, %147 : vector<8x128xf32>
    %149 = vector.extract_strided_slice %142 {offsets = [0, 128], sizes = [8, 128], strides = [1, 1]} : vector<8x512xf32> to vector<8x128xf32>
    %150 = arith.negf %149 : vector<8x128xf32>
    %151 = math.exp %150 : vector<8x128xf32>
    %cst_61 = arith.constant 1.000000e+00 : f32
    %152 = vector.broadcast %cst_61 : f32 to vector<8x128xf32>
    %153 = arith.addf %152, %151 : vector<8x128xf32>
    %154 = arith.divf %152, %153 : vector<8x128xf32>
    %155 = vector.extract_strided_slice %142 {offsets = [0, 256], sizes = [8, 128], strides = [1, 1]} : vector<8x512xf32> to vector<8x128xf32>
    %156 = math.tanh %155 : vector<8x128xf32>
    %157 = vector.extract_strided_slice %142 {offsets = [0, 384], sizes = [8, 128], strides = [1, 1]} : vector<8x512xf32> to vector<8x128xf32>
    %158 = arith.negf %157 : vector<8x128xf32>
    %159 = math.exp %158 : vector<8x128xf32>
    %cst_62 = arith.constant 1.000000e+00 : f32
    %160 = vector.broadcast %cst_62 : f32 to vector<8x128xf32>
    %161 = arith.addf %160, %159 : vector<8x128xf32>
    %162 = arith.divf %160, %161 : vector<8x128xf32>
    %163 = arith.mulf %154, %125 : vector<8x128xf32>
    %164 = arith.mulf %148, %156 : vector<8x128xf32>
    %165 = arith.addf %163, %164 : vector<8x128xf32>
    %166 = math.tanh %165 : vector<8x128xf32>
    %167 = arith.mulf %162, %166 : vector<8x128xf32>
    %c0_63 = arith.constant 0 : index
    %168 = arith.index_cast %134 : i32 to index
    %c0_64 = arith.constant 0 : index
    %c0_65 = arith.constant 0 : index
    %169 = vector.load %arg5[%c0_63, %168, %c0_64, %c0_65] : memref<1x8x8x128xf32, #tpu.memory_space<vmem>>, vector<1x1x8x128xf32>
    %170 = vector.shape_cast %169 : vector<1x1x8x128xf32> to vector<8x128xf32>
    %171 = vector.shape_cast %167 : vector<8x128xf32> to vector<1x1x8x128xf32>
    tpu.vector_store %arg5[%c0_63, %168, %c0_64, %c0_65], %171 {strides = array<i32>} : memref<1x8x8x128xf32, #tpu.memory_space<vmem>>, vector<1x1x8x128xf32>,
    %c4_i32 = arith.constant 4 : i32
    %c1_i32_66 = arith.constant 1 : i32
    %172 = arith.cmpi eq, %arg0, %c1_i32_66 : i32
    %c7_i32_67 = arith.constant 7 : i32
    %173 = arith.subi %c7_i32_67, %c4_i32 : i32
    %174 = arith.select %172, %173, %c4_i32 : i32
    %c8_i32_68 = arith.constant 8 : i32
    %175 = arith.muli %174, %c8_i32_68 : i32
    %176 = tpu.assume_multiple %175, 8 : i32
    %177 = arith.index_cast %176 : i32 to index
    %c0_69 = arith.constant 0 : index
    %178 = vector.load %arg6[%177, %c0_69] : memref<64x512xf32, #tpu.memory_space<vmem>>, vector<8x512xf32>
    %c0_70 = arith.constant 0 : index
    %c0_71 = arith.constant 0 : index
    %c0_72 = arith.constant 0 : index
    %179 = vector.load %arg3[%c0_70, %c0_71, %c0_72] : memref<1x128x512xf32, #tpu.memory_space<vmem>>, vector<1x128x512xf32>
    %180 = vector.shape_cast %179 : vector<1x128x512xf32> to vector<128x512xf32>
    %cst_73 = arith.constant dense<0.000000e+00> : vector<8x512xf32>
    %181 = tpu.matmul %167, %180, %cst_73 {dimension_numbers = #tpu.dot_dimension_numbers<[1], [0], [0], [1], [0, 0, 1, 1], [], []>} : vector<8x128xf32>, vector<128x512xf32>, vector<8x512xf32> -> vector<8x512xf32>
    %182 = arith.addf %178, %181 : vector<8x512xf32>
    %183 = vector.extract_strided_slice %182 {offsets = [0, 0], sizes = [8, 128], strides = [1, 1]} : vector<8x512xf32> to vector<8x128xf32>
    %184 = arith.negf %183 : vector<8x128xf32>
    %185 = math.exp %184 : vector<8x128xf32>
    %cst_74 = arith.constant 1.000000e+00 : f32
    %186 = vector.broadcast %cst_74 : f32 to vector<8x128xf32>
    %187 = arith.addf %186, %185 : vector<8x128xf32>
    %188 = arith.divf %186, %187 : vector<8x128xf32>
    %189 = vector.extract_strided_slice %182 {offsets = [0, 128], sizes = [8, 128], strides = [1, 1]} : vector<8x512xf32> to vector<8x128xf32>
    %190 = arith.negf %189 : vector<8x128xf32>
    %191 = math.exp %190 : vector<8x128xf32>
    %cst_75 = arith.constant 1.000000e+00 : f32
    %192 = vector.broadcast %cst_75 : f32 to vector<8x128xf32>
    %193 = arith.addf %192, %191 : vector<8x128xf32>
    %194 = arith.divf %192, %193 : vector<8x128xf32>
    %195 = vector.extract_strided_slice %182 {offsets = [0, 256], sizes = [8, 128], strides = [1, 1]} : vector<8x512xf32> to vector<8x128xf32>
    %196 = math.tanh %195 : vector<8x128xf32>
    %197 = vector.extract_strided_slice %182 {offsets = [0, 384], sizes = [8, 128], strides = [1, 1]} : vector<8x512xf32> to vector<8x128xf32>
    %198 = arith.negf %197 : vector<8x128xf32>
    %199 = math.exp %198 : vector<8x128xf32>
    %cst_76 = arith.constant 1.000000e+00 : f32
    %200 = vector.broadcast %cst_76 : f32 to vector<8x128xf32>
    %201 = arith.addf %200, %199 : vector<8x128xf32>
    %202 = arith.divf %200, %201 : vector<8x128xf32>
    %203 = arith.mulf %194, %165 : vector<8x128xf32>
    %204 = arith.mulf %188, %196 : vector<8x128xf32>
    %205 = arith.addf %203, %204 : vector<8x128xf32>
    %206 = math.tanh %205 : vector<8x128xf32>
    %207 = arith.mulf %202, %206 : vector<8x128xf32>
    %c0_77 = arith.constant 0 : index
    %208 = arith.index_cast %174 : i32 to index
    %c0_78 = arith.constant 0 : index
    %c0_79 = arith.constant 0 : index
    %209 = vector.load %arg5[%c0_77, %208, %c0_78, %c0_79] : memref<1x8x8x128xf32, #tpu.memory_space<vmem>>, vector<1x1x8x128xf32>
    %210 = vector.shape_cast %209 : vector<1x1x8x128xf32> to vector<8x128xf32>
    %211 = vector.shape_cast %207 : vector<8x128xf32> to vector<1x1x8x128xf32>
    tpu.vector_store %arg5[%c0_77, %208, %c0_78, %c0_79], %211 {strides = array<i32>} : memref<1x8x8x128xf32, #tpu.memory_space<vmem>>, vector<1x1x8x128xf32>,
    %c5_i32 = arith.constant 5 : i32
    %c1_i32_80 = arith.constant 1 : i32
    %212 = arith.cmpi eq, %arg0, %c1_i32_80 : i32
    %c7_i32_81 = arith.constant 7 : i32
    %213 = arith.subi %c7_i32_81, %c5_i32 : i32
    %214 = arith.select %212, %213, %c5_i32 : i32
    %c8_i32_82 = arith.constant 8 : i32
    %215 = arith.muli %214, %c8_i32_82 : i32
    %216 = tpu.assume_multiple %215, 8 : i32
    %217 = arith.index_cast %216 : i32 to index
    %c0_83 = arith.constant 0 : index
    %218 = vector.load %arg6[%217, %c0_83] : memref<64x512xf32, #tpu.memory_space<vmem>>, vector<8x512xf32>
    %c0_84 = arith.constant 0 : index
    %c0_85 = arith.constant 0 : index
    %c0_86 = arith.constant 0 : index
    %219 = vector.load %arg3[%c0_84, %c0_85, %c0_86] : memref<1x128x512xf32, #tpu.memory_space<vmem>>, vector<1x128x512xf32>
    %220 = vector.shape_cast %219 : vector<1x128x512xf32> to vector<128x512xf32>
    %cst_87 = arith.constant dense<0.000000e+00> : vector<8x512xf32>
    %221 = tpu.matmul %207, %220, %cst_87 {dimension_numbers = #tpu.dot_dimension_numbers<[1], [0], [0], [1], [0, 0, 1, 1], [], []>} : vector<8x128xf32>, vector<128x512xf32>, vector<8x512xf32> -> vector<8x512xf32>
    %222 = arith.addf %218, %221 : vector<8x512xf32>
    %223 = vector.extract_strided_slice %222 {offsets = [0, 0], sizes = [8, 128], strides = [1, 1]} : vector<8x512xf32> to vector<8x128xf32>
    %224 = arith.negf %223 : vector<8x128xf32>
    %225 = math.exp %224 : vector<8x128xf32>
    %cst_88 = arith.constant 1.000000e+00 : f32
    %226 = vector.broadcast %cst_88 : f32 to vector<8x128xf32>
    %227 = arith.addf %226, %225 : vector<8x128xf32>
    %228 = arith.divf %226, %227 : vector<8x128xf32>
    %229 = vector.extract_strided_slice %222 {offsets = [0, 128], sizes = [8, 128], strides = [1, 1]} : vector<8x512xf32> to vector<8x128xf32>
    %230 = arith.negf %229 : vector<8x128xf32>
    %231 = math.exp %230 : vector<8x128xf32>
    %cst_89 = arith.constant 1.000000e+00 : f32
    %232 = vector.broadcast %cst_89 : f32 to vector<8x128xf32>
    %233 = arith.addf %232, %231 : vector<8x128xf32>
    %234 = arith.divf %232, %233 : vector<8x128xf32>
    %235 = vector.extract_strided_slice %222 {offsets = [0, 256], sizes = [8, 128], strides = [1, 1]} : vector<8x512xf32> to vector<8x128xf32>
    %236 = math.tanh %235 : vector<8x128xf32>
    %237 = vector.extract_strided_slice %222 {offsets = [0, 384], sizes = [8, 128], strides = [1, 1]} : vector<8x512xf32> to vector<8x128xf32>
    %238 = arith.negf %237 : vector<8x128xf32>
    %239 = math.exp %238 : vector<8x128xf32>
    %cst_90 = arith.constant 1.000000e+00 : f32
    %240 = vector.broadcast %cst_90 : f32 to vector<8x128xf32>
    %241 = arith.addf %240, %239 : vector<8x128xf32>
    %242 = arith.divf %240, %241 : vector<8x128xf32>
    %243 = arith.mulf %234, %205 : vector<8x128xf32>
    %244 = arith.mulf %228, %236 : vector<8x128xf32>
    %245 = arith.addf %243, %244 : vector<8x128xf32>
    %246 = math.tanh %245 : vector<8x128xf32>
    %247 = arith.mulf %242, %246 : vector<8x128xf32>
    %c0_91 = arith.constant 0 : index
    %248 = arith.index_cast %214 : i32 to index
    %c0_92 = arith.constant 0 : index
    %c0_93 = arith.constant 0 : index
    %249 = vector.load %arg5[%c0_91, %248, %c0_92, %c0_93] : memref<1x8x8x128xf32, #tpu.memory_space<vmem>>, vector<1x1x8x128xf32>
    %250 = vector.shape_cast %249 : vector<1x1x8x128xf32> to vector<8x128xf32>
    %251 = vector.shape_cast %247 : vector<8x128xf32> to vector<1x1x8x128xf32>
    tpu.vector_store %arg5[%c0_91, %248, %c0_92, %c0_93], %251 {strides = array<i32>} : memref<1x8x8x128xf32, #tpu.memory_space<vmem>>, vector<1x1x8x128xf32>,
    %c6_i32 = arith.constant 6 : i32
    %c1_i32_94 = arith.constant 1 : i32
    %252 = arith.cmpi eq, %arg0, %c1_i32_94 : i32
    %c7_i32_95 = arith.constant 7 : i32
    %253 = arith.subi %c7_i32_95, %c6_i32 : i32
    %254 = arith.select %252, %253, %c6_i32 : i32
    %c8_i32_96 = arith.constant 8 : i32
    %255 = arith.muli %254, %c8_i32_96 : i32
    %256 = tpu.assume_multiple %255, 8 : i32
    %257 = arith.index_cast %256 : i32 to index
    %c0_97 = arith.constant 0 : index
    %258 = vector.load %arg6[%257, %c0_97] : memref<64x512xf32, #tpu.memory_space<vmem>>, vector<8x512xf32>
    %c0_98 = arith.constant 0 : index
    %c0_99 = arith.constant 0 : index
    %c0_100 = arith.constant 0 : index
    %259 = vector.load %arg3[%c0_98, %c0_99, %c0_100] : memref<1x128x512xf32, #tpu.memory_space<vmem>>, vector<1x128x512xf32>
    %260 = vector.shape_cast %259 : vector<1x128x512xf32> to vector<128x512xf32>
    %cst_101 = arith.constant dense<0.000000e+00> : vector<8x512xf32>
    %261 = tpu.matmul %247, %260, %cst_101 {dimension_numbers = #tpu.dot_dimension_numbers<[1], [0], [0], [1], [0, 0, 1, 1], [], []>} : vector<8x128xf32>, vector<128x512xf32>, vector<8x512xf32> -> vector<8x512xf32>
    %262 = arith.addf %258, %261 : vector<8x512xf32>
    %263 = vector.extract_strided_slice %262 {offsets = [0, 0], sizes = [8, 128], strides = [1, 1]} : vector<8x512xf32> to vector<8x128xf32>
    %264 = arith.negf %263 : vector<8x128xf32>
    %265 = math.exp %264 : vector<8x128xf32>
    %cst_102 = arith.constant 1.000000e+00 : f32
    %266 = vector.broadcast %cst_102 : f32 to vector<8x128xf32>
    %267 = arith.addf %266, %265 : vector<8x128xf32>
    %268 = arith.divf %266, %267 : vector<8x128xf32>
    %269 = vector.extract_strided_slice %262 {offsets = [0, 128], sizes = [8, 128], strides = [1, 1]} : vector<8x512xf32> to vector<8x128xf32>
    %270 = arith.negf %269 : vector<8x128xf32>
    %271 = math.exp %270 : vector<8x128xf32>
    %cst_103 = arith.constant 1.000000e+00 : f32
    %272 = vector.broadcast %cst_103 : f32 to vector<8x128xf32>
    %273 = arith.addf %272, %271 : vector<8x128xf32>
    %274 = arith.divf %272, %273 : vector<8x128xf32>
    %275 = vector.extract_strided_slice %262 {offsets = [0, 256], sizes = [8, 128], strides = [1, 1]} : vector<8x512xf32> to vector<8x128xf32>
    %276 = math.tanh %275 : vector<8x128xf32>
    %277 = vector.extract_strided_slice %262 {offsets = [0, 384], sizes = [8, 128], strides = [1, 1]} : vector<8x512xf32> to vector<8x128xf32>
    %278 = arith.negf %277 : vector<8x128xf32>
    %279 = math.exp %278 : vector<8x128xf32>
    %cst_104 = arith.constant 1.000000e+00 : f32
    %280 = vector.broadcast %cst_104 : f32 to vector<8x128xf32>
    %281 = arith.addf %280, %279 : vector<8x128xf32>
    %282 = arith.divf %280, %281 : vector<8x128xf32>
    %283 = arith.mulf %274, %245 : vector<8x128xf32>
    %284 = arith.mulf %268, %276 : vector<8x128xf32>
    %285 = arith.addf %283, %284 : vector<8x128xf32>
    %286 = math.tanh %285 : vector<8x128xf32>
    %287 = arith.mulf %282, %286 : vector<8x128xf32>
    %c0_105 = arith.constant 0 : index
    %288 = arith.index_cast %254 : i32 to index
    %c0_106 = arith.constant 0 : index
    %c0_107 = arith.constant 0 : index
    %289 = vector.load %arg5[%c0_105, %288, %c0_106, %c0_107] : memref<1x8x8x128xf32, #tpu.memory_space<vmem>>, vector<1x1x8x128xf32>
    %290 = vector.shape_cast %289 : vector<1x1x8x128xf32> to vector<8x128xf32>
    %291 = vector.shape_cast %287 : vector<8x128xf32> to vector<1x1x8x128xf32>
    tpu.vector_store %arg5[%c0_105, %288, %c0_106, %c0_107], %291 {strides = array<i32>} : memref<1x8x8x128xf32, #tpu.memory_space<vmem>>, vector<1x1x8x128xf32>,
    %c7_i32_108 = arith.constant 7 : i32
    %c1_i32_109 = arith.constant 1 : i32
    %292 = arith.cmpi eq, %arg0, %c1_i32_109 : i32
    %c7_i32_110 = arith.constant 7 : i32
    %293 = arith.subi %c7_i32_110, %c7_i32_108 : i32
    %294 = arith.select %292, %293, %c7_i32_108 : i32
    %c8_i32_111 = arith.constant 8 : i32
    %295 = arith.muli %294, %c8_i32_111 : i32
    %296 = tpu.assume_multiple %295, 8 : i32
    %297 = arith.index_cast %296 : i32 to index
    %c0_112 = arith.constant 0 : index
    %298 = vector.load %arg6[%297, %c0_112] : memref<64x512xf32, #tpu.memory_space<vmem>>, vector<8x512xf32>
    %c0_113 = arith.constant 0 : index
    %c0_114 = arith.constant 0 : index
    %c0_115 = arith.constant 0 : index
    %299 = vector.load %arg3[%c0_113, %c0_114, %c0_115] : memref<1x128x512xf32, #tpu.memory_space<vmem>>, vector<1x128x512xf32>
    %300 = vector.shape_cast %299 : vector<1x128x512xf32> to vector<128x512xf32>
    %cst_116 = arith.constant dense<0.000000e+00> : vector<8x512xf32>
    %301 = tpu.matmul %287, %300, %cst_116 {dimension_numbers = #tpu.dot_dimension_numbers<[1], [0], [0], [1], [0, 0, 1, 1], [], []>} : vector<8x128xf32>, vector<128x512xf32>, vector<8x512xf32> -> vector<8x512xf32>
    %302 = arith.addf %298, %301 : vector<8x512xf32>
    %303 = vector.extract_strided_slice %302 {offsets = [0, 0], sizes = [8, 128], strides = [1, 1]} : vector<8x512xf32> to vector<8x128xf32>
    %304 = arith.negf %303 : vector<8x128xf32>
    %305 = math.exp %304 : vector<8x128xf32>
    %cst_117 = arith.constant 1.000000e+00 : f32
    %306 = vector.broadcast %cst_117 : f32 to vector<8x128xf32>
    %307 = arith.addf %306, %305 : vector<8x128xf32>
    %308 = arith.divf %306, %307 : vector<8x128xf32>
    %309 = vector.extract_strided_slice %302 {offsets = [0, 128], sizes = [8, 128], strides = [1, 1]} : vector<8x512xf32> to vector<8x128xf32>
    %310 = arith.negf %309 : vector<8x128xf32>
    %311 = math.exp %310 : vector<8x128xf32>
    %cst_118 = arith.constant 1.000000e+00 : f32
    %312 = vector.broadcast %cst_118 : f32 to vector<8x128xf32>
    %313 = arith.addf %312, %311 : vector<8x128xf32>
    %314 = arith.divf %312, %313 : vector<8x128xf32>
    %315 = vector.extract_strided_slice %302 {offsets = [0, 256], sizes = [8, 128], strides = [1, 1]} : vector<8x512xf32> to vector<8x128xf32>
    %316 = math.tanh %315 : vector<8x128xf32>
    %317 = vector.extract_strided_slice %302 {offsets = [0, 384], sizes = [8, 128], strides = [1, 1]} : vector<8x512xf32> to vector<8x128xf32>
    %318 = arith.negf %317 : vector<8x128xf32>
    %319 = math.exp %318 : vector<8x128xf32>
    %cst_119 = arith.constant 1.000000e+00 : f32
    %320 = vector.broadcast %cst_119 : f32 to vector<8x128xf32>
    %321 = arith.addf %320, %319 : vector<8x128xf32>
    %322 = arith.divf %320, %321 : vector<8x128xf32>
    %323 = arith.mulf %314, %285 : vector<8x128xf32>
    %324 = arith.mulf %308, %316 : vector<8x128xf32>
    %325 = arith.addf %323, %324 : vector<8x128xf32>
    %326 = math.tanh %325 : vector<8x128xf32>
    %327 = arith.mulf %322, %326 : vector<8x128xf32>
    %c0_120 = arith.constant 0 : index
    %328 = arith.index_cast %294 : i32 to index
    %c0_121 = arith.constant 0 : index
    %c0_122 = arith.constant 0 : index
    %329 = vector.load %arg5[%c0_120, %328, %c0_121, %c0_122] : memref<1x8x8x128xf32, #tpu.memory_space<vmem>>, vector<1x1x8x128xf32>
    %330 = vector.shape_cast %329 : vector<1x1x8x128xf32> to vector<8x128xf32>
    %331 = vector.shape_cast %327 : vector<8x128xf32> to vector<1x1x8x128xf32>
    tpu.vector_store %arg5[%c0_120, %328, %c0_121, %c0_122], %331 {strides = array<i32>} : memref<1x8x8x128xf32, #tpu.memory_space<vmem>>, vector<1x1x8x128xf32>,
    %c8_i32_123 = arith.constant 8 : i32
    return
  }
  func.func @transform_0(%arg0: i32) -> (i32, i32, i32) {
    %c0_i32 = arith.constant 0 : i32
    %c0_i32_0 = arith.constant 0 : i32
    %c0_i32_1 = arith.constant 0 : i32
    %c0_i32_2 = arith.constant 0 : i32
    return %c0_i32, %c0_i32_0, %c0_i32_1 : i32, i32, i32
  }
  func.func @transform_1(%arg0: i32) -> (i32, i32, i32) {
    %c0_i32 = arith.constant 0 : i32
    %c0_i32_0 = arith.constant 0 : i32
    %c0_i32_1 = arith.constant 0 : i32
    return %arg0, %c0_i32, %c0_i32_0 : i32, i32, i32
  }
  func.func @transform_2(%arg0: i32) -> (i32, i32, i32) {
    %c0_i32 = arith.constant 0 : i32
    %c0_i32_0 = arith.constant 0 : i32
    %c0_i32_1 = arith.constant 0 : i32
    return %arg0, %c0_i32, %c0_i32_0 : i32, i32, i32
  }
  func.func @transform_3(%arg0: i32) -> (i32, i32, i32) {
    %c0_i32 = arith.constant 0 : i32
    %c0_i32_0 = arith.constant 0 : i32
    %c0_i32_1 = arith.constant 0 : i32
    return %arg0, %c0_i32, %c0_i32_0 : i32, i32, i32
  }
  func.func @transform_4(%arg0: i32) -> (i32, i32, i32, i32) {
    %c0_i32 = arith.constant 0 : i32
    %c0_i32_0 = arith.constant 0 : i32
    %c0_i32_1 = arith.constant 0 : i32
    %c0_i32_2 = arith.constant 0 : i32
    return %arg0, %c0_i32, %c0_i32_0, %c0_i32_1 : i32, i32, i32, i32
  }
}

</mosaic_0001>

<llo_original>
// kernel: tpu_custom_call.1
$region0: #{tpu_custom_call.1}
  #allocation0 [shape = 'u32[]', space=smem, size = 0x4, offset = 0x4, fixed_abs, tag = 'smem constant byte address 0x4 - core index']
  #allocation1 [shape = 'u32[144,128]{1,0:T(1,128)}', space=vmem, size = 0x12000, scoped, tag = 'internal scratch']
  #allocation2 [shape = 'f32[64,512]{1,0:T(8,128)}', space=vmem, size = 0x20000, scoped, tag = 'scratch operand']
  %s0 = inlined_call_operand.hbm [shape: f32[8,8,128], index: 0, kind: input, shape index: {}]
  %s1 = inlined_call_operand.hbm [shape: f32[2,128,512], index: 1, kind: input, shape index: {}]
  %s2 = inlined_call_operand.hbm [shape: f32[2,128,512], index: 2, kind: input, shape index: {}]
  %s3 = inlined_call_operand.vmem [shape: f32[2,1,512], index: 3, kind: input, shape index: {}]
  %s4 = inlined_call_operand.hbm [shape: f32[2,8,8,128], index: 4, kind: output, shape index: {}]
  %s5 = sld [smem:[#allocation0]]
  $region61: #{tpu_custom_call.1} parent=0
    _
  %s7 = ssub.s32 1, %s5
  %s8 = scalar_select 0, %s7, %s5
  $region1: #{tpu_custom_call.1} parent=0
    #allocation3 [shape = 'u8[32768]{0}', space=vmem, size = 0x8000, scoped, tag = 'input window, operand 0, single buffered']
    #allocation4 [shape = 's32[2]{0}', space=sflag, size = 0x8, scoped, tag = 'scoped memory for tpu_custom_call.1']
    #allocation5 [shape = 's32[2]{0}', space=sflag, size = 0x8, scoped, tag = 'scoped memory for tpu_custom_call.1']
    #allocation6 [shape = 'u8[524288]{0}', space=vmem, size = 0x80000, scoped, tag = 'input window, operand 1']
    #allocation7 [shape = 's32[2]{0}', space=sflag, size = 0x8, scoped, tag = 'scoped memory for tpu_custom_call.1']
    #allocation8 [shape = 'u8[524288]{0}', space=vmem, size = 0x80000, scoped, tag = 'input window, operand 2']
    #allocation9 [shape = 'u8[65536]{0}', space=vmem, size = 0x10000, scoped, tag = 'output window, operand 0']
    %9 = vsyncpa [#allocation4], 0
    %10 = vsyncpa [#allocation7], 0
    %s11 = scalar_lea.sflag [#allocation7], 1
    %12 = vsyncpa %s11, 0
    %13 = vsyncpa [#allocation5], 0
    %s14 = scalar_lea.sflag [#allocation5], 1
    %15 = vsyncpa %s14, 0
    loop: start=0, step=1, limit=4
    $region2: #{tpu_custom_call.1} parent=1 // loop_pre_header
      _
    $region3: #{tpu_custom_call.1} parent=1 // loop_header
      %s17 = sphi 0, %s21
      %p18 = scmp.ge.s32.totalorder %s17, 4
      %s25 = sphi 0, %s25
      %s27 = sphi 0, %s25
      %s28 = sphi 0, %s27
      %s42 = sphi 0, %s28
      %s48 = sphi 0, %s50
      %s51 = sphi 0, %s48
      %s52 = sphi 0, %s51
      %s68 = sphi 0, %s52
      %s74 = sphi 0, %s76
      %s77 = sphi 0, %s74
      %s78 = sphi 0, %s77
      %s94 = sphi 0, %s78
      %s100 = sphi 0, %s102
      %s103 = sphi 0, %s100
      %s104 = sphi 0, %s103
      %s120 = sphi 0, %s104
      %s126 = sphi 0, %s128
      %s129 = sphi 0, %s126
      %s130 = sphi 0, %s129
      %s146 = sphi 0, %s130
    $region4: #{tpu_custom_call.1} parent=1 // loop_header_branch
      %20 = sbr.rel (%p18) target = $region8
    $region5: #{tpu_custom_call.1} parent=1 // loop_body
      %s22 = ssub.s32 %s17, 1
      %s23 = ssub.s32 %s17, 2
      %s24 = sadd.s32 %s17, 1
      %s26 = sadd.s32 %s25, 1
      %p29 = scmp.eq.s32.totalorder %s17, 1
      %p30 = scmp.ne.s32.totalorder %s25, %s27
      %p31 = scmp.eq.s32.totalorder %s17, 0
      %p32 = por %p30, %p31
      %p33 = scmp.ne.s32.totalorder %s25, %s27
      %p34 = scmp.eq.s32.totalorder %s22, 1
      %p35 = por %p33, %p34
      %p36 = scmp.ne.s32.totalorder %s27, %s28
      %p37 = scmp.eq.s32.totalorder %s22, 0
      %p38 = por %p36, %p37
      %p39 = scmp.ne.s32.totalorder %s27, %s28
      %p40 = scmp.eq.s32.totalorder %s23, 1
      %p41 = por %p39, %p40
      %p43 = scmp.ne.s32.totalorder %s28, %s42
      %p44 = scmp.eq.s32.totalorder %s23, 0
      %p45 = por %p43, %p44
      %s46 = ssub.s32 %s17, %s24
      %p47 = scmp.eq.s32.totalorder %s46, 0
      %s49 = sadd.s32 %s48, 1
      %s50 = scalar_select %p47, %s48, %s49
      %p53 = pneg %p47
      %p54 = scmp.eq.s32.totalorder %s17, 1
      %p55 = por %p53, %p54
      %p56 = scmp.ne.s32.totalorder %s48, %s51
      %p57 = scmp.eq.s32.totalorder %s17, 0
      %p58 = por %p56, %p57
      %p59 = scmp.ne.s32.totalorder %s48, %s51
      %p60 = scmp.eq.s32.totalorder %s22, 1
      %p61 = por %p59, %p60
      %p62 = scmp.ne.s32.totalorder %s51, %s52
      %p63 = scmp.eq.s32.totalorder %s22, 0
      %p64 = por %p62, %p63
      %p65 = scmp.ne.s32.totalorder %s51, %s52
      %p66 = scmp.eq.s32.totalorder %s23, 1
      %p67 = por %p65, %p66
      %p69 = scmp.ne.s32.totalorder %s52, %s68
      %p70 = scmp.eq.s32.totalorder %s23, 0
      %p71 = por %p69, %p70
      %s72 = ssub.s32 %s17, %s24
      %p73 = scmp.eq.s32.totalorder %s72, 0
      %s75 = sadd.s32 %s74, 1
      %s76 = scalar_select %p73, %s74, %s75
      %p79 = pneg %p73
      %p80 = scmp.eq.s32.totalorder %s17, 1
      %p81 = por %p79, %p80
      %p82 = scmp.ne.s32.totalorder %s74, %s77
      %p83 = scmp.eq.s32.totalorder %s17, 0
      %p84 = por %p82, %p83
      %p85 = scmp.ne.s32.totalorder %s74, %s77
      %p86 = scmp.eq.s32.totalorder %s22, 1
      %p87 = por %p85, %p86
      %p88 = scmp.ne.s32.totalorder %s77, %s78
      %p89 = scmp.eq.s32.totalorder %s22, 0
      %p90 = por %p88, %p89
      %p91 = scmp.ne.s32.totalorder %s77, %s78
      %p92 = scmp.eq.s32.totalorder %s23, 1
      %p93 = por %p91, %p92
      %p95 = scmp.ne.s32.totalorder %s78, %s94
      %p96 = scmp.eq.s32.totalorder %s23, 0
      %p97 = por %p95, %p96
      %s98 = ssub.s32 %s17, %s24
      %p99 = scmp.eq.s32.totalorder %s98, 0
      %s101 = sadd.s32 %s100, 1
      %s102 = scalar_select %p99, %s100, %s101
      %p105 = pneg %p99
      %p106 = scmp.eq.s32.totalorder %s17, 1
      %p107 = por %p105, %p106
      %p108 = scmp.ne.s32.totalorder %s100, %s103
      %p109 = scmp.eq.s32.totalorder %s17, 0
      %p110 = por %p108, %p109
      %p111 = scmp.ne.s32.totalorder %s100, %s103
      %p112 = scmp.eq.s32.totalorder %s22, 1
      %p113 = por %p111, %p112
      %p114 = scmp.ne.s32.totalorder %s103, %s104
      %p115 = scmp.eq.s32.totalorder %s22, 0
      %p116 = por %p114, %p115
      %p117 = scmp.ne.s32.totalorder %s103, %s104
      %p118 = scmp.eq.s32.totalorder %s23, 1
      %p119 = por %p117, %p118
      %p121 = scmp.ne.s32.totalorder %s104, %s120
      %p122 = scmp.eq.s32.totalorder %s23, 0
      %p123 = por %p121, %p122
      %s124 = ssub.s32 %s17, %s24
      %p125 = scmp.eq.s32.totalorder %s124, 0
      %s127 = sadd.s32 %s126, 1
      %s128 = scalar_select %p125, %s126, %s127
      %p131 = pneg %p125
      %p132 = scmp.eq.s32.totalorder %s17, 1
      %p133 = por %p131, %p132
      %p134 = scmp.ne.s32.totalorder %s126, %s129
      %p135 = scmp.eq.s32.totalorder %s17, 0
      %p136 = por %p134, %p135
      %p137 = scmp.ne.s32.totalorder %s126, %s129
      %p138 = scmp.eq.s32.totalorder %s22, 1
      %p139 = por %p137, %p138
      %p140 = scmp.ne.s32.totalorder %s129, %s130
      %p141 = scmp.eq.s32.totalorder %s22, 0
      %p142 = por %p140, %p141
      %p143 = scmp.ne.s32.totalorder %s129, %s130
      %p144 = scmp.eq.s32.totalorder %s23, 1
      %p145 = por %p143, %p144
      %p147 = scmp.ne.s32.totalorder %s130, %s146
      %p148 = scmp.eq.s32.totalorder %s23, 0
      %p149 = por %p147, %p148
      %p150 = scmp.le.s32.totalorder 1, %s17
      %p151 = scmp.lt.s32.totalorder %s17, 3
      %p152 = pnand %p150, %p151
      %p153 = pneg %p152
      // Predicated region
      $region9: #{tpu_custom_call.1} parent=5 // pred_check
        _
      $region10: #{tpu_custom_call.1} parent=5 // pred_check_branch
        %155 = sbr.rel (%p152) target = $region12
      $region11: #{tpu_custom_call.1} parent=5 // pred_region
        %s156 = ssub.s32 %s17, 1
        // Predicated region
        $region13: #{tpu_custom_call.1} parent=11 // pred_check
          %p157 = pneg %p38
        $region14: #{tpu_custom_call.1} parent=11 // pred_check_branch
          %159 = sbr.rel (%p157) target = $region16
        $region15: #{tpu_custom_call.1} parent=11 // pred_region
          %s161 = ssub.s32 1024, 1024
          %162 = vsyncadd [#allocation4], %s161
          %s163 = sshll.u32 [#allocation3], 4
          %s164 = int_to_ptr.vmem [resolvable:$true] %s163
          %169 = dma.hbm_to_vmem [thread:$0]  %s0, 1024, %s164, [#allocation4], 128, 128, 8
        $region16: #{tpu_custom_call.1} parent=11 // pred_fallthru
          _
      $region12: #{tpu_custom_call.1} parent=5 // pred_fallthru
        _
      %p170 = scmp.lt.s32.totalorder %s17, 2
      // Predicated region
      $region17: #{tpu_custom_call.1} parent=5 // pred_check
        %p171 = pneg %p170
      $region18: #{tpu_custom_call.1} parent=5 // pred_check_branch
        %173 = sbr.rel (%p171) target = $region20
      $region19: #{tpu_custom_call.1} parent=5 // pred_region
        // Predicated region
        $region21: #{tpu_custom_call.1} parent=19 // pred_check
          %p174 = pneg %p58
        $region22: #{tpu_custom_call.1} parent=19 // pred_check_branch
          %176 = sbr.rel (%p174) target = $region24
        $region23: #{tpu_custom_call.1} parent=19 // pred_region
          %s177 = sand.u32 %s17, 1
          %s178 = scalar_lea.sflag [#allocation7], %s177
          %s179 = sand.u32 %s48, 1
          %s180 = smul.addr %s179, 512
          %s181 = scalar_lea.vmem [#allocation6], %s180
          %s183 = ssub.s32 8192, 8192
          %184 = vsyncadd %s178, %s183
          %s185 = smul.addr %s17, 64
          %s186 = smul.addr %s185, 128
          %s187 = scalar_lea.hbm %s1, %s186
          %s188 = sshll.u32 %s181, 4
          %s189 = int_to_ptr.vmem [resolvable:$true] %s188
          %194 = dma.hbm_to_vmem [thread:$0]  %s187, 8192, %s189, %s178, 512, 512, 32
        $region24: #{tpu_custom_call.1} parent=19 // pred_fallthru
          _
        // Predicated region
        $region25: #{tpu_custom_call.1} parent=19 // pred_check
          %p195 = pneg %p84
        $region26: #{tpu_custom_call.1} parent=19 // pred_check_branch
          %197 = sbr.rel (%p195) target = $region28
        $region27: #{tpu_custom_call.1} parent=19 // pred_region
          %s198 = sand.u32 %s17, 1
          %s199 = scalar_lea.sflag [#allocation7], %s198
          %s200 = sand.u32 %s74, 1
          %s201 = smul.addr %s200, 512
          %s202 = scalar_lea.vmem [#allocation8], %s201
          %s204 = ssub.s32 8192, 8192
          %205 = vsyncadd %s199, %s204
          %s206 = smul.addr %s17, 64
          %s207 = smul.addr %s206, 128
          %s208 = scalar_lea.hbm %s2, %s207
          %s209 = sshll.u32 %s202, 4
          %s210 = int_to_ptr.vmem [resolvable:$true] %s209
          %215 = dma.hbm_to_vmem [thread:$0]  %s208, 8192, %s210, %s199, 512, 512, 32
        $region28: #{tpu_custom_call.1} parent=19 // pred_fallthru
          _
        // Predicated region
        $region29: #{tpu_custom_call.1} parent=19 // pred_check
          %p216 = pneg %p110
        $region30: #{tpu_custom_call.1} parent=19 // pred_check_branch
          %218 = sbr.rel (%p216) target = $region32
        $region31: #{tpu_custom_call.1} parent=19 // pred_region
          %p219 = scmp.lt.s32.totalorder %s17, 1
          %s220 = scalar_select %p219, %s17, 1
          %s221 = smul.addr %s220, 4
          %s222 = scalar_lea.vmem %s3, %s221
        $region32: #{tpu_custom_call.1} parent=19 // pred_fallthru
          _
      $region20: #{tpu_custom_call.1} parent=5 // pred_fallthru
        _
      %p223 = scmp.le.s32.totalorder 1, %s17
      %p224 = scmp.lt.s32.totalorder %s17, 3
      %p225 = pnand %p223, %p224
      %p226 = pneg %p225
      // Predicated region
      $region33: #{tpu_custom_call.1} parent=5 // pred_check
        _
      $region34: #{tpu_custom_call.1} parent=5 // pred_check_branch
        %228 = sbr.rel (%p225) target = $region36
      $region35: #{tpu_custom_call.1} parent=5 // pred_region
        %s229 = ssub.s32 %s17, 1
        // Predicated region
        $region37: #{tpu_custom_call.1} parent=35 // pred_check
          %p230 = pneg %p38
        $region38: #{tpu_custom_call.1} parent=35 // pred_check_branch
          %232 = sbr.rel (%p230) target = $region40
        $region39: #{tpu_custom_call.1} parent=35 // pred_region
          %233 = dma.done [#allocation4], 1024
        $region40: #{tpu_custom_call.1} parent=35 // pred_fallthru
          _
        %s234 = sand.u32 %s22, 1
        %s235 = scalar_lea.sflag [#allocation7], %s234
        %s236 = sand.u32 %s51, 1
        %s237 = smul.addr %s236, 512
        %s238 = scalar_lea.vmem [#allocation6], %s237
        // Predicated region
        $region41: #{tpu_custom_call.1} parent=35 // pred_check
          %p239 = pneg %p64
        $region42: #{tpu_custom_call.1} parent=35 // pred_check_branch
          %241 = sbr.rel (%p239) target = $region44
        $region43: #{tpu_custom_call.1} parent=35 // pred_region
          %242 = dma.done %s235, 8192
        $region44: #{tpu_custom_call.1} parent=35 // pred_fallthru
          _
        %s243 = sand.u32 %s22, 1
        %s244 = scalar_lea.sflag [#allocation7], %s243
        %s245 = sand.u32 %s77, 1
        %s246 = smul.addr %s245, 512
        %s247 = scalar_lea.vmem [#allocation8], %s246
        // Predicated region
        $region45: #{tpu_custom_call.1} parent=35 // pred_check
          %p248 = pneg %p90
        $region46: #{tpu_custom_call.1} parent=35 // pred_check_branch
          %250 = sbr.rel (%p248) target = $region48
        $region47: #{tpu_custom_call.1} parent=35 // pred_region
          %251 = dma.done %s244, 8192
        $region48: #{tpu_custom_call.1} parent=35 // pred_fallthru
          _
        %p252 = pneg %p38
        %p253 = pneg %p35
        %s254 = sand.u32 %s22, 1
        %s255 = scalar_lea.sflag [#allocation7], %s254
        %s256 = sand.u32 %s51, 1
        %s257 = smul.addr %s256, 512
        %s258 = scalar_lea.vmem [#allocation6], %s257
        %p259 = pneg %p64
        %p260 = pneg %p61
        %s261 = sand.u32 %s22, 1
        %s262 = scalar_lea.sflag [#allocation7], %s261
        %s263 = sand.u32 %s77, 1
        %s264 = smul.addr %s263, 512
        %s265 = scalar_lea.vmem [#allocation8], %s264
        %p266 = pneg %p90
        %p267 = pneg %p87
        %p268 = scmp.lt.s32.totalorder %s22, 1
        %s269 = scalar_select %p268, %s22, 1
        %s270 = smul.addr %s269, 4
        %s271 = scalar_lea.vmem %s3, %s270
        %p272 = pneg %p116
        %p273 = pneg %p113
        %p274 = pneg %p142
        %p275 = pneg %p139
        %s276 = sand.u32 %s129, 1
        %s277 = scalar_lea.sflag [#allocation5], %s276
        %s278 = sand.u32 %s129, 1
        %s279 = smul.addr %s278, 64
        %s280 = scalar_lea.vmem [#allocation9], %s279
        %p281 = scmp.lt.s32.totalorder %s22, 1
        %s282 = scalar_select %p281, %s22, 1
        %s283 = smul.addr %s282, 4
        %s284 = scalar_lea.vmem %s3, %s283
        %v285 = vld [vmem:[#allocation3] sm:$0xff]
        %v286 = vld [vmem:[#allocation3 + $0x8] sm:$0xff]
        %v287 = vld [vmem:[#allocation3 + $0x10] sm:$0xff]
        %v288 = vld [vmem:[#allocation3 + $0x18] sm:$0xff]
        %v289 = vld [vmem:[#allocation3 + $0x20] sm:$0xff]
        %v290 = vld [vmem:[#allocation3 + $0x28] sm:$0xff]
        %v291 = vld [vmem:[#allocation3 + $0x30] sm:$0xff]
        %v292 = vld [vmem:[#allocation3 + $0x38] sm:$0xff]
        %v293 = vld [vmem:[%s238] sm:$0xff]
        %v294 = vld [vmem:[%s238 + $0x8] sm:$0xff]
        %v295 = vld [vmem:[%s238 + $0x10] sm:$0xff]
        %v296 = vld [vmem:[%s238 + $0x18] sm:$0xff]
        %v297 = vld [vmem:[%s238 + $0x20] sm:$0xff]
        %v298 = vld [vmem:[%s238 + $0x28] sm:$0xff]
        %v299 = vld [vmem:[%s238 + $0x30] sm:$0xff]
        %v300 = vld [vmem:[%s238 + $0x38] sm:$0xff]
        %v301 = vld [vmem:[%s238 + $0x40] sm:$0xff]
        %v302 = vld [vmem:[%s238 + $0x48] sm:$0xff]
        %v303 = vld [vmem:[%s238 + $0x50] sm:$0xff]
        %v304 = vld [vmem:[%s238 + $0x58] sm:$0xff]
        %v305 = vld [vmem:[%s238 + $0x60] sm:$0xff]
        %v306 = vld [vmem:[%s238 + $0x68] sm:$0xff]
        %v307 = vld [vmem:[%s238 + $0x70] sm:$0xff]
        %v308 = vld [vmem:[%s238 + $0x78] sm:$0xff]
        %v309 = vld [vmem:[%s238 + $0x80] sm:$0xff]
        %v310 = vld [vmem:[%s238 + $0x88] sm:$0xff]
        %v311 = vld [vmem:[%s238 + $0x90] sm:$0xff]
        %v312 = vld [vmem:[%s238 + $0x98] sm:$0xff]
        %v313 = vld [vmem:[%s238 + $0xa0] sm:$0xff]
        %v314 = vld [vmem:[%s238 + $0xa8] sm:$0xff]
        %v315 = vld [vmem:[%s238 + $0xb0] sm:$0xff]
        %v316 = vld [vmem:[%s238 + $0xb8] sm:$0xff]
        %v317 = vld [vmem:[%s238 + $0xc0] sm:$0xff]
        %v318 = vld [vmem:[%s238 + $0xc8] sm:$0xff]
        %v319 = vld [vmem:[%s238 + $0xd0] sm:$0xff]
        %v320 = vld [vmem:[%s238 + $0xd8] sm:$0xff]
        %v321 = vld [vmem:[%s238 + $0xe0] sm:$0xff]
        %v322 = vld [vmem:[%s238 + $0xe8] sm:$0xff]
        %v323 = vld [vmem:[%s238 + $0xf0] sm:$0xff]
        %v324 = vld [vmem:[%s238 + $0xf8] sm:$0xff]
        %v325 = vld [vmem:[%s238 + $0x100] sm:$0xff]
        %v326 = vld [vmem:[%s238 + $0x108] sm:$0xff]
        %v327 = vld [vmem:[%s238 + $0x110] sm:$0xff]
        %v328 = vld [vmem:[%s238 + $0x118] sm:$0xff]
        %v329 = vld [vmem:[%s238 + $0x120] sm:$0xff]
        %v330 = vld [vmem:[%s238 + $0x128] sm:$0xff]
        %v331 = vld [vmem:[%s238 + $0x130] sm:$0xff]
        %v332 = vld [vmem:[%s238 + $0x138] sm:$0xff]
        %v333 = vld [vmem:[%s238 + $0x140] sm:$0xff]
        %v334 = vld [vmem:[%s238 + $0x148] sm:$0xff]
        %v335 = vld [vmem:[%s238 + $0x150] sm:$0xff]
        %v336 = vld [vmem:[%s238 + $0x158] sm:$0xff]
        %v337 = vld [vmem:[%s238 + $0x160] sm:$0xff]
        %v338 = vld [vmem:[%s238 + $0x168] sm:$0xff]
        %v339 = vld [vmem:[%s238 + $0x170] sm:$0xff]
        %v340 = vld [vmem:[%s238 + $0x178] sm:$0xff]
        %v341 = vld [vmem:[%s238 + $0x180] sm:$0xff]
        %v342 = vld [vmem:[%s238 + $0x188] sm:$0xff]
        %v343 = vld [vmem:[%s238 + $0x190] sm:$0xff]
        %v344 = vld [vmem:[%s238 + $0x198] sm:$0xff]
        %v345 = vld [vmem:[%s238 + $0x1a0] sm:$0xff]
        %v346 = vld [vmem:[%s238 + $0x1a8] sm:$0xff]
        %v347 = vld [vmem:[%s238 + $0x1b0] sm:$0xff]
        %v348 = vld [vmem:[%s238 + $0x1b8] sm:$0xff]
        %v349 = vld [vmem:[%s238 + $0x1c0] sm:$0xff]
        %v350 = vld [vmem:[%s238 + $0x1c8] sm:$0xff]
        %v351 = vld [vmem:[%s238 + $0x1d0] sm:$0xff]
        %v352 = vld [vmem:[%s238 + $0x1d8] sm:$0xff]
        %v353 = vld [vmem:[%s238 + $0x1e0] sm:$0xff]
        %v354 = vld [vmem:[%s238 + $0x1e8] sm:$0xff]
        %v355 = vld [vmem:[%s238 + $0x1f0] sm:$0xff]
        %v356 = vld [vmem:[%s238 + $0x1f8] sm:$0xff]
        %v357 = vld [vmem:[%s284] sm:$0xf]
        %v359 = vlaneseq
        %v360 = vshrl.u32 %v359, 7
        %v361 = vsub.s32 0, %v360
        %v362 = vrot.slane %v357, %v361
        %v363 = vlaneseq
        %v364 = vshrl.u32 %v363, 7
        %v365 = vsub.s32 1, %v364
        %v366 = vrot.slane %v357, %v365
        %v367 = vlaneseq
        %v368 = vshrl.u32 %v367, 7
        %v369 = vsub.s32 2, %v368
        %v370 = vrot.slane %v357, %v369
        %v371 = vlaneseq
        %v372 = vshrl.u32 %v371, 7
        %v373 = vsub.s32 3, %v372
        %v374 = vrot.slane %v357, %v373
        %379 = vmatprep.subr.mxu0 %v294
        %380 = vmatpush1.msra.mxu0 %v293
        %381 = vmatprep.subr.mxu0 %v298
        %382 = vmatpush1.msra.mxu0 %v297
        %383 = vmatprep.subr.mxu0 %v302
        %384 = vmatpush1.msra.mxu0 %v301
        %385 = vmatprep.subr.mxu0 %v306
        %386 = vmatpush1.msra.mxu0 %v305
        %387 = vmatprep.subr.mxu0 %v310
        %388 = vmatpush1.msra.mxu0 %v309
        %389 = vmatprep.subr.mxu0 %v314
        %390 = vmatpush1.msra.mxu0 %v313
        %391 = vmatprep.subr.mxu0 %v318
        %392 = vmatpush1.msra.mxu0 %v317
        %393 = vmatprep.subr.mxu0 %v322
        %394 = vmatpush1.msra.mxu0 %v321
        %395 = vmatprep.subr.mxu0 %v326
        %396 = vmatpush1.msra.mxu0 %v325
        %397 = vmatprep.subr.mxu0 %v330
        %398 = vmatpush1.msra.mxu0 %v329
        %399 = vmatprep.subr.mxu0 %v334
        %400 = vmatpush1.msra.mxu0 %v333
        %401 = vmatprep.subr.mxu0 %v338
        %402 = vmatpush1.msra.mxu0 %v337
        %403 = vmatprep.subr.mxu0 %v342
        %404 = vmatpush1.msra.mxu0 %v341
        %405 = vmatprep.subr.mxu0 %v346
        %406 = vmatpush1.msra.mxu0 %v345
        %407 = vmatprep.subr.mxu0 %v350
        %408 = vmatpush1.msra.mxu0 %v349
        %409 = vmatprep.subr.mxu0 %v354
        %410 = vmatpush1.msra.mxu0 %v353
        %411 = vmatprep.subr.mxu0 0.0
        %412 = vmatpush1.msra.mxu0 0.0
        %413 = vmatprep.subr.mxu0 0.0
        %414 = vmatpush1.msra.mxu0 0.0
        %415 = vmatprep.subr.mxu0 0.0
        %416 = vmatpush1.msra.mxu0 0.0
        %417 = vmatprep.subr.mxu0 0.0
        %418 = vmatpush1.msra.mxu0 0.0
        %419 = vmatprep.subr.mxu0 0.0
        %420 = vmatpush1.msra.mxu0 0.0
        %421 = vmatprep.subr.mxu0 0.0
        %422 = vmatpush1.msra.mxu0 0.0
        %423 = vmatprep.subr.mxu0 0.0
        %424 = vmatpush1.msra.mxu0 0.0
        %425 = vmatprep.subr.mxu0 0.0
        %426 = vmatpush1.msra.mxu0 0.0
        %427 = vmatprep.subr.mxu0 0.0
        %428 = vmatpush1.msra.mxu0 0.0
        %429 = vmatprep.subr.mxu0 0.0
        %430 = vmatpush1.msra.mxu0 0.0
        %431 = vmatprep.subr.mxu0 0.0
        %432 = vmatpush1.msra.mxu0 0.0
        %433 = vmatprep.subr.mxu0 0.0
        %434 = vmatpush1.msra.mxu0 0.0
        %435 = vmatprep.subr.mxu0 0.0
        %436 = vmatpush1.msra.mxu0 0.0
        %437 = vmatprep.subr.mxu0 0.0
        %438 = vmatpush1.msra.mxu0 0.0
        %439 = vmatprep.subr.mxu0 0.0
        %440 = vmatpush1.msra.mxu0 0.0
        %441 = vmatprep.subr.mxu0 0.0
        %442 = vmatpush1.msra.mxu0 0.0
        %443 = vmatprep.mubr.f32.mxu0 0.0
        %444 = vmatmul.mubr.f32.gmra.mrb[0].mxu0 %v285
        %v445 = vpop.f32.mrb[0].mxu0
        %v446 = vadd.f32 %v362, %v445
        %v447 = vpop.f32.mrb[0].mxu0
        %v448 = vadd.f32 %v366, %v447
        %449 = vmatprep.mubr.f32.mxu0 0.0
        %450 = vmatmul.mubr.f32.gmra.mrb[0].mxu0 %v286
        %v451 = vpop.f32.mrb[0].mxu0
        %v452 = vadd.f32 %v362, %v451
        %v453 = vpop.f32.mrb[0].mxu0
        %v454 = vadd.f32 %v366, %v453
        %455 = vmatprep.mubr.f32.mxu0 0.0
        %456 = vmatmul.mubr.f32.gmra.mrb[0].mxu0 %v287
        %v457 = vpop.f32.mrb[0].mxu0
        %v458 = vadd.f32 %v362, %v457
        %v459 = vpop.f32.mrb[0].mxu0
        %v460 = vadd.f32 %v366, %v459
        %461 = vmatprep.mubr.f32.mxu0 0.0
        %462 = vmatmul.mubr.f32.gmra.mrb[0].mxu0 %v288
        %v463 = vpop.f32.mrb[0].mxu0
        %v464 = vadd.f32 %v362, %v463
        %v465 = vpop.f32.mrb[0].mxu0
        %v466 = vadd.f32 %v366, %v465
        %467 = vmatprep.mubr.f32.mxu0 0.0
        %468 = vmatmul.mubr.f32.gmra.mrb[0].mxu0 %v289
        %v469 = vpop.f32.mrb[0].mxu0
        %v470 = vadd.f32 %v362, %v469
        %v471 = vpop.f32.mrb[0].mxu0
        %v472 = vadd.f32 %v366, %v471
        %473 = vmatprep.mubr.f32.mxu0 0.0
        %474 = vmatmul.mubr.f32.gmra.mrb[0].mxu0 %v290
        %v475 = vpop.f32.mrb[0].mxu0
        %v476 = vadd.f32 %v362, %v475
        %v477 = vpop.f32.mrb[0].mxu0
        %v478 = vadd.f32 %v366, %v477
        %479 = vmatprep.mubr.f32.mxu0 0.0
        %480 = vmatmul.mubr.f32.gmra.mrb[0].mxu0 %v291
        %v481 = vpop.f32.mrb[0].mxu0
        %v482 = vadd.f32 %v362, %v481
        %v483 = vpop.f32.mrb[0].mxu0
        %v484 = vadd.f32 %v366, %v483
        %485 = vmatprep.mubr.f32.mxu0 0.0
        %486 = vmatmul.mubr.f32.gmra.mrb[0].mxu0 %v292
        %v487 = vpop.f32.mrb[0].mxu0
        %v488 = vadd.f32 %v362, %v487
        %v489 = vpop.f32.mrb[0].mxu0
        %v490 = vadd.f32 %v366, %v489
        %491 = vdwg.mxu0
        %492 = vmatprep.subr.mxu0 %v296
        %493 = vmatpush1.msra.mxu0 %v295
        %494 = vmatprep.subr.mxu0 %v300
        %495 = vmatpush1.msra.mxu0 %v299
        %496 = vmatprep.subr.mxu0 %v304
        %497 = vmatpush1.msra.mxu0 %v303
        %498 = vmatprep.subr.mxu0 %v308
        %499 = vmatpush1.msra.mxu0 %v307
        %500 = vmatprep.subr.mxu0 %v312
        %501 = vmatpush1.msra.mxu0 %v311
        %502 = vmatprep.subr.mxu0 %v316
        %503 = vmatpush1.msra.mxu0 %v315
        %504 = vmatprep.subr.mxu0 %v320
        %505 = vmatpush1.msra.mxu0 %v319
        %506 = vmatprep.subr.mxu0 %v324
        %507 = vmatpush1.msra.mxu0 %v323
        %508 = vmatprep.subr.mxu0 %v328
        %509 = vmatpush1.msra.mxu0 %v327
        %510 = vmatprep.subr.mxu0 %v332
        %511 = vmatpush1.msra.mxu0 %v331
        %512 = vmatprep.subr.mxu0 %v336
        %513 = vmatpush1.msra.mxu0 %v335
        %514 = vmatprep.subr.mxu0 %v340
        %515 = vmatpush1.msra.mxu0 %v339
        %516 = vmatprep.subr.mxu0 %v344
        %517 = vmatpush1.msra.mxu0 %v343
        %518 = vmatprep.subr.mxu0 %v348
        %519 = vmatpush1.msra.mxu0 %v347
        %520 = vmatprep.subr.mxu0 %v352
        %521 = vmatpush1.msra.mxu0 %v351
        %522 = vmatprep.subr.mxu0 %v356
        %523 = vmatpush1.msra.mxu0 %v355
        %524 = vmatprep.subr.mxu0 0.0
        %525 = vmatpush1.msra.mxu0 0.0
        %526 = vmatprep.subr.mxu0 0.0
        %527 = vmatpush1.msra.mxu0 0.0
        %528 = vmatprep.subr.mxu0 0.0
        %529 = vmatpush1.msra.mxu0 0.0
        %530 = vmatprep.subr.mxu0 0.0
        %531 = vmatpush1.msra.mxu0 0.0
        %532 = vmatprep.subr.mxu0 0.0
        %533 = vmatpush1.msra.mxu0 0.0
        %534 = vmatprep.subr.mxu0 0.0
        %535 = vmatpush1.msra.mxu0 0.0
        %536 = vmatprep.subr.mxu0 0.0
        %537 = vmatpush1.msra.mxu0 0.0
        %538 = vmatprep.subr.mxu0 0.0
        %539 = vmatpush1.msra.mxu0 0.0
        %540 = vmatprep.subr.mxu0 0.0
        %541 = vmatpush1.msra.mxu0 0.0
        %542 = vmatprep.subr.mxu0 0.0
        %543 = vmatpush1.msra.mxu0 0.0
        %544 = vmatprep.subr.mxu0 0.0
        %545 = vmatpush1.msra.mxu0 0.0
        %546 = vmatprep.subr.mxu0 0.0
        %547 = vmatpush1.msra.mxu0 0.0
        %548 = vmatprep.subr.mxu0 0.0
        %549 = vmatpush1.msra.mxu0 0.0
        %550 = vmatprep.subr.mxu0 0.0
        %551 = vmatpush1.msra.mxu0 0.0
        %552 = vmatprep.subr.mxu0 0.0
        %553 = vmatpush1.msra.mxu0 0.0
        %554 = vmatprep.subr.mxu0 0.0
        %555 = vmatpush1.msra.mxu0 0.0
        %556 = vmatprep.mubr.f32.mxu0 0.0
        %557 = vmatmul.mubr.f32.gmra.mrb[0].mxu0 %v285
        %v558 = vpop.f32.mrb[0].mxu0
        %v559 = vadd.f32 %v370, %v558
        %v560 = vpop.f32.mrb[0].mxu0
        %v561 = vadd.f32 %v374, %v560
        %562 = vmatprep.mubr.f32.mxu0 0.0
        %563 = vmatmul.mubr.f32.gmra.mrb[0].mxu0 %v286
        %v564 = vpop.f32.mrb[0].mxu0
        %v565 = vadd.f32 %v370, %v564
        %v566 = vpop.f32.mrb[0].mxu0
        %v567 = vadd.f32 %v374, %v566
        %568 = vmatprep.mubr.f32.mxu0 0.0
        %569 = vmatmul.mubr.f32.gmra.mrb[0].mxu0 %v287
        %v570 = vpop.f32.mrb[0].mxu0
        %v571 = vadd.f32 %v370, %v570
        %v572 = vpop.f32.mrb[0].mxu0
        %v573 = vadd.f32 %v374, %v572
        %574 = vmatprep.mubr.f32.mxu0 0.0
        %575 = vmatmul.mubr.f32.gmra.mrb[0].mxu0 %v288
        %v576 = vpop.f32.mrb[0].mxu0
        %v577 = vadd.f32 %v370, %v576
        %v578 = vpop.f32.mrb[0].mxu0
        %v579 = vadd.f32 %v374, %v578
        %580 = vmatprep.mubr.f32.mxu0 0.0
        %581 = vmatmul.mubr.f32.gmra.mrb[0].mxu0 %v289
        %v582 = vpop.f32.mrb[0].mxu0
        %v583 = vadd.f32 %v370, %v582
        %v584 = vpop.f32.mrb[0].mxu0
        %v585 = vadd.f32 %v374, %v584
        %586 = vmatprep.mubr.f32.mxu0 0.0
        %587 = vmatmul.mubr.f32.gmra.mrb[0].mxu0 %v290
        %v588 = vpop.f32.mrb[0].mxu0
        %v589 = vadd.f32 %v370, %v588
        %v590 = vpop.f32.mrb[0].mxu0
        %v591 = vadd.f32 %v374, %v590
        %592 = vmatprep.mubr.f32.mxu0 0.0
        %593 = vmatmul.mubr.f32.gmra.mrb[0].mxu0 %v291
        %v594 = vpop.f32.mrb[0].mxu0
        %v595 = vadd.f32 %v370, %v594
        %v596 = vpop.f32.mrb[0].mxu0
        %v597 = vadd.f32 %v374, %v596
        %598 = vmatprep.mubr.f32.mxu0 0.0
        %599 = vmatmul.mubr.f32.gmra.mrb[0].mxu0 %v292
        %v600 = vpop.f32.mrb[0].mxu0
        %v601 = vadd.f32 %v370, %v600
        %v602 = vpop.f32.mrb[0].mxu0
        %v603 = vadd.f32 %v374, %v602
        %604 = vdwg.mxu0
        %605 = vst [vmem:[#allocation2] sm:$0xff] %v446
        %606 = vst [vmem:[#allocation2 + $0x8] sm:$0xff] %v448
        %607 = vst [vmem:[#allocation2 + $0x10] sm:$0xff] %v559
        %608 = vst [vmem:[#allocation2 + $0x18] sm:$0xff] %v561
        %609 = vst [vmem:[#allocation2 + $0x20] sm:$0xff] %v452
        %610 = vst [vmem:[#allocation2 + $0x28] sm:$0xff] %v454
        %611 = vst [vmem:[#allocation2 + $0x30] sm:$0xff] %v565
        %612 = vst [vmem:[#allocation2 + $0x38] sm:$0xff] %v567
        %613 = vst [vmem:[#allocation2 + $0x40] sm:$0xff] %v458
        %614 = vst [vmem:[#allocation2 + $0x48] sm:$0xff] %v460
        %615 = vst [vmem:[#allocation2 + $0x50] sm:$0xff] %v571
        %616 = vst [vmem:[#allocation2 + $0x58] sm:$0xff] %v573
        %617 = vst [vmem:[#allocation2 + $0x60] sm:$0xff] %v464
        %618 = vst [vmem:[#allocation2 + $0x68] sm:$0xff] %v466
        %619 = vst [vmem:[#allocation2 + $0x70] sm:$0xff] %v577
        %620 = vst [vmem:[#allocation2 + $0x78] sm:$0xff] %v579
        %621 = vst [vmem:[#allocation2 + $0x80] sm:$0xff] %v470
        %622 = vst [vmem:[#allocation2 + $0x88] sm:$0xff] %v472
        %623 = vst [vmem:[#allocation2 + $0x90] sm:$0xff] %v583
        %624 = vst [vmem:[#allocation2 + $0x98] sm:$0xff] %v585
        %625 = vst [vmem:[#allocation2 + $0xa0] sm:$0xff] %v476
        %626 = vst [vmem:[#allocation2 + $0xa8] sm:$0xff] %v478
        %627 = vst [vmem:[#allocation2 + $0xb0] sm:$0xff] %v589
        %628 = vst [vmem:[#allocation2 + $0xb8] sm:$0xff] %v591
        %629 = vst [vmem:[#allocation2 + $0xc0] sm:$0xff] %v482
        %630 = vst [vmem:[#allocation2 + $0xc8] sm:$0xff] %v484
        %631 = vst [vmem:[#allocation2 + $0xd0] sm:$0xff] %v595
        %632 = vst [vmem:[#allocation2 + $0xd8] sm:$0xff] %v597
        %633 = vst [vmem:[#allocation2 + $0xe0] sm:$0xff] %v488
        %634 = vst [vmem:[#allocation2 + $0xe8] sm:$0xff] %v490
        %635 = vst [vmem:[#allocation2 + $0xf0] sm:$0xff] %v601
        %636 = vst [vmem:[#allocation2 + $0xf8] sm:$0xff] %v603
        %p637 = scmp.eq.s32.totalorder %s22, 1
        %s638 = scalar_select %p637, 7, 0
        %s639 = smul.u32 %s638, 8
        %s640 = sshra.s32 %s639, 3
        %s641 = sand.u32 %s639, 7
        %s642 = smul.u32 %s640, 4
        %s643 = smul.addr %s642, 8
        %s644 = scalar_lea.vmem [#allocation2], %s643
        %v645 = vld [vmem:[%s644] sm:$0xff]
        %v646 = vld [vmem:[%s644 + $0x8] sm:$0xff]
        %v647 = vld [vmem:[%s644 + $0x10] sm:$0xff]
        %v648 = vld [vmem:[%s644 + $0x18] sm:$0xff]
        %v649 = vld [vmem:[%s247] sm:$0xff]
        %v650 = vld [vmem:[%s247 + $0x8] sm:$0xff]
        %v651 = vld [vmem:[%s247 + $0x10] sm:$0xff]
        %v652 = vld [vmem:[%s247 + $0x18] sm:$0xff]
        %v653 = vld [vmem:[%s247 + $0x20] sm:$0xff]
        %v654 = vld [vmem:[%s247 + $0x28] sm:$0xff]
        %v655 = vld [vmem:[%s247 + $0x30] sm:$0xff]
        %v656 = vld [vmem:[%s247 + $0x38] sm:$0xff]
        %v657 = vld [vmem:[%s247 + $0x40] sm:$0xff]
        %v658 = vld [vmem:[%s247 + $0x48] sm:$0xff]
        %v659 = vld [vmem:[%s247 + $0x50] sm:$0xff]
        %v660 = vld [vmem:[%s247 + $0x58] sm:$0xff]
        %v661 = vld [vmem:[%s247 + $0x60] sm:$0xff]
        %v662 = vld [vmem:[%s247 + $0x68] sm:$0xff]
        %v663 = vld [vmem:[%s247 + $0x70] sm:$0xff]
        %v664 = vld [vmem:[%s247 + $0x78] sm:$0xff]
        %v665 = vld [vmem:[%s247 + $0x80] sm:$0xff]
        %v666 = vld [vmem:[%s247 + $0x88] sm:$0xff]
        %v667 = vld [vmem:[%s247 + $0x90] sm:$0xff]
        %v668 = vld [vmem:[%s247 + $0x98] sm:$0xff]
        %v669 = vld [vmem:[%s247 + $0xa0] sm:$0xff]
        %v670 = vld [vmem:[%s247 + $0xa8] sm:$0xff]
        %v671 = vld [vmem:[%s247 + $0xb0] sm:$0xff]
        %v672 = vld [vmem:[%s247 + $0xb8] sm:$0xff]
        %v673 = vld [vmem:[%s247 + $0xc0] sm:$0xff]
        %v674 = vld [vmem:[%s247 + $0xc8] sm:$0xff]
        %v675 = vld [vmem:[%s247 + $0xd0] sm:$0xff]
        %v676 = vld [vmem:[%s247 + $0xd8] sm:$0xff]
        %v677 = vld [vmem:[%s247 + $0xe0] sm:$0xff]
        %v678 = vld [vmem:[%s247 + $0xe8] sm:$0xff]
        %v679 = vld [vmem:[%s247 + $0xf0] sm:$0xff]
        %v680 = vld [vmem:[%s247 + $0xf8] sm:$0xff]
        %v681 = vld [vmem:[%s247 + $0x100] sm:$0xff]
        %v682 = vld [vmem:[%s247 + $0x108] sm:$0xff]
        %v683 = vld [vmem:[%s247 + $0x110] sm:$0xff]
        %v684 = vld [vmem:[%s247 + $0x118] sm:$0xff]
        %v685 = vld [vmem:[%s247 + $0x120] sm:$0xff]
        %v686 = vld [vmem:[%s247 + $0x128] sm:$0xff]
        %v687 = vld [vmem:[%s247 + $0x130] sm:$0xff]
        %v688 = vld [vmem:[%s247 + $0x138] sm:$0xff]
        %v689 = vld [vmem:[%s247 + $0x140] sm:$0xff]
        %v690 = vld [vmem:[%s247 + $0x148] sm:$0xff]
        %v691 = vld [vmem:[%s247 + $0x150] sm:$0xff]
        %v692 = vld [vmem:[%s247 + $0x158] sm:$0xff]
        %v693 = vld [vmem:[%s247 + $0x160] sm:$0xff]
        %v694 = vld [vmem:[%s247 + $0x168] sm:$0xff]
        %v695 = vld [vmem:[%s247 + $0x170] sm:$0xff]
        %v696 = vld [vmem:[%s247 + $0x178] sm:$0xff]
        %v697 = vld [vmem:[%s247 + $0x180] sm:$0xff]
        %v698 = vld [vmem:[%s247 + $0x188] sm:$0xff]
        %v699 = vld [vmem:[%s247 + $0x190] sm:$0xff]
        %v700 = vld [vmem:[%s247 + $0x198] sm:$0xff]
        %v701 = vld [vmem:[%s247 + $0x1a0] sm:$0xff]
        %v702 = vld [vmem:[%s247 + $0x1a8] sm:$0xff]
        %v703 = vld [vmem:[%s247 + $0x1b0] sm:$0xff]
        %v704 = vld [vmem:[%s247 + $0x1b8] sm:$0xff]
        %v705 = vld [vmem:[%s247 + $0x1c0] sm:$0xff]
        %v706 = vld [vmem:[%s247 + $0x1c8] sm:$0xff]
        %v707 = vld [vmem:[%s247 + $0x1d0] sm:$0xff]
        %v708 = vld [vmem:[%s247 + $0x1d8] sm:$0xff]
        %v709 = vld [vmem:[%s247 + $0x1e0] sm:$0xff]
        %v710 = vld [vmem:[%s247 + $0x1e8] sm:$0xff]
        %v711 = vld [vmem:[%s247 + $0x1f0] sm:$0xff]
        %v712 = vld [vmem:[%s247 + $0x1f8] sm:$0xff]
        %713 = vmatprep.subr.mxu0 %v650
        %714 = vmatpush1.msra.mxu0 %v649
        %715 = vmatprep.subr.mxu0 %v654
        %716 = vmatpush1.msra.mxu0 %v653
        %717 = vmatprep.subr.mxu0 %v658
        %718 = vmatpush1.msra.mxu0 %v657
        %719 = vmatprep.subr.mxu0 %v662
        %720 = vmatpush1.msra.mxu0 %v661
        %721 = vmatprep.subr.mxu0 %v666
        %722 = vmatpush1.msra.mxu0 %v665
        %723 = vmatprep.subr.mxu0 %v670
        %724 = vmatpush1.msra.mxu0 %v669
        %725 = vmatprep.subr.mxu0 %v674
        %726 = vmatpush1.msra.mxu0 %v673
        %727 = vmatprep.subr.mxu0 %v678
        %728 = vmatpush1.msra.mxu0 %v677
        %729 = vmatprep.subr.mxu0 %v682
        %730 = vmatpush1.msra.mxu0 %v681
        %731 = vmatprep.subr.mxu0 %v686
        %732 = vmatpush1.msra.mxu0 %v685
        %733 = vmatprep.subr.mxu0 %v690
        %734 = vmatpush1.msra.mxu0 %v689
        %735 = vmatprep.subr.mxu0 %v694
        %736 = vmatpush1.msra.mxu0 %v693
        %737 = vmatprep.subr.mxu0 %v698
        %738 = vmatpush1.msra.mxu0 %v697
        %739 = vmatprep.subr.mxu0 %v702
        %740 = vmatpush1.msra.mxu0 %v701
        %741 = vmatprep.subr.mxu0 %v706
        %742 = vmatpush1.msra.mxu0 %v705
        %743 = vmatprep.subr.mxu0 %v710
        %744 = vmatpush1.msra.mxu0 %v709
        %745 = vmatprep.subr.mxu0 0.0
        %746 = vmatpush1.msra.mxu0 0.0
        %747 = vmatprep.subr.mxu0 0.0
        %748 = vmatpush1.msra.mxu0 0.0
        %749 = vmatprep.subr.mxu0 0.0
        %750 = vmatpush1.msra.mxu0 0.0
        %751 = vmatprep.subr.mxu0 0.0
        %752 = vmatpush1.msra.mxu0 0.0
        %753 = vmatprep.subr.mxu0 0.0
        %754 = vmatpush1.msra.mxu0 0.0
        %755 = vmatprep.subr.mxu0 0.0
        %756 = vmatpush1.msra.mxu0 0.0
        %757 = vmatprep.subr.mxu0 0.0
        %758 = vmatpush1.msra.mxu0 0.0
        %759 = vmatprep.subr.mxu0 0.0
        %760 = vmatpush1.msra.mxu0 0.0
        %761 = vmatprep.subr.mxu0 0.0
        %762 = vmatpush1.msra.mxu0 0.0
        %763 = vmatprep.subr.mxu0 0.0
        %764 = vmatpush1.msra.mxu0 0.0
        %765 = vmatprep.subr.mxu0 0.0
        %766 = vmatpush1.msra.mxu0 0.0
        %767 = vmatprep.subr.mxu0 0.0
        %768 = vmatpush1.msra.mxu0 0.0
        %769 = vmatprep.subr.mxu0 0.0
        %770 = vmatpush1.msra.mxu0 0.0
        %771 = vmatprep.subr.mxu0 0.0
        %772 = vmatpush1.msra.mxu0 0.0
        %773 = vmatprep.subr.mxu0 0.0
        %774 = vmatpush1.msra.mxu0 0.0
        %775 = vmatprep.subr.mxu0 0.0
        %776 = vmatpush1.msra.mxu0 0.0
        %777 = vmatprep.mubr.f32.mxu0 0.0
        %778 = vmatmul.mubr.f32.gmra.mrb[0].mxu0 0.0
        %v779 = vpop.f32.mrb[0].mxu0
        %v780 = vadd.f32 0.0, %v779
        %v781 = vpop.f32.mrb[0].mxu0
        %v782 = vadd.f32 0.0, %v781
        %783 = vdwg.mxu0
        %784 = vmatprep.subr.mxu0 %v652
        %785 = vmatpush1.msra.mxu0 %v651
        %786 = vmatprep.subr.mxu0 %v656
        %787 = vmatpush1.msra.mxu0 %v655
        %788 = vmatprep.subr.mxu0 %v660
        %789 = vmatpush1.msra.mxu0 %v659
        %790 = vmatprep.subr.mxu0 %v664
        %791 = vmatpush1.msra.mxu0 %v663
        %792 = vmatprep.subr.mxu0 %v668
        %793 = vmatpush1.msra.mxu0 %v667
        %794 = vmatprep.subr.mxu0 %v672
        %795 = vmatpush1.msra.mxu0 %v671
        %796 = vmatprep.subr.mxu0 %v676
        %797 = vmatpush1.msra.mxu0 %v675
        %798 = vmatprep.subr.mxu0 %v680
        %799 = vmatpush1.msra.mxu0 %v679
        %800 = vmatprep.subr.mxu0 %v684
        %801 = vmatpush1.msra.mxu0 %v683
        %802 = vmatprep.subr.mxu0 %v688
        %803 = vmatpush1.msra.mxu0 %v687
        %804 = vmatprep.subr.mxu0 %v692
        %805 = vmatpush1.msra.mxu0 %v691
        %806 = vmatprep.subr.mxu0 %v696
        %807 = vmatpush1.msra.mxu0 %v695
        %808 = vmatprep.subr.mxu0 %v700
        %809 = vmatpush1.msra.mxu0 %v699
        %810 = vmatprep.subr.mxu0 %v704
        %811 = vmatpush1.msra.mxu0 %v703
        %812 = vmatprep.subr.mxu0 %v708
        %813 = vmatpush1.msra.mxu0 %v707
        %814 = vmatprep.subr.mxu0 %v712
        %815 = vmatpush1.msra.mxu0 %v711
        %816 = vmatprep.subr.mxu0 0.0
        %817 = vmatpush1.msra.mxu0 0.0
        %818 = vmatprep.subr.mxu0 0.0
        %819 = vmatpush1.msra.mxu0 0.0
        %820 = vmatprep.subr.mxu0 0.0
        %821 = vmatpush1.msra.mxu0 0.0
        %822 = vmatprep.subr.mxu0 0.0
        %823 = vmatpush1.msra.mxu0 0.0
        %824 = vmatprep.subr.mxu0 0.0
        %825 = vmatpush1.msra.mxu0 0.0
        %826 = vmatprep.subr.mxu0 0.0
        %827 = vmatpush1.msra.mxu0 0.0
        %828 = vmatprep.subr.mxu0 0.0
        %829 = vmatpush1.msra.mxu0 0.0
        %830 = vmatprep.subr.mxu0 0.0
        %831 = vmatpush1.msra.mxu0 0.0
        %832 = vmatprep.subr.mxu0 0.0
        %833 = vmatpush1.msra.mxu0 0.0
        %834 = vmatprep.subr.mxu0 0.0
        %835 = vmatpush1.msra.mxu0 0.0
        %836 = vmatprep.subr.mxu0 0.0
        %837 = vmatpush1.msra.mxu0 0.0
        %838 = vmatprep.subr.mxu0 0.0
        %839 = vmatpush1.msra.mxu0 0.0
        %840 = vmatprep.subr.mxu0 0.0
        %841 = vmatpush1.msra.mxu0 0.0
        %842 = vmatprep.subr.mxu0 0.0
        %843 = vmatpush1.msra.mxu0 0.0
        %844 = vmatprep.subr.mxu0 0.0
        %845 = vmatpush1.msra.mxu0 0.0
        %846 = vmatprep.subr.mxu0 0.0
        %847 = vmatpush1.msra.mxu0 0.0
        %848 = vmatprep.mubr.f32.mxu0 0.0
        %849 = vmatmul.mubr.f32.gmra.mrb[0].mxu0 0.0
        %v850 = vpop.f32.mrb[0].mxu0
        %v851 = vadd.f32 0.0, %v850
        %v852 = vpop.f32.mrb[0].mxu0
        %v853 = vadd.f32 0.0, %v852
        %854 = vdwg.mxu0
        %v855 = vadd.f32 %v645, %v780
        %v856 = vadd.f32 %v646, %v782
        %v857 = vadd.f32 %v647, %v851
        %v858 = vadd.f32 %v648, %v853
        %v859 = vxor.u32 %v855, 2147483648
        %v860 = vmul.f32 %v859, 1.442695
        %v861 = vpow.pop %v860
        %v862 = vadd.f32 %v861, 1.0
        %v863 = vrcp.pop %v862
        %v864 = vmul.f32 1.0, %v863
        %v865 = vxor.u32 %v856, 2147483648
        %v866 = vmul.f32 %v865, 1.442695
        %v867 = vpow.pop %v866
        %v868 = vadd.f32 %v867, 1.0
        %v869 = vrcp.pop %v868
        %v870 = vmul.f32 1.0, %v869
        %v871 = vtanh.pop %v857
        %v872 = vxor.u32 %v858, 2147483648
        %v873 = vmul.f32 %v872, 1.442695
        %v874 = vpow.pop %v873
        %v875 = vadd.f32 %v874, 1.0
        %v876 = vrcp.pop %v875
        %v877 = vmul.f32 1.0, %v876
        %v878 = vmul.f32 %v870, 0.0
        %v879 = vmul.f32 %v864, %v871
        %v880 = vadd.f32 %v878, %v879
        %v881 = vtanh.pop %v880
        %v882 = vmul.f32 %v877, %v881
        %s883 = scalar_lea.vmem %s280, %s639 [#allocation9]
        %884 = vst [vmem:[%s883] sm:$0xff] %v882
        %s885 = scalar_select %p637, 6, 1
        %s886 = smul.u32 %s885, 8
        %s887 = sshra.s32 %s886, 3
        %s888 = sand.u32 %s886, 7
        %s889 = smul.u32 %s887, 4
        %s890 = smul.addr %s889, 8
        %s891 = scalar_lea.vmem [#allocation2], %s890
        %v892 = vld [vmem:[%s891] sm:$0xff]
        %v893 = vld [vmem:[%s891 + $0x8] sm:$0xff]
        %v894 = vld [vmem:[%s891 + $0x10] sm:$0xff]
        %v895 = vld [vmem:[%s891 + $0x18] sm:$0xff]
        %v896 = vld [vmem:[%s247] sm:$0xff]
        %v897 = vld [vmem:[%s247 + $0x8] sm:$0xff]
        %v898 = vld [vmem:[%s247 + $0x10] sm:$0xff]
        %v899 = vld [vmem:[%s247 + $0x18] sm:$0xff]
        %v900 = vld [vmem:[%s247 + $0x20] sm:$0xff]
        %v901 = vld [vmem:[%s247 + $0x28] sm:$0xff]
        %v902 = vld [vmem:[%s247 + $0x30] sm:$0xff]
        %v903 = vld [vmem:[%s247 + $0x38] sm:$0xff]
        %v904 = vld [vmem:[%s247 + $0x40] sm:$0xff]
        %v905 = vld [vmem:[%s247 + $0x48] sm:$0xff]
        %v906 = vld [vmem:[%s247 + $0x50] sm:$0xff]
        %v907 = vld [vmem:[%s247 + $0x58] sm:$0xff]
        %v908 = vld [vmem:[%s247 + $0x60] sm:$0xff]
        %v909 = vld [vmem:[%s247 + $0x68] sm:$0xff]
        %v910 = vld [vmem:[%s247 + $0x70] sm:$0xff]
        %v911 = vld [vmem:[%s247 + $0x78] sm:$0xff]
        %v912 = vld [vmem:[%s247 + $0x80] sm:$0xff]
        %v913 = vld [vmem:[%s247 + $0x88] sm:$0xff]
        %v914 = vld [vmem:[%s247 + $0x90] sm:$0xff]
        %v915 = vld [vmem:[%s247 + $0x98] sm:$0xff]
        %v916 = vld [vmem:[%s247 + $0xa0] sm:$0xff]
        %v917 = vld [vmem:[%s247 + $0xa8] sm:$0xff]
        %v918 = vld [vmem:[%s247 + $0xb0] sm:$0xff]
        %v919 = vld [vmem:[%s247 + $0xb8] sm:$0xff]
        %v920 = vld [vmem:[%s247 + $0xc0] sm:$0xff]
        %v921 = vld [vmem:[%s247 + $0xc8] sm:$0xff]
        %v922 = vld [vmem:[%s247 + $0xd0] sm:$0xff]
        %v923 = vld [vmem:[%s247 + $0xd8] sm:$0xff]
        %v924 = vld [vmem:[%s247 + $0xe0] sm:$0xff]
        %v925 = vld [vmem:[%s247 + $0xe8] sm:$0xff]
        %v926 = vld [vmem:[%s247 + $0xf0] sm:$0xff]
        %v927 = vld [vmem:[%s247 + $0xf8] sm:$0xff]
        %v928 = vld [vmem:[%s247 + $0x100] sm:$0xff]
        %v929 = vld [vmem:[%s247 + $0x108] sm:$0xff]
        %v930 = vld [vmem:[%s247 + $0x110] sm:$0xff]
        %v931 = vld [vmem:[%s247 + $0x118] sm:$0xff]
        %v932 = vld [vmem:[%s247 + $0x120] sm:$0xff]
        %v933 = vld [vmem:[%s247 + $0x128] sm:$0xff]
        %v934 = vld [vmem:[%s247 + $0x130] sm:$0xff]
        %v935 = vld [vmem:[%s247 + $0x138] sm:$0xff]
        %v936 = vld [vmem:[%s247 + $0x140] sm:$0xff]
        %v937 = vld [vmem:[%s247 + $0x148] sm:$0xff]
        %v938 = vld [vmem:[%s247 + $0x150] sm:$0xff]
        %v939 = vld [vmem:[%s247 + $0x158] sm:$0xff]
        %v940 = vld [vmem:[%s247 + $0x160] sm:$0xff]
        %v941 = vld [vmem:[%s247 + $0x168] sm:$0xff]
        %v942 = vld [vmem:[%s247 + $0x170] sm:$0xff]
        %v943 = vld [vmem:[%s247 + $0x178] sm:$0xff]
        %v944 = vld [vmem:[%s247 + $0x180] sm:$0xff]
        %v945 = vld [vmem:[%s247 + $0x188] sm:$0xff]
        %v946 = vld [vmem:[%s247 + $0x190] sm:$0xff]
        %v947 = vld [vmem:[%s247 + $0x198] sm:$0xff]
        %v948 = vld [vmem:[%s247 + $0x1a0] sm:$0xff]
        %v949 = vld [vmem:[%s247 + $0x1a8] sm:$0xff]
        %v950 = vld [vmem:[%s247 + $0x1b0] sm:$0xff]
        %v951 = vld [vmem:[%s247 + $0x1b8] sm:$0xff]
        %v952 = vld [vmem:[%s247 + $0x1c0] sm:$0xff]
        %v953 = vld [vmem:[%s247 + $0x1c8] sm:$0xff]
        %v954 = vld [vmem:[%s247 + $0x1d0] sm:$0xff]
        %v955 = vld [vmem:[%s247 + $0x1d8] sm:$0xff]
        %v956 = vld [vmem:[%s247 + $0x1e0] sm:$0xff]
        %v957 = vld [vmem:[%s247 + $0x1e8] sm:$0xff]
        %v958 = vld [vmem:[%s247 + $0x1f0] sm:$0xff]
        %v959 = vld [vmem:[%s247 + $0x1f8] sm:$0xff]
        %960 = vmatprep.subr.mxu0 %v897
        %961 = vmatpush1.msra.mxu0 %v896
        %962 = vmatprep.subr.mxu0 %v901
        %963 = vmatpush1.msra.mxu0 %v900
        %964 = vmatprep.subr.mxu0 %v905
        %965 = vmatpush1.msra.mxu0 %v904
        %966 = vmatprep.subr.mxu0 %v909
        %967 = vmatpush1.msra.mxu0 %v908
        %968 = vmatprep.subr.mxu0 %v913
        %969 = vmatpush1.msra.mxu0 %v912
        %970 = vmatprep.subr.mxu0 %v917
        %971 = vmatpush1.msra.mxu0 %v916
        %972 = vmatprep.subr.mxu0 %v921
        %973 = vmatpush1.msra.mxu0 %v920
        %974 = vmatprep.subr.mxu0 %v925
        %975 = vmatpush1.msra.mxu0 %v924
        %976 = vmatprep.subr.mxu0 %v929
        %977 = vmatpush1.msra.mxu0 %v928
        %978 = vmatprep.subr.mxu0 %v933
        %979 = vmatpush1.msra.mxu0 %v932
        %980 = vmatprep.subr.mxu0 %v937
        %981 = vmatpush1.msra.mxu0 %v936
        %982 = vmatprep.subr.mxu0 %v941
        %983 = vmatpush1.msra.mxu0 %v940
        %984 = vmatprep.subr.mxu0 %v945
        %985 = vmatpush1.msra.mxu0 %v944
        %986 = vmatprep.subr.mxu0 %v949
        %987 = vmatpush1.msra.mxu0 %v948
        %988 = vmatprep.subr.mxu0 %v953
        %989 = vmatpush1.msra.mxu0 %v952
        %990 = vmatprep.subr.mxu0 %v957
        %991 = vmatpush1.msra.mxu0 %v956
        %992 = vmatprep.subr.mxu0 0.0
        %993 = vmatpush1.msra.mxu0 0.0
        %994 = vmatprep.subr.mxu0 0.0
        %995 = vmatpush1.msra.mxu0 0.0
        %996 = vmatprep.subr.mxu0 0.0
        %997 = vmatpush1.msra.mxu0 0.0
        %998 = vmatprep.subr.mxu0 0.0
        %999 = vmatpush1.msra.mxu0 0.0
        %1000 = vmatprep.subr.mxu0 0.0
        %1001 = vmatpush1.msra.mxu0 0.0
        %1002 = vmatprep.subr.mxu0 0.0
        %1003 = vmatpush1.msra.mxu0 0.0
        %1004 = vmatprep.subr.mxu0 0.0
        %1005 = vmatpush1.msra.mxu0 0.0
        %1006 = vmatprep.subr.mxu0 0.0
        %1007 = vmatpush1.msra.mxu0 0.0
        %1008 = vmatprep.subr.mxu0 0.0
        %1009 = vmatpush1.msra.mxu0 0.0
        %1010 = vmatprep.subr.mxu0 0.0
        %1011 = vmatpush1.msra.mxu0 0.0
        %1012 = vmatprep.subr.mxu0 0.0
        %1013 = vmatpush1.msra.mxu0 0.0
        %1014 = vmatprep.subr.mxu0 0.0
        %1015 = vmatpush1.msra.mxu0 0.0
        %1016 = vmatprep.subr.mxu0 0.0
        %1017 = vmatpush1.msra.mxu0 0.0
        %1018 = vmatprep.subr.mxu0 0.0
        %1019 = vmatpush1.msra.mxu0 0.0
        %1020 = vmatprep.subr.mxu0 0.0
        %1021 = vmatpush1.msra.mxu0 0.0
        %1022 = vmatprep.subr.mxu0 0.0
        %1023 = vmatpush1.msra.mxu0 0.0
        %1024 = vmatprep.mubr.f32.mxu0 0.0
        %1025 = vmatmul.mubr.f32.gmra.mrb[0].mxu0 %v882
        %v1026 = vpop.f32.mrb[0].mxu0
        %v1027 = vadd.f32 0.0, %v1026
        %v1028 = vpop.f32.mrb[0].mxu0
        %v1029 = vadd.f32 0.0, %v1028
        %1030 = vdwg.mxu0
        %1031 = vmatprep.subr.mxu0 %v899
        %1032 = vmatpush1.msra.mxu0 %v898
        %1033 = vmatprep.subr.mxu0 %v903
        %1034 = vmatpush1.msra.mxu0 %v902
        %1035 = vmatprep.subr.mxu0 %v907
        %1036 = vmatpush1.msra.mxu0 %v906
        %1037 = vmatprep.subr.mxu0 %v911
        %1038 = vmatpush1.msra.mxu0 %v910
        %1039 = vmatprep.subr.mxu0 %v915
        %1040 = vmatpush1.msra.mxu0 %v914
        %1041 = vmatprep.subr.mxu0 %v919
        %1042 = vmatpush1.msra.mxu0 %v918
        %1043 = vmatprep.subr.mxu0 %v923
        %1044 = vmatpush1.msra.mxu0 %v922
        %1045 = vmatprep.subr.mxu0 %v927
        %1046 = vmatpush1.msra.mxu0 %v926
        %1047 = vmatprep.subr.mxu0 %v931
        %1048 = vmatpush1.msra.mxu0 %v930
        %1049 = vmatprep.subr.mxu0 %v935
        %1050 = vmatpush1.msra.mxu0 %v934
        %1051 = vmatprep.subr.mxu0 %v939
        %1052 = vmatpush1.msra.mxu0 %v938
        %1053 = vmatprep.subr.mxu0 %v943
        %1054 = vmatpush1.msra.mxu0 %v942
        %1055 = vmatprep.subr.mxu0 %v947
        %1056 = vmatpush1.msra.mxu0 %v946
        %1057 = vmatprep.subr.mxu0 %v951
        %1058 = vmatpush1.msra.mxu0 %v950
        %1059 = vmatprep.subr.mxu0 %v955
        %1060 = vmatpush1.msra.mxu0 %v954
        %1061 = vmatprep.subr.mxu0 %v959
        %1062 = vmatpush1.msra.mxu0 %v958
        %1063 = vmatprep.subr.mxu0 0.0
        %1064 = vmatpush1.msra.mxu0 0.0
        %1065 = vmatprep.subr.mxu0 0.0
        %1066 = vmatpush1.msra.mxu0 0.0
        %1067 = vmatprep.subr.mxu0 0.0
        %1068 = vmatpush1.msra.mxu0 0.0
        %1069 = vmatprep.subr.mxu0 0.0
        %1070 = vmatpush1.msra.mxu0 0.0
        %1071 = vmatprep.subr.mxu0 0.0
        %1072 = vmatpush1.msra.mxu0 0.0
        %1073 = vmatprep.subr.mxu0 0.0
        %1074 = vmatpush1.msra.mxu0 0.0
        %1075 = vmatprep.subr.mxu0 0.0
        %1076 = vmatpush1.msra.mxu0 0.0
        %1077 = vmatprep.subr.mxu0 0.0
        %1078 = vmatpush1.msra.mxu0 0.0
        %1079 = vmatprep.subr.mxu0 0.0
        %1080 = vmatpush1.msra.mxu0 0.0
        %1081 = vmatprep.subr.mxu0 0.0
        %1082 = vmatpush1.msra.mxu0 0.0
        %1083 = vmatprep.subr.mxu0 0.0
        %1084 = vmatpush1.msra.mxu0 0.0
        %1085 = vmatprep.subr.mxu0 0.0
        %1086 = vmatpush1.msra.mxu0 0.0
        %1087 = vmatprep.subr.mxu0 0.0
        %1088 = vmatpush1.msra.mxu0 0.0
        %1089 = vmatprep.subr.mxu0 0.0
        %1090 = vmatpush1.msra.mxu0 0.0
        %1091 = vmatprep.subr.mxu0 0.0
        %1092 = vmatpush1.msra.mxu0 0.0
        %1093 = vmatprep.subr.mxu0 0.0
        %1094 = vmatpush1.msra.mxu0 0.0
        %1095 = vmatprep.mubr.f32.mxu0 0.0
        %1096 = vmatmul.mubr.f32.gmra.mrb[0].mxu0 %v882
        %v1097 = vpop.f32.mrb[0].mxu0
        %v1098 = vadd.f32 0.0, %v1097
        %v1099 = vpop.f32.mrb[0].mxu0
        %v1100 = vadd.f32 0.0, %v1099
        %1101 = vdwg.mxu0
        %v1102 = vadd.f32 %v892, %v1027
        %v1103 = vadd.f32 %v893, %v1029
        %v1104 = vadd.f32 %v894, %v1098
        %v1105 = vadd.f32 %v895, %v1100
        %v1106 = vxor.u32 %v1102, 2147483648
        %v1107 = vmul.f32 %v1106, 1.442695
        %v1108 = vpow.pop %v1107
        %v1109 = vadd.f32 %v1108, 1.0
        %v1110 = vrcp.pop %v1109
        %v1111 = vmul.f32 1.0, %v1110
        %v1112 = vxor.u32 %v1103, 2147483648
        %v1113 = vmul.f32 %v1112, 1.442695
        %v1114 = vpow.pop %v1113
        %v1115 = vadd.f32 %v1114, 1.0
        %v1116 = vrcp.pop %v1115
        %v1117 = vmul.f32 1.0, %v1116
        %v1118 = vtanh.pop %v1104
        %v1119 = vxor.u32 %v1105, 2147483648
        %v1120 = vmul.f32 %v1119, 1.442695
        %v1121 = vpow.pop %v1120
        %v1122 = vadd.f32 %v1121, 1.0
        %v1123 = vrcp.pop %v1122
        %v1124 = vmul.f32 1.0, %v1123
        %v1125 = vmul.f32 %v1117, %v880
        %v1126 = vmul.f32 %v1111, %v1118
        %v1127 = vadd.f32 %v1125, %v1126
        %v1128 = vtanh.pop %v1127
        %v1129 = vmul.f32 %v1124, %v1128
        %s1130 = scalar_lea.vmem %s280, %s886 [#allocation9]
        %1131 = vst [vmem:[%s1130] sm:$0xff] %v1129
        %s1132 = scalar_select %p637, 5, 2
        %s1133 = smul.u32 %s1132, 8
        %s1134 = sshra.s32 %s1133, 3
        %s1135 = sand.u32 %s1133, 7
        %s1136 = smul.u32 %s1134, 4
        %s1137 = smul.addr %s1136, 8
        %s1138 = scalar_lea.vmem [#allocation2], %s1137
        %v1139 = vld [vmem:[%s1138] sm:$0xff]
        %v1140 = vld [vmem:[%s1138 + $0x8] sm:$0xff]
        %v1141 = vld [vmem:[%s1138 + $0x10] sm:$0xff]
        %v1142 = vld [vmem:[%s1138 + $0x18] sm:$0xff]
        %v1143 = vld [vmem:[%s247] sm:$0xff]
        %v1144 = vld [vmem:[%s247 + $0x8] sm:$0xff]
        %v1145 = vld [vmem:[%s247 + $0x10] sm:$0xff]
        %v1146 = vld [vmem:[%s247 + $0x18] sm:$0xff]
        %v1147 = vld [vmem:[%s247 + $0x20] sm:$0xff]
        %v1148 = vld [vmem:[%s247 + $0x28] sm:$0xff]
        %v1149 = vld [vmem:[%s247 + $0x30] sm:$0xff]
        %v1150 = vld [vmem:[%s247 + $0x38] sm:$0xff]
        %v1151 = vld [vmem:[%s247 + $0x40] sm:$0xff]
        %v1152 = vld [vmem:[%s247 + $0x48] sm:$0xff]
        %v1153 = vld [vmem:[%s247 + $0x50] sm:$0xff]
        %v1154 = vld [vmem:[%s247 + $0x58] sm:$0xff]
        %v1155 = vld [vmem:[%s247 + $0x60] sm:$0xff]
        %v1156 = vld [vmem:[%s247 + $0x68] sm:$0xff]
        %v1157 = vld [vmem:[%s247 + $0x70] sm:$0xff]
        %v1158 = vld [vmem:[%s247 + $0x78] sm:$0xff]
        %v1159 = vld [vmem:[%s247 + $0x80] sm:$0xff]
        %v1160 = vld [vmem:[%s247 + $0x88] sm:$0xff]
        %v1161 = vld [vmem:[%s247 + $0x90] sm:$0xff]
        %v1162 = vld [vmem:[%s247 + $0x98] sm:$0xff]
        %v1163 = vld [vmem:[%s247 + $0xa0] sm:$0xff]
        %v1164 = vld [vmem:[%s247 + $0xa8] sm:$0xff]
        %v1165 = vld [vmem:[%s247 + $0xb0] sm:$0xff]
        %v1166 = vld [vmem:[%s247 + $0xb8] sm:$0xff]
        %v1167 = vld [vmem:[%s247 + $0xc0] sm:$0xff]
        %v1168 = vld [vmem:[%s247 + $0xc8] sm:$0xff]
        %v1169 = vld [vmem:[%s247 + $0xd0] sm:$0xff]
        %v1170 = vld [vmem:[%s247 + $0xd8] sm:$0xff]
        %v1171 = vld [vmem:[%s247 + $0xe0] sm:$0xff]
        %v1172 = vld [vmem:[%s247 + $0xe8] sm:$0xff]
        %v1173 = vld [vmem:[%s247 + $0xf0] sm:$0xff]
        %v1174 = vld [vmem:[%s247 + $0xf8] sm:$0xff]
        %v1175 = vld [vmem:[%s247 + $0x100] sm:$0xff]
        %v1176 = vld [vmem:[%s247 + $0x108] sm:$0xff]
        %v1177 = vld [vmem:[%s247 + $0x110] sm:$0xff]
        %v1178 = vld [vmem:[%s247 + $0x118] sm:$0xff]
        %v1179 = vld [vmem:[%s247 + $0x120] sm:$0xff]
        %v1180 = vld [vmem:[%s247 + $0x128] sm:$0xff]
        %v1181 = vld [vmem:[%s247 + $0x130] sm:$0xff]
        %v1182 = vld [vmem:[%s247 + $0x138] sm:$0xff]
        %v1183 = vld [vmem:[%s247 + $0x140] sm:$0xff]
        %v1184 = vld [vmem:[%s247 + $0x148] sm:$0xff]
        %v1185 = vld [vmem:[%s247 + $0x150] sm:$0xff]
        %v1186 = vld [vmem:[%s247 + $0x158] sm:$0xff]
        %v1187 = vld [vmem:[%s247 + $0x160] sm:$0xff]
        %v1188 = vld [vmem:[%s247 + $0x168] sm:$0xff]
        %v1189 = vld [vmem:[%s247 + $0x170] sm:$0xff]
        %v1190 = vld [vmem:[%s247 + $0x178] sm:$0xff]
        %v1191 = vld [vmem:[%s247 + $0x180] sm:$0xff]
        %v1192 = vld [vmem:[%s247 + $0x188] sm:$0xff]
        %v1193 = vld [vmem:[%s247 + $0x190] sm:$0xff]
        %v1194 = vld [vmem:[%s247 + $0x198] sm:$0xff]
        %v1195 = vld [vmem:[%s247 + $0x1a0] sm:$0xff]
        %v1196 = vld [vmem:[%s247 + $0x1a8] sm:$0xff]
        %v1197 = vld [vmem:[%s247 + $0x1b0] sm:$0xff]
        %v1198 = vld [vmem:[%s247 + $0x1b8] sm:$0xff]
        %v1199 = vld [vmem:[%s247 + $0x1c0] sm:$0xff]
        %v1200 = vld [vmem:[%s247 + $0x1c8] sm:$0xff]
        %v1201 = vld [vmem:[%s247 + $0x1d0] sm:$0xff]
        %v1202 = vld [vmem:[%s247 + $0x1d8] sm:$0xff]
        %v1203 = vld [vmem:[%s247 + $0x1e0] sm:$0xff]
        %v1204 = vld [vmem:[%s247 + $0x1e8] sm:$0xff]
        %v1205 = vld [vmem:[%s247 + $0x1f0] sm:$0xff]
        %v1206 = vld [vmem:[%s247 + $0x1f8] sm:$0xff]
        %1207 = vmatprep.subr.mxu0 %v1144
        %1208 = vmatpush1.msra.mxu0 %v1143
        %1209 = vmatprep.subr.mxu0 %v1148
        %1210 = vmatpush1.msra.mxu0 %v1147
        %1211 = vmatprep.subr.mxu0 %v1152
        %1212 = vmatpush1.msra.mxu0 %v1151
        %1213 = vmatprep.subr.mxu0 %v1156
        %1214 = vmatpush1.msra.mxu0 %v1155
        %1215 = vmatprep.subr.mxu0 %v1160
        %1216 = vmatpush1.msra.mxu0 %v1159
        %1217 = vmatprep.subr.mxu0 %v1164
        %1218 = vmatpush1.msra.mxu0 %v1163
        %1219 = vmatprep.subr.mxu0 %v1168
        %1220 = vmatpush1.msra.mxu0 %v1167
        %1221 = vmatprep.subr.mxu0 %v1172
        %1222 = vmatpush1.msra.mxu0 %v1171
        %1223 = vmatprep.subr.mxu0 %v1176
        %1224 = vmatpush1.msra.mxu0 %v1175
        %1225 = vmatprep.subr.mxu0 %v1180
        %1226 = vmatpush1.msra.mxu0 %v1179
        %1227 = vmatprep.subr.mxu0 %v1184
        %1228 = vmatpush1.msra.mxu0 %v1183
        %1229 = vmatprep.subr.mxu0 %v1188
        %1230 = vmatpush1.msra.mxu0 %v1187
        %1231 = vmatprep.subr.mxu0 %v1192
        %1232 = vmatpush1.msra.mxu0 %v1191
        %1233 = vmatprep.subr.mxu0 %v1196
        %1234 = vmatpush1.msra.mxu0 %v1195
        %1235 = vmatprep.subr.mxu0 %v1200
        %1236 = vmatpush1.msra.mxu0 %v1199
        %1237 = vmatprep.subr.mxu0 %v1204
        %1238 = vmatpush1.msra.mxu0 %v1203
        %1239 = vmatprep.subr.mxu0 0.0
        %1240 = vmatpush1.msra.mxu0 0.0
        %1241 = vmatprep.subr.mxu0 0.0
        %1242 = vmatpush1.msra.mxu0 0.0
        %1243 = vmatprep.subr.mxu0 0.0
        %1244 = vmatpush1.msra.mxu0 0.0
        %1245 = vmatprep.subr.mxu0 0.0
        %1246 = vmatpush1.msra.mxu0 0.0
        %1247 = vmatprep.subr.mxu0 0.0
        %1248 = vmatpush1.msra.mxu0 0.0
        %1249 = vmatprep.subr.mxu0 0.0
        %1250 = vmatpush1.msra.mxu0 0.0
        %1251 = vmatprep.subr.mxu0 0.0
        %1252 = vmatpush1.msra.mxu0 0.0
        %1253 = vmatprep.subr.mxu0 0.0
        %1254 = vmatpush1.msra.mxu0 0.0
        %1255 = vmatprep.subr.mxu0 0.0
        %1256 = vmatpush1.msra.mxu0 0.0
        %1257 = vmatprep.subr.mxu0 0.0
        %1258 = vmatpush1.msra.mxu0 0.0
        %1259 = vmatprep.subr.mxu0 0.0
        %1260 = vmatpush1.msra.mxu0 0.0
        %1261 = vmatprep.subr.mxu0 0.0
        %1262 = vmatpush1.msra.mxu0 0.0
        %1263 = vmatprep.subr.mxu0 0.0
        %1264 = vmatpush1.msra.mxu0 0.0
        %1265 = vmatprep.subr.mxu0 0.0
        %1266 = vmatpush1.msra.mxu0 0.0
        %1267 = vmatprep.subr.mxu0 0.0
        %1268 = vmatpush1.msra.mxu0 0.0
        %1269 = vmatprep.subr.mxu0 0.0
        %1270 = vmatpush1.msra.mxu0 0.0
        %1271 = vmatprep.mubr.f32.mxu0 0.0
        %1272 = vmatmul.mubr.f32.gmra.mrb[0].mxu0 %v1129
        %v1273 = vpop.f32.mrb[0].mxu0
        %v1274 = vadd.f32 0.0, %v1273
        %v1275 = vpop.f32.mrb[0].mxu0
        %v1276 = vadd.f32 0.0, %v1275
        %1277 = vdwg.mxu0
        %1278 = vmatprep.subr.mxu0 %v1146
        %1279 = vmatpush1.msra.mxu0 %v1145
        %1280 = vmatprep.subr.mxu0 %v1150
        %1281 = vmatpush1.msra.mxu0 %v1149
        %1282 = vmatprep.subr.mxu0 %v1154
        %1283 = vmatpush1.msra.mxu0 %v1153
        %1284 = vmatprep.subr.mxu0 %v1158
        %1285 = vmatpush1.msra.mxu0 %v1157
        %1286 = vmatprep.subr.mxu0 %v1162
        %1287 = vmatpush1.msra.mxu0 %v1161
        %1288 = vmatprep.subr.mxu0 %v1166
        %1289 = vmatpush1.msra.mxu0 %v1165
        %1290 = vmatprep.subr.mxu0 %v1170
        %1291 = vmatpush1.msra.mxu0 %v1169
        %1292 = vmatprep.subr.mxu0 %v1174
        %1293 = vmatpush1.msra.mxu0 %v1173
        %1294 = vmatprep.subr.mxu0 %v1178
        %1295 = vmatpush1.msra.mxu0 %v1177
        %1296 = vmatprep.subr.mxu0 %v1182
        %1297 = vmatpush1.msra.mxu0 %v1181
        %1298 = vmatprep.subr.mxu0 %v1186
        %1299 = vmatpush1.msra.mxu0 %v1185
        %1300 = vmatprep.subr.mxu0 %v1190
        %1301 = vmatpush1.msra.mxu0 %v1189
        %1302 = vmatprep.subr.mxu0 %v1194
        %1303 = vmatpush1.msra.mxu0 %v1193
        %1304 = vmatprep.subr.mxu0 %v1198
        %1305 = vmatpush1.msra.mxu0 %v1197
        %1306 = vmatprep.subr.mxu0 %v1202
        %1307 = vmatpush1.msra.mxu0 %v1201
        %1308 = vmatprep.subr.mxu0 %v1206
        %1309 = vmatpush1.msra.mxu0 %v1205
        %1310 = vmatprep.subr.mxu0 0.0
        %1311 = vmatpush1.msra.mxu0 0.0
        %1312 = vmatprep.subr.mxu0 0.0
        %1313 = vmatpush1.msra.mxu0 0.0
        %1314 = vmatprep.subr.mxu0 0.0
        %1315 = vmatpush1.msra.mxu0 0.0
        %1316 = vmatprep.subr.mxu0 0.0
        %1317 = vmatpush1.msra.mxu0 0.0
        %1318 = vmatprep.subr.mxu0 0.0
        %1319 = vmatpush1.msra.mxu0 0.0
        %1320 = vmatprep.subr.mxu0 0.0
        %1321 = vmatpush1.msra.mxu0 0.0
        %1322 = vmatprep.subr.mxu0 0.0
        %1323 = vmatpush1.msra.mxu0 0.0
        %1324 = vmatprep.subr.mxu0 0.0
        %1325 = vmatpush1.msra.mxu0 0.0
        %1326 = vmatprep.subr.mxu0 0.0
        %1327 = vmatpush1.msra.mxu0 0.0
        %1328 = vmatprep.subr.mxu0 0.0
        %1329 = vmatpush1.msra.mxu0 0.0
        %1330 = vmatprep.subr.mxu0 0.0
        %1331 = vmatpush1.msra.mxu0 0.0
        %1332 = vmatprep.subr.mxu0 0.0
        %1333 = vmatpush1.msra.mxu0 0.0
        %1334 = vmatprep.subr.mxu0 0.0
        %1335 = vmatpush1.msra.mxu0 0.0
        %1336 = vmatprep.subr.mxu0 0.0
        %1337 = vmatpush1.msra.mxu0 0.0
        %1338 = vmatprep.subr.mxu0 0.0
        %1339 = vmatpush1.msra.mxu0 0.0
        %1340 = vmatprep.subr.mxu0 0.0
        %1341 = vmatpush1.msra.mxu0 0.0
        %1342 = vmatprep.mubr.f32.mxu0 0.0
        %1343 = vmatmul.mubr.f32.gmra.mrb[0].mxu0 %v1129
        %v1344 = vpop.f32.mrb[0].mxu0
        %v1345 = vadd.f32 0.0, %v1344
        %v1346 = vpop.f32.mrb[0].mxu0
        %v1347 = vadd.f32 0.0, %v1346
        %1348 = vdwg.mxu0
        %v1349 = vadd.f32 %v1139, %v1274
        %v1350 = vadd.f32 %v1140, %v1276
        %v1351 = vadd.f32 %v1141, %v1345
        %v1352 = vadd.f32 %v1142, %v1347
        %v1353 = vxor.u32 %v1349, 2147483648
        %v1354 = vmul.f32 %v1353, 1.442695
        %v1355 = vpow.pop %v1354
        %v1356 = vadd.f32 %v1355, 1.0
        %v1357 = vrcp.pop %v1356
        %v1358 = vmul.f32 1.0, %v1357
        %v1359 = vxor.u32 %v1350, 2147483648
        %v1360 = vmul.f32 %v1359, 1.442695
        %v1361 = vpow.pop %v1360
        %v1362 = vadd.f32 %v1361, 1.0
        %v1363 = vrcp.pop %v1362
        %v1364 = vmul.f32 1.0, %v1363
        %v1365 = vtanh.pop %v1351
        %v1366 = vxor.u32 %v1352, 2147483648
        %v1367 = vmul.f32 %v1366, 1.442695
        %v1368 = vpow.pop %v1367
        %v1369 = vadd.f32 %v1368, 1.0
        %v1370 = vrcp.pop %v1369
        %v1371 = vmul.f32 1.0, %v1370
        %v1372 = vmul.f32 %v1364, %v1127
        %v1373 = vmul.f32 %v1358, %v1365
        %v1374 = vadd.f32 %v1372, %v1373
        %v1375 = vtanh.pop %v1374
        %v1376 = vmul.f32 %v1371, %v1375
        %s1377 = scalar_lea.vmem %s280, %s1133 [#allocation9]
        %1378 = vst [vmem:[%s1377] sm:$0xff] %v1376
        %s1379 = scalar_select %p637, 4, 3
        %s1380 = smul.u32 %s1379, 8
        %s1381 = sshra.s32 %s1380, 3
        %s1382 = sand.u32 %s1380, 7
        %s1383 = smul.u32 %s1381, 4
        %s1384 = smul.addr %s1383, 8
        %s1385 = scalar_lea.vmem [#allocation2], %s1384
        %v1386 = vld [vmem:[%s1385] sm:$0xff]
        %v1387 = vld [vmem:[%s1385 + $0x8] sm:$0xff]
        %v1388 = vld [vmem:[%s1385 + $0x10] sm:$0xff]
        %v1389 = vld [vmem:[%s1385 + $0x18] sm:$0xff]
        %v1390 = vld [vmem:[%s247] sm:$0xff]
        %v1391 = vld [vmem:[%s247 + $0x8] sm:$0xff]
        %v1392 = vld [vmem:[%s247 + $0x10] sm:$0xff]
        %v1393 = vld [vmem:[%s247 + $0x18] sm:$0xff]
        %v1394 = vld [vmem:[%s247 + $0x20] sm:$0xff]
        %v1395 = vld [vmem:[%s247 + $0x28] sm:$0xff]
        %v1396 = vld [vmem:[%s247 + $0x30] sm:$0xff]
        %v1397 = vld [vmem:[%s247 + $0x38] sm:$0xff]
        %v1398 = vld [vmem:[%s247 + $0x40] sm:$0xff]
        %v1399 = vld [vmem:[%s247 + $0x48] sm:$0xff]
        %v1400 = vld [vmem:[%s247 + $0x50] sm:$0xff]
        %v1401 = vld [vmem:[%s247 + $0x58] sm:$0xff]
        %v1402 = vld [vmem:[%s247 + $0x60] sm:$0xff]
        %v1403 = vld [vmem:[%s247 + $0x68] sm:$0xff]
        %v1404 = vld [vmem:[%s247 + $0x70] sm:$0xff]
        %v1405 = vld [vmem:[%s247 + $0x78] sm:$0xff]
        %v1406 = vld [vmem:[%s247 + $0x80] sm:$0xff]
        %v1407 = vld [vmem:[%s247 + $0x88] sm:$0xff]
        %v1408 = vld [vmem:[%s247 + $0x90] sm:$0xff]
        %v1409 = vld [vmem:[%s247 + $0x98] sm:$0xff]
        %v1410 = vld [vmem:[%s247 + $0xa0] sm:$0xff]
        %v1411 = vld [vmem:[%s247 + $0xa8] sm:$0xff]
        %v1412 = vld [vmem:[%s247 + $0xb0] sm:$0xff]
        %v1413 = vld [vmem:[%s247 + $0xb8] sm:$0xff]
        %v1414 = vld [vmem:[%s247 + $0xc0] sm:$0xff]
        %v1415 = vld [vmem:[%s247 + $0xc8] sm:$0xff]
        %v1416 = vld [vmem:[%s247 + $0xd0] sm:$0xff]
        %v1417 = vld [vmem:[%s247 + $0xd8] sm:$0xff]
        %v1418 = vld [vmem:[%s247 + $0xe0] sm:$0xff]
        %v1419 = vld [vmem:[%s247 + $0xe8] sm:$0xff]
        %v1420 = vld [vmem:[%s247 + $0xf0] sm:$0xff]
        %v1421 = vld [vmem:[%s247 + $0xf8] sm:$0xff]
        %v1422 = vld [vmem:[%s247 + $0x100] sm:$0xff]
        %v1423 = vld [vmem:[%s247 + $0x108] sm:$0xff]
        %v1424 = vld [vmem:[%s247 + $0x110] sm:$0xff]
        %v1425 = vld [vmem:[%s247 + $0x118] sm:$0xff]
        %v1426 = vld [vmem:[%s247 + $0x120] sm:$0xff]
        %v1427 = vld [vmem:[%s247 + $0x128] sm:$0xff]
        %v1428 = vld [vmem:[%s247 + $0x130] sm:$0xff]
        %v1429 = vld [vmem:[%s247 + $0x138] sm:$0xff]
        %v1430 = vld [vmem:[%s247 + $0x140] sm:$0xff]
        %v1431 = vld [vmem:[%s247 + $0x148] sm:$0xff]
        %v1432 = vld [vmem:[%s247 + $0x150] sm:$0xff]
        %v1433 = vld [vmem:[%s247 + $0x158] sm:$0xff]
        %v1434 = vld [vmem:[%s247 + $0x160] sm:$0xff]
        %v1435 = vld [vmem:[%s247 + $0x168] sm:$0xff]
        %v1436 = vld [vmem:[%s247 + $0x170] sm:$0xff]
        %v1437 = vld [vmem:[%s247 + $0x178] sm:$0xff]
        %v1438 = vld [vmem:[%s247 + $0x180] sm:$0xff]
        %v1439 = vld [vmem:[%s247 + $0x188] sm:$0xff]
        %v1440 = vld [vmem:[%s247 + $0x190] sm:$0xff]
        %v1441 = vld [vmem:[%s247 + $0x198] sm:$0xff]
        %v1442 = vld [vmem:[%s247 + $0x1a0] sm:$0xff]
        %v1443 = vld [vmem:[%s247 + $0x1a8] sm:$0xff]
        %v1444 = vld [vmem:[%s247 + $0x1b0] sm:$0xff]
        %v1445 = vld [vmem:[%s247 + $0x1b8] sm:$0xff]
        %v1446 = vld [vmem:[%s247 + $0x1c0] sm:$0xff]
        %v1447 = vld [vmem:[%s247 + $0x1c8] sm:$0xff]
        %v1448 = vld [vmem:[%s247 + $0x1d0] sm:$0xff]
        %v1449 = vld [vmem:[%s247 + $0x1d8] sm:$0xff]
        %v1450 = vld [vmem:[%s247 + $0x1e0] sm:$0xff]
        %v1451 = vld [vmem:[%s247 + $0x1e8] sm:$0xff]
        %v1452 = vld [vmem:[%s247 + $0x1f0] sm:$0xff]
        %v1453 = vld [vmem:[%s247 + $0x1f8] sm:$0xff]
        %1454 = vmatprep.subr.mxu0 %v1391
        %1455 = vmatpush1.msra.mxu0 %v1390
        %1456 = vmatprep.subr.mxu0 %v1395
        %1457 = vmatpush1.msra.mxu0 %v1394
        %1458 = vmatprep.subr.mxu0 %v1399
        %1459 = vmatpush1.msra.mxu0 %v1398
        %1460 = vmatprep.subr.mxu0 %v1403
        %1461 = vmatpush1.msra.mxu0 %v1402
        %1462 = vmatprep.subr.mxu0 %v1407
        %1463 = vmatpush1.msra.mxu0 %v1406
        %1464 = vmatprep.subr.mxu0 %v1411
        %1465 = vmatpush1.msra.mxu0 %v1410
        %1466 = vmatprep.subr.mxu0 %v1415
        %1467 = vmatpush1.msra.mxu0 %v1414
        %1468 = vmatprep.subr.mxu0 %v1419
        %1469 = vmatpush1.msra.mxu0 %v1418
        %1470 = vmatprep.subr.mxu0 %v1423
        %1471 = vmatpush1.msra.mxu0 %v1422
        %1472 = vmatprep.subr.mxu0 %v1427
        %1473 = vmatpush1.msra.mxu0 %v1426
        %1474 = vmatprep.subr.mxu0 %v1431
        %1475 = vmatpush1.msra.mxu0 %v1430
        %1476 = vmatprep.subr.mxu0 %v1435
        %1477 = vmatpush1.msra.mxu0 %v1434
        %1478 = vmatprep.subr.mxu0 %v1439
        %1479 = vmatpush1.msra.mxu0 %v1438
        %1480 = vmatprep.subr.mxu0 %v1443
        %1481 = vmatpush1.msra.mxu0 %v1442
        %1482 = vmatprep.subr.mxu0 %v1447
        %1483 = vmatpush1.msra.mxu0 %v1446
        %1484 = vmatprep.subr.mxu0 %v1451
        %1485 = vmatpush1.msra.mxu0 %v1450
        %1486 = vmatprep.subr.mxu0 0.0
        %1487 = vmatpush1.msra.mxu0 0.0
        %1488 = vmatprep.subr.mxu0 0.0
        %1489 = vmatpush1.msra.mxu0 0.0
        %1490 = vmatprep.subr.mxu0 0.0
        %1491 = vmatpush1.msra.mxu0 0.0
        %1492 = vmatprep.subr.mxu0 0.0
        %1493 = vmatpush1.msra.mxu0 0.0
        %1494 = vmatprep.subr.mxu0 0.0
        %1495 = vmatpush1.msra.mxu0 0.0
        %1496 = vmatprep.subr.mxu0 0.0
        %1497 = vmatpush1.msra.mxu0 0.0
        %1498 = vmatprep.subr.mxu0 0.0
        %1499 = vmatpush1.msra.mxu0 0.0
        %1500 = vmatprep.subr.mxu0 0.0
        %1501 = vmatpush1.msra.mxu0 0.0
        %1502 = vmatprep.subr.mxu0 0.0
        %1503 = vmatpush1.msra.mxu0 0.0
        %1504 = vmatprep.subr.mxu0 0.0
        %1505 = vmatpush1.msra.mxu0 0.0
        %1506 = vmatprep.subr.mxu0 0.0
        %1507 = vmatpush1.msra.mxu0 0.0
        %1508 = vmatprep.subr.mxu0 0.0
        %1509 = vmatpush1.msra.mxu0 0.0
        %1510 = vmatprep.subr.mxu0 0.0
        %1511 = vmatpush1.msra.mxu0 0.0
        %1512 = vmatprep.subr.mxu0 0.0
        %1513 = vmatpush1.msra.mxu0 0.0
        %1514 = vmatprep.subr.mxu0 0.0
        %1515 = vmatpush1.msra.mxu0 0.0
        %1516 = vmatprep.subr.mxu0 0.0
        %1517 = vmatpush1.msra.mxu0 0.0
        %1518 = vmatprep.mubr.f32.mxu0 0.0
        %1519 = vmatmul.mubr.f32.gmra.mrb[0].mxu0 %v1376
        %v1520 = vpop.f32.mrb[0].mxu0
        %v1521 = vadd.f32 0.0, %v1520
        %v1522 = vpop.f32.mrb[0].mxu0
        %v1523 = vadd.f32 0.0, %v1522
        %1524 = vdwg.mxu0
        %1525 = vmatprep.subr.mxu0 %v1393
        %1526 = vmatpush1.msra.mxu0 %v1392
        %1527 = vmatprep.subr.mxu0 %v1397
        %1528 = vmatpush1.msra.mxu0 %v1396
        %1529 = vmatprep.subr.mxu0 %v1401
        %1530 = vmatpush1.msra.mxu0 %v1400
        %1531 = vmatprep.subr.mxu0 %v1405
        %1532 = vmatpush1.msra.mxu0 %v1404
        %1533 = vmatprep.subr.mxu0 %v1409
        %1534 = vmatpush1.msra.mxu0 %v1408
        %1535 = vmatprep.subr.mxu0 %v1413
        %1536 = vmatpush1.msra.mxu0 %v1412
        %1537 = vmatprep.subr.mxu0 %v1417
        %1538 = vmatpush1.msra.mxu0 %v1416
        %1539 = vmatprep.subr.mxu0 %v1421
        %1540 = vmatpush1.msra.mxu0 %v1420
        %1541 = vmatprep.subr.mxu0 %v1425
        %1542 = vmatpush1.msra.mxu0 %v1424
        %1543 = vmatprep.subr.mxu0 %v1429
        %1544 = vmatpush1.msra.mxu0 %v1428
        %1545 = vmatprep.subr.mxu0 %v1433
        %1546 = vmatpush1.msra.mxu0 %v1432
        %1547 = vmatprep.subr.mxu0 %v1437
        %1548 = vmatpush1.msra.mxu0 %v1436
        %1549 = vmatprep.subr.mxu0 %v1441
        %1550 = vmatpush1.msra.mxu0 %v1440
        %1551 = vmatprep.subr.mxu0 %v1445
        %1552 = vmatpush1.msra.mxu0 %v1444
        %1553 = vmatprep.subr.mxu0 %v1449
        %1554 = vmatpush1.msra.mxu0 %v1448
        %1555 = vmatprep.subr.mxu0 %v1453
        %1556 = vmatpush1.msra.mxu0 %v1452
        %1557 = vmatprep.subr.mxu0 0.0
        %1558 = vmatpush1.msra.mxu0 0.0
        %1559 = vmatprep.subr.mxu0 0.0
        %1560 = vmatpush1.msra.mxu0 0.0
        %1561 = vmatprep.subr.mxu0 0.0
        %1562 = vmatpush1.msra.mxu0 0.0
        %1563 = vmatprep.subr.mxu0 0.0
        %1564 = vmatpush1.msra.mxu0 0.0
        %1565 = vmatprep.subr.mxu0 0.0
        %1566 = vmatpush1.msra.mxu0 0.0
        %1567 = vmatprep.subr.mxu0 0.0
        %1568 = vmatpush1.msra.mxu0 0.0
        %1569 = vmatprep.subr.mxu0 0.0
        %1570 = vmatpush1.msra.mxu0 0.0
        %1571 = vmatprep.subr.mxu0 0.0
        %1572 = vmatpush1.msra.mxu0 0.0
        %1573 = vmatprep.subr.mxu0 0.0
        %1574 = vmatpush1.msra.mxu0 0.0
        %1575 = vmatprep.subr.mxu0 0.0
        %1576 = vmatpush1.msra.mxu0 0.0
        %1577 = vmatprep.subr.mxu0 0.0
        %1578 = vmatpush1.msra.mxu0 0.0
        %1579 = vmatprep.subr.mxu0 0.0
        %1580 = vmatpush1.msra.mxu0 0.0
        %1581 = vmatprep.subr.mxu0 0.0
        %1582 = vmatpush1.msra.mxu0 0.0
        %1583 = vmatprep.subr.mxu0 0.0
        %1584 = vmatpush1.msra.mxu0 0.0
        %1585 = vmatprep.subr.mxu0 0.0
        %1586 = vmatpush1.msra.mxu0 0.0
        %1587 = vmatprep.subr.mxu0 0.0
        %1588 = vmatpush1.msra.mxu0 0.0
        %1589 = vmatprep.mubr.f32.mxu0 0.0
        %1590 = vmatmul.mubr.f32.gmra.mrb[0].mxu0 %v1376
        %v1591 = vpop.f32.mrb[0].mxu0
        %v1592 = vadd.f32 0.0, %v1591
        %v1593 = vpop.f32.mrb[0].mxu0
        %v1594 = vadd.f32 0.0, %v1593
        %1595 = vdwg.mxu0
        %v1596 = vadd.f32 %v1386, %v1521
        %v1597 = vadd.f32 %v1387, %v1523
        %v1598 = vadd.f32 %v1388, %v1592
        %v1599 = vadd.f32 %v1389, %v1594
        %v1600 = vxor.u32 %v1596, 2147483648
        %v1601 = vmul.f32 %v1600, 1.442695
        %v1602 = vpow.pop %v1601
        %v1603 = vadd.f32 %v1602, 1.0
        %v1604 = vrcp.pop %v1603
        %v1605 = vmul.f32 1.0, %v1604
        %v1606 = vxor.u32 %v1597, 2147483648
        %v1607 = vmul.f32 %v1606, 1.442695
        %v1608 = vpow.pop %v1607
        %v1609 = vadd.f32 %v1608, 1.0
        %v1610 = vrcp.pop %v1609
        %v1611 = vmul.f32 1.0, %v1610
        %v1612 = vtanh.pop %v1598
        %v1613 = vxor.u32 %v1599, 2147483648
        %v1614 = vmul.f32 %v1613, 1.442695
        %v1615 = vpow.pop %v1614
        %v1616 = vadd.f32 %v1615, 1.0
        %v1617 = vrcp.pop %v1616
        %v1618 = vmul.f32 1.0, %v1617
        %v1619 = vmul.f32 %v1611, %v1374
        %v1620 = vmul.f32 %v1605, %v1612
        %v1621 = vadd.f32 %v1619, %v1620
        %v1622 = vtanh.pop %v1621
        %v1623 = vmul.f32 %v1618, %v1622
        %s1624 = scalar_lea.vmem %s280, %s1380 [#allocation9]
        %1625 = vst [vmem:[%s1624] sm:$0xff] %v1623
        %s1626 = scalar_select %p637, 3, 4
        %s1627 = smul.u32 %s1626, 8
        %s1628 = sshra.s32 %s1627, 3
        %s1629 = sand.u32 %s1627, 7
        %s1630 = smul.u32 %s1628, 4
        %s1631 = smul.addr %s1630, 8
        %s1632 = scalar_lea.vmem [#allocation2], %s1631
        %v1633 = vld [vmem:[%s1632] sm:$0xff]
        %v1634 = vld [vmem:[%s1632 + $0x8] sm:$0xff]
        %v1635 = vld [vmem:[%s1632 + $0x10] sm:$0xff]
        %v1636 = vld [vmem:[%s1632 + $0x18] sm:$0xff]
        %v1637 = vld [vmem:[%s247] sm:$0xff]
        %v1638 = vld [vmem:[%s247 + $0x8] sm:$0xff]
        %v1639 = vld [vmem:[%s247 + $0x10] sm:$0xff]
        %v1640 = vld [vmem:[%s247 + $0x18] sm:$0xff]
        %v1641 = vld [vmem:[%s247 + $0x20] sm:$0xff]
        %v1642 = vld [vmem:[%s247 + $0x28] sm:$0xff]
        %v1643 = vld [vmem:[%s247 + $0x30] sm:$0xff]
        %v1644 = vld [vmem:[%s247 + $0x38] sm:$0xff]
        %v1645 = vld [vmem:[%s247 + $0x40] sm:$0xff]
        %v1646 = vld [vmem:[%s247 + $0x48] sm:$0xff]
        %v1647 = vld [vmem:[%s247 + $0x50] sm:$0xff]
        %v1648 = vld [vmem:[%s247 + $0x58] sm:$0xff]
        %v1649 = vld [vmem:[%s247 + $0x60] sm:$0xff]
        %v1650 = vld [vmem:[%s247 + $0x68] sm:$0xff]
        %v1651 = vld [vmem:[%s247 + $0x70] sm:$0xff]
        %v1652 = vld [vmem:[%s247 + $0x78] sm:$0xff]
        %v1653 = vld [vmem:[%s247 + $0x80] sm:$0xff]
        %v1654 = vld [vmem:[%s247 + $0x88] sm:$0xff]
        %v1655 = vld [vmem:[%s247 + $0x90] sm:$0xff]
        %v1656 = vld [vmem:[%s247 + $0x98] sm:$0xff]
        %v1657 = vld [vmem:[%s247 + $0xa0] sm:$0xff]
        %v1658 = vld [vmem:[%s247 + $0xa8] sm:$0xff]
        %v1659 = vld [vmem:[%s247 + $0xb0] sm:$0xff]
        %v1660 = vld [vmem:[%s247 + $0xb8] sm:$0xff]
        %v1661 = vld [vmem:[%s247 + $0xc0] sm:$0xff]
        %v1662 = vld [vmem:[%s247 + $0xc8] sm:$0xff]
        %v1663 = vld [vmem:[%s247 + $0xd0] sm:$0xff]
        %v1664 = vld [vmem:[%s247 + $0xd8] sm:$0xff]
        %v1665 = vld [vmem:[%s247 + $0xe0] sm:$0xff]
        %v1666 = vld [vmem:[%s247 + $0xe8] sm:$0xff]
        %v1667 = vld [vmem:[%s247 + $0xf0] sm:$0xff]
        %v1668 = vld [vmem:[%s247 + $0xf8] sm:$0xff]
        %v1669 = vld [vmem:[%s247 + $0x100] sm:$0xff]
        %v1670 = vld [vmem:[%s247 + $0x108] sm:$0xff]
        %v1671 = vld [vmem:[%s247 + $0x110] sm:$0xff]
        %v1672 = vld [vmem:[%s247 + $0x118] sm:$0xff]
        %v1673 = vld [vmem:[%s247 + $0x120] sm:$0xff]
        %v1674 = vld [vmem:[%s247 + $0x128] sm:$0xff]
        %v1675 = vld [vmem:[%s247 + $0x130] sm:$0xff]
        %v1676 = vld [vmem:[%s247 + $0x138] sm:$0xff]
        %v1677 = vld [vmem:[%s247 + $0x140] sm:$0xff]
        %v1678 = vld [vmem:[%s247 + $0x148] sm:$0xff]
        %v1679 = vld [vmem:[%s247 + $0x150] sm:$0xff]
        %v1680 = vld [vmem:[%s247 + $0x158] sm:$0xff]
        %v1681 = vld [vmem:[%s247 + $0x160] sm:$0xff]
        %v1682 = vld [vmem:[%s247 + $0x168] sm:$0xff]
        %v1683 = vld [vmem:[%s247 + $0x170] sm:$0xff]
        %v1684 = vld [vmem:[%s247 + $0x178] sm:$0xff]
        %v1685 = vld [vmem:[%s247 + $0x180] sm:$0xff]
        %v1686 = vld [vmem:[%s247 + $0x188] sm:$0xff]
        %v1687 = vld [vmem:[%s247 + $0x190] sm:$0xff]
        %v1688 = vld [vmem:[%s247 + $0x198] sm:$0xff]
        %v1689 = vld [vmem:[%s247 + $0x1a0] sm:$0xff]
        %v1690 = vld [vmem:[%s247 + $0x1a8] sm:$0xff]
        %v1691 = vld [vmem:[%s247 + $0x1b0] sm:$0xff]
        %v1692 = vld [vmem:[%s247 + $0x1b8] sm:$0xff]
        %v1693 = vld [vmem:[%s247 + $0x1c0] sm:$0xff]
        %v1694 = vld [vmem:[%s247 + $0x1c8] sm:$0xff]
        %v1695 = vld [vmem:[%s247 + $0x1d0] sm:$0xff]
        %v1696 = vld [vmem:[%s247 + $0x1d8] sm:$0xff]
        %v1697 = vld [vmem:[%s247 + $0x1e0] sm:$0xff]
        %v1698 = vld [vmem:[%s247 + $0x1e8] sm:$0xff]
        %v1699 = vld [vmem:[%s247 + $0x1f0] sm:$0xff]
        %v1700 = vld [vmem:[%s247 + $0x1f8] sm:$0xff]
        %1701 = vmatprep.subr.mxu0 %v1638
        %1702 = vmatpush1.msra.mxu0 %v1637
        %1703 = vmatprep.subr.mxu0 %v1642
        %1704 = vmatpush1.msra.mxu0 %v1641
        %1705 = vmatprep.subr.mxu0 %v1646
        %1706 = vmatpush1.msra.mxu0 %v1645
        %1707 = vmatprep.subr.mxu0 %v1650
        %1708 = vmatpush1.msra.mxu0 %v1649
        %1709 = vmatprep.subr.mxu0 %v1654
        %1710 = vmatpush1.msra.mxu0 %v1653
        %1711 = vmatprep.subr.mxu0 %v1658
        %1712 = vmatpush1.msra.mxu0 %v1657
        %1713 = vmatprep.subr.mxu0 %v1662
        %1714 = vmatpush1.msra.mxu0 %v1661
        %1715 = vmatprep.subr.mxu0 %v1666
        %1716 = vmatpush1.msra.mxu0 %v1665
        %1717 = vmatprep.subr.mxu0 %v1670
        %1718 = vmatpush1.msra.mxu0 %v1669
        %1719 = vmatprep.subr.mxu0 %v1674
        %1720 = vmatpush1.msra.mxu0 %v1673
        %1721 = vmatprep.subr.mxu0 %v1678
        %1722 = vmatpush1.msra.mxu0 %v1677
        %1723 = vmatprep.subr.mxu0 %v1682
        %1724 = vmatpush1.msra.mxu0 %v1681
        %1725 = vmatprep.subr.mxu0 %v1686
        %1726 = vmatpush1.msra.mxu0 %v1685
        %1727 = vmatprep.subr.mxu0 %v1690
        %1728 = vmatpush1.msra.mxu0 %v1689
        %1729 = vmatprep.subr.mxu0 %v1694
        %1730 = vmatpush1.msra.mxu0 %v1693
        %1731 = vmatprep.subr.mxu0 %v1698
        %1732 = vmatpush1.msra.mxu0 %v1697
        %1733 = vmatprep.subr.mxu0 0.0
        %1734 = vmatpush1.msra.mxu0 0.0
        %1735 = vmatprep.subr.mxu0 0.0
        %1736 = vmatpush1.msra.mxu0 0.0
        %1737 = vmatprep.subr.mxu0 0.0
        %1738 = vmatpush1.msra.mxu0 0.0
        %1739 = vmatprep.subr.mxu0 0.0
        %1740 = vmatpush1.msra.mxu0 0.0
        %1741 = vmatprep.subr.mxu0 0.0
        %1742 = vmatpush1.msra.mxu0 0.0
        %1743 = vmatprep.subr.mxu0 0.0
        %1744 = vmatpush1.msra.mxu0 0.0
        %1745 = vmatprep.subr.mxu0 0.0
        %1746 = vmatpush1.msra.mxu0 0.0
        %1747 = vmatprep.subr.mxu0 0.0
        %1748 = vmatpush1.msra.mxu0 0.0
        %1749 = vmatprep.subr.mxu0 0.0
        %1750 = vmatpush1.msra.mxu0 0.0
        %1751 = vmatprep.subr.mxu0 0.0
        %1752 = vmatpush1.msra.mxu0 0.0
        %1753 = vmatprep.subr.mxu0 0.0
        %1754 = vmatpush1.msra.mxu0 0.0
        %1755 = vmatprep.subr.mxu0 0.0
        %1756 = vmatpush1.msra.mxu0 0.0
        %1757 = vmatprep.subr.mxu0 0.0
        %1758 = vmatpush1.msra.mxu0 0.0
        %1759 = vmatprep.subr.mxu0 0.0
        %1760 = vmatpush1.msra.mxu0 0.0
        %1761 = vmatprep.subr.mxu0 0.0
        %1762 = vmatpush1.msra.mxu0 0.0
        %1763 = vmatprep.subr.mxu0 0.0
        %1764 = vmatpush1.msra.mxu0 0.0
        %1765 = vmatprep.mubr.f32.mxu0 0.0
        %1766 = vmatmul.mubr.f32.gmra.mrb[0].mxu0 %v1623
        %v1767 = vpop.f32.mrb[0].mxu0
        %v1768 = vadd.f32 0.0, %v1767
        %v1769 = vpop.f32.mrb[0].mxu0
        %v1770 = vadd.f32 0.0, %v1769
        %1771 = vdwg.mxu0
        %1772 = vmatprep.subr.mxu0 %v1640
        %1773 = vmatpush1.msra.mxu0 %v1639
        %1774 = vmatprep.subr.mxu0 %v1644
        %1775 = vmatpush1.msra.mxu0 %v1643
        %1776 = vmatprep.subr.mxu0 %v1648
        %1777 = vmatpush1.msra.mxu0 %v1647
        %1778 = vmatprep.subr.mxu0 %v1652
        %1779 = vmatpush1.msra.mxu0 %v1651
        %1780 = vmatprep.subr.mxu0 %v1656
        %1781 = vmatpush1.msra.mxu0 %v1655
        %1782 = vmatprep.subr.mxu0 %v1660
        %1783 = vmatpush1.msra.mxu0 %v1659
        %1784 = vmatprep.subr.mxu0 %v1664
        %1785 = vmatpush1.msra.mxu0 %v1663
        %1786 = vmatprep.subr.mxu0 %v1668
        %1787 = vmatpush1.msra.mxu0 %v1667
        %1788 = vmatprep.subr.mxu0 %v1672
        %1789 = vmatpush1.msra.mxu0 %v1671
        %1790 = vmatprep.subr.mxu0 %v1676
        %1791 = vmatpush1.msra.mxu0 %v1675
        %1792 = vmatprep.subr.mxu0 %v1680
        %1793 = vmatpush1.msra.mxu0 %v1679
        %1794 = vmatprep.subr.mxu0 %v1684
        %1795 = vmatpush1.msra.mxu0 %v1683
        %1796 = vmatprep.subr.mxu0 %v1688
        %1797 = vmatpush1.msra.mxu0 %v1687
        %1798 = vmatprep.subr.mxu0 %v1692
        %1799 = vmatpush1.msra.mxu0 %v1691
        %1800 = vmatprep.subr.mxu0 %v1696
        %1801 = vmatpush1.msra.mxu0 %v1695
        %1802 = vmatprep.subr.mxu0 %v1700
        %1803 = vmatpush1.msra.mxu0 %v1699
        %1804 = vmatprep.subr.mxu0 0.0
        %1805 = vmatpush1.msra.mxu0 0.0
        %1806 = vmatprep.subr.mxu0 0.0
        %1807 = vmatpush1.msra.mxu0 0.0
        %1808 = vmatprep.subr.mxu0 0.0
        %1809 = vmatpush1.msra.mxu0 0.0
        %1810 = vmatprep.subr.mxu0 0.0
        %1811 = vmatpush1.msra.mxu0 0.0
        %1812 = vmatprep.subr.mxu0 0.0
        %1813 = vmatpush1.msra.mxu0 0.0
        %1814 = vmatprep.subr.mxu0 0.0
        %1815 = vmatpush1.msra.mxu0 0.0
        %1816 = vmatprep.subr.mxu0 0.0
        %1817 = vmatpush1.msra.mxu0 0.0
        %1818 = vmatprep.subr.mxu0 0.0
        %1819 = vmatpush1.msra.mxu0 0.0
        %1820 = vmatprep.subr.mxu0 0.0
        %1821 = vmatpush1.msra.mxu0 0.0
        %1822 = vmatprep.subr.mxu0 0.0
        %1823 = vmatpush1.msra.mxu0 0.0
        %1824 = vmatprep.subr.mxu0 0.0
        %1825 = vmatpush1.msra.mxu0 0.0
        %1826 = vmatprep.subr.mxu0 0.0
        %1827 = vmatpush1.msra.mxu0 0.0
        %1828 = vmatprep.subr.mxu0 0.0
        %1829 = vmatpush1.msra.mxu0 0.0
        %1830 = vmatprep.subr.mxu0 0.0
        %1831 = vmatpush1.msra.mxu0 0.0
        %1832 = vmatprep.subr.mxu0 0.0
        %1833 = vmatpush1.msra.mxu0 0.0
        %1834 = vmatprep.subr.mxu0 0.0
        %1835 = vmatpush1.msra.mxu0 0.0
        %1836 = vmatprep.mubr.f32.mxu0 0.0
        %1837 = vmatmul.mubr.f32.gmra.mrb[0].mxu0 %v1623
        %v1838 = vpop.f32.mrb[0].mxu0
        %v1839 = vadd.f32 0.0, %v1838
        %v1840 = vpop.f32.mrb[0].mxu0
        %v1841 = vadd.f32 0.0, %v1840
        %1842 = vdwg.mxu0
        %v1843 = vadd.f32 %v1633, %v1768
        %v1844 = vadd.f32 %v1634, %v1770
        %v1845 = vadd.f32 %v1635, %v1839
        %v1846 = vadd.f32 %v1636, %v1841
        %v1847 = vxor.u32 %v1843, 2147483648
        %v1848 = vmul.f32 %v1847, 1.442695
        %v1849 = vpow.pop %v1848
        %v1850 = vadd.f32 %v1849, 1.0
        %v1851 = vrcp.pop %v1850
        %v1852 = vmul.f32 1.0, %v1851
        %v1853 = vxor.u32 %v1844, 2147483648
        %v1854 = vmul.f32 %v1853, 1.442695
        %v1855 = vpow.pop %v1854
        %v1856 = vadd.f32 %v1855, 1.0
        %v1857 = vrcp.pop %v1856
        %v1858 = vmul.f32 1.0, %v1857
        %v1859 = vtanh.pop %v1845
        %v1860 = vxor.u32 %v1846, 2147483648
        %v1861 = vmul.f32 %v1860, 1.442695
        %v1862 = vpow.pop %v1861
        %v1863 = vadd.f32 %v1862, 1.0
        %v1864 = vrcp.pop %v1863
        %v1865 = vmul.f32 1.0, %v1864
        %v1866 = vmul.f32 %v1858, %v1621
        %v1867 = vmul.f32 %v1852, %v1859
        %v1868 = vadd.f32 %v1866, %v1867
        %v1869 = vtanh.pop %v1868
        %v1870 = vmul.f32 %v1865, %v1869
        %s1871 = scalar_lea.vmem %s280, %s1627 [#allocation9]
        %1872 = vst [vmem:[%s1871] sm:$0xff] %v1870
        %s1873 = scalar_select %p637, 2, 5
        %s1874 = smul.u32 %s1873, 8
        %s1875 = sshra.s32 %s1874, 3
        %s1876 = sand.u32 %s1874, 7
        %s1877 = smul.u32 %s1875, 4
        %s1878 = smul.addr %s1877, 8
        %s1879 = scalar_lea.vmem [#allocation2], %s1878
        %v1880 = vld [vmem:[%s1879] sm:$0xff]
        %v1881 = vld [vmem:[%s1879 + $0x8] sm:$0xff]
        %v1882 = vld [vmem:[%s1879 + $0x10] sm:$0xff]
        %v1883 = vld [vmem:[%s1879 + $0x18] sm:$0xff]
        %v1884 = vld [vmem:[%s247] sm:$0xff]
        %v1885 = vld [vmem:[%s247 + $0x8] sm:$0xff]
        %v1886 = vld [vmem:[%s247 + $0x10] sm:$0xff]
        %v1887 = vld [vmem:[%s247 + $0x18] sm:$0xff]
        %v1888 = vld [vmem:[%s247 + $0x20] sm:$0xff]
        %v1889 = vld [vmem:[%s247 + $0x28] sm:$0xff]
        %v1890 = vld [vmem:[%s247 + $0x30] sm:$0xff]
        %v1891 = vld [vmem:[%s247 + $0x38] sm:$0xff]
        %v1892 = vld [vmem:[%s247 + $0x40] sm:$0xff]
        %v1893 = vld [vmem:[%s247 + $0x48] sm:$0xff]
        %v1894 = vld [vmem:[%s247 + $0x50] sm:$0xff]
        %v1895 = vld [vmem:[%s247 + $0x58] sm:$0xff]
        %v1896 = vld [vmem:[%s247 + $0x60] sm:$0xff]
        %v1897 = vld [vmem:[%s247 + $0x68] sm:$0xff]
        %v1898 = vld [vmem:[%s247 + $0x70] sm:$0xff]
        %v1899 = vld [vmem:[%s247 + $0x78] sm:$0xff]
        %v1900 = vld [vmem:[%s247 + $0x80] sm:$0xff]
        %v1901 = vld [vmem:[%s247 + $0x88] sm:$0xff]
        %v1902 = vld [vmem:[%s247 + $0x90] sm:$0xff]
        %v1903 = vld [vmem:[%s247 + $0x98] sm:$0xff]
        %v1904 = vld [vmem:[%s247 + $0xa0] sm:$0xff]
        %v1905 = vld [vmem:[%s247 + $0xa8] sm:$0xff]
        %v1906 = vld [vmem:[%s247 + $0xb0] sm:$0xff]
        %v1907 = vld [vmem:[%s247 + $0xb8] sm:$0xff]
        %v1908 = vld [vmem:[%s247 + $0xc0] sm:$0xff]
        %v1909 = vld [vmem:[%s247 + $0xc8] sm:$0xff]
        %v1910 = vld [vmem:[%s247 + $0xd0] sm:$0xff]
        %v1911 = vld [vmem:[%s247 + $0xd8] sm:$0xff]
        %v1912 = vld [vmem:[%s247 + $0xe0] sm:$0xff]
        %v1913 = vld [vmem:[%s247 + $0xe8] sm:$0xff]
        %v1914 = vld [vmem:[%s247 + $0xf0] sm:$0xff]
        %v1915 = vld [vmem:[%s247 + $0xf8] sm:$0xff]
        %v1916 = vld [vmem:[%s247 + $0x100] sm:$0xff]
        %v1917 = vld [vmem:[%s247 + $0x108] sm:$0xff]
        %v1918 = vld [vmem:[%s247 + $0x110] sm:$0xff]
        %v1919 = vld [vmem:[%s247 + $0x118] sm:$0xff]
        %v1920 = vld [vmem:[%s247 + $0x120] sm:$0xff]
        %v1921 = vld [vmem:[%s247 + $0x128] sm:$0xff]
        %v1922 = vld [vmem:[%s247 + $0x130] sm:$0xff]
        %v1923 = vld [vmem:[%s247 + $0x138] sm:$0xff]
        %v1924 = vld [vmem:[%s247 + $0x140] sm:$0xff]
        %v1925 = vld [vmem:[%s247 + $0x148] sm:$0xff]
        %v1926 = vld [vmem:[%s247 + $0x150] sm:$0xff]
        %v1927 = vld [vmem:[%s247 + $0x158] sm:$0xff]
        %v1928 = vld [vmem:[%s247 + $0x160] sm:$0xff]
        %v1929 = vld [vmem:[%s247 + $0x168] sm:$0xff]
        %v1930 = vld [vmem:[%s247 + $0x170] sm:$0xff]
        %v1931 = vld [vmem:[%s247 + $0x178] sm:$0xff]
        %v1932 = vld [vmem:[%s247 + $0x180] sm:$0xff]
        %v1933 = vld [vmem:[%s247 + $0x188] sm:$0xff]
        %v1934 = vld [vmem:[%s247 + $0x190] sm:$0xff]
        %v1935 = vld [vmem:[%s247 + $0x198] sm:$0xff]
        %v1936 = vld [vmem:[%s247 + $0x1a0] sm:$0xff]
        %v1937 = vld [vmem:[%s247 + $0x1a8] sm:$0xff]
        %v1938 = vld [vmem:[%s247 + $0x1b0] sm:$0xff]
        %v1939 = vld [vmem:[%s247 + $0x1b8] sm:$0xff]
        %v1940 = vld [vmem:[%s247 + $0x1c0] sm:$0xff]
        %v1941 = vld [vmem:[%s247 + $0x1c8] sm:$0xff]
        %v1942 = vld [vmem:[%s247 + $0x1d0] sm:$0xff]
        %v1943 = vld [vmem:[%s247 + $0x1d8] sm:$0xff]
        %v1944 = vld [vmem:[%s247 + $0x1e0] sm:$0xff]
        %v1945 = vld [vmem:[%s247 + $0x1e8] sm:$0xff]
        %v1946 = vld [vmem:[%s247 + $0x1f0] sm:$0xff]
        %v1947 = vld [vmem:[%s247 + $0x1f8] sm:$0xff]
        %1948 = vmatprep.subr.mxu0 %v1885
        %1949 = vmatpush1.msra.mxu0 %v1884
        %1950 = vmatprep.subr.mxu0 %v1889
        %1951 = vmatpush1.msra.mxu0 %v1888
        %1952 = vmatprep.subr.mxu0 %v1893
        %1953 = vmatpush1.msra.mxu0 %v1892
        %1954 = vmatprep.subr.mxu0 %v1897
        %1955 = vmatpush1.msra.mxu0 %v1896
        %1956 = vmatprep.subr.mxu0 %v1901
        %1957 = vmatpush1.msra.mxu0 %v1900
        %1958 = vmatprep.subr.mxu0 %v1905
        %1959 = vmatpush1.msra.mxu0 %v1904
        %1960 = vmatprep.subr.mxu0 %v1909
        %1961 = vmatpush1.msra.mxu0 %v1908
        %1962 = vmatprep.subr.mxu0 %v1913
        %1963 = vmatpush1.msra.mxu0 %v1912
        %1964 = vmatprep.subr.mxu0 %v1917
        %1965 = vmatpush1.msra.mxu0 %v1916
        %1966 = vmatprep.subr.mxu0 %v1921
        %1967 = vmatpush1.msra.mxu0 %v1920
        %1968 = vmatprep.subr.mxu0 %v1925
        %1969 = vmatpush1.msra.mxu0 %v1924
        %1970 = vmatprep.subr.mxu0 %v1929
        %1971 = vmatpush1.msra.mxu0 %v1928
        %1972 = vmatprep.subr.mxu0 %v1933
        %1973 = vmatpush1.msra.mxu0 %v1932
        %1974 = vmatprep.subr.mxu0 %v1937
        %1975 = vmatpush1.msra.mxu0 %v1936
        %1976 = vmatprep.subr.mxu0 %v1941
        %1977 = vmatpush1.msra.mxu0 %v1940
        %1978 = vmatprep.subr.mxu0 %v1945
        %1979 = vmatpush1.msra.mxu0 %v1944
        %1980 = vmatprep.subr.mxu0 0.0
        %1981 = vmatpush1.msra.mxu0 0.0
        %1982 = vmatprep.subr.mxu0 0.0
        %1983 = vmatpush1.msra.mxu0 0.0
        %1984 = vmatprep.subr.mxu0 0.0
        %1985 = vmatpush1.msra.mxu0 0.0
        %1986 = vmatprep.subr.mxu0 0.0
        %1987 = vmatpush1.msra.mxu0 0.0
        %1988 = vmatprep.subr.mxu0 0.0
        %1989 = vmatpush1.msra.mxu0 0.0
        %1990 = vmatprep.subr.mxu0 0.0
        %1991 = vmatpush1.msra.mxu0 0.0
        %1992 = vmatprep.subr.mxu0 0.0
        %1993 = vmatpush1.msra.mxu0 0.0
        %1994 = vmatprep.subr.mxu0 0.0
        %1995 = vmatpush1.msra.mxu0 0.0
        %1996 = vmatprep.subr.mxu0 0.0
        %1997 = vmatpush1.msra.mxu0 0.0
        %1998 = vmatprep.subr.mxu0 0.0
        %1999 = vmatpush1.msra.mxu0 0.0
        %2000 = vmatprep.subr.mxu0 0.0
        %2001 = vmatpush1.msra.mxu0 0.0
        %2002 = vmatprep.subr.mxu0 0.0
        %2003 = vmatpush1.msra.mxu0 0.0
        %2004 = vmatprep.subr.mxu0 0.0
        %2005 = vmatpush1.msra.mxu0 0.0
        %2006 = vmatprep.subr.mxu0 0.0
        %2007 = vmatpush1.msra.mxu0 0.0
        %2008 = vmatprep.subr.mxu0 0.0
        %2009 = vmatpush1.msra.mxu0 0.0
        %2010 = vmatprep.subr.mxu0 0.0
        %2011 = vmatpush1.msra.mxu0 0.0
        %2012 = vmatprep.mubr.f32.mxu0 0.0
        %2013 = vmatmul.mubr.f32.gmra.mrb[0].mxu0 %v1870
        %v2014 = vpop.f32.mrb[0].mxu0
        %v2015 = vadd.f32 0.0, %v2014
        %v2016 = vpop.f32.mrb[0].mxu0
        %v2017 = vadd.f32 0.0, %v2016
        %2018 = vdwg.mxu0
        %2019 = vmatprep.subr.mxu0 %v1887
        %2020 = vmatpush1.msra.mxu0 %v1886
        %2021 = vmatprep.subr.mxu0 %v1891
        %2022 = vmatpush1.msra.mxu0 %v1890
        %2023 = vmatprep.subr.mxu0 %v1895
        %2024 = vmatpush1.msra.mxu0 %v1894
        %2025 = vmatprep.subr.mxu0 %v1899
        %2026 = vmatpush1.msra.mxu0 %v1898
        %2027 = vmatprep.subr.mxu0 %v1903
        %2028 = vmatpush1.msra.mxu0 %v1902
        %2029 = vmatprep.subr.mxu0 %v1907
        %2030 = vmatpush1.msra.mxu0 %v1906
        %2031 = vmatprep.subr.mxu0 %v1911
        %2032 = vmatpush1.msra.mxu0 %v1910
        %2033 = vmatprep.subr.mxu0 %v1915
        %2034 = vmatpush1.msra.mxu0 %v1914
        %2035 = vmatprep.subr.mxu0 %v1919
        %2036 = vmatpush1.msra.mxu0 %v1918
        %2037 = vmatprep.subr.mxu0 %v1923
        %2038 = vmatpush1.msra.mxu0 %v1922
        %2039 = vmatprep.subr.mxu0 %v1927
        %2040 = vmatpush1.msra.mxu0 %v1926
        %2041 = vmatprep.subr.mxu0 %v1931
        %2042 = vmatpush1.msra.mxu0 %v1930
        %2043 = vmatprep.subr.mxu0 %v1935
        %2044 = vmatpush1.msra.mxu0 %v1934
        %2045 = vmatprep.subr.mxu0 %v1939
        %2046 = vmatpush1.msra.mxu0 %v1938
        %2047 = vmatprep.subr.mxu0 %v1943
        %2048 = vmatpush1.msra.mxu0 %v1942
        %2049 = vmatprep.subr.mxu0 %v1947
        %2050 = vmatpush1.msra.mxu0 %v1946
        %2051 = vmatprep.subr.mxu0 0.0
        %2052 = vmatpush1.msra.mxu0 0.0
        %2053 = vmatprep.subr.mxu0 0.0
        %2054 = vmatpush1.msra.mxu0 0.0
        %2055 = vmatprep.subr.mxu0 0.0
        %2056 = vmatpush1.msra.mxu0 0.0
        %2057 = vmatprep.subr.mxu0 0.0
        %2058 = vmatpush1.msra.mxu0 0.0
        %2059 = vmatprep.subr.mxu0 0.0
        %2060 = vmatpush1.msra.mxu0 0.0
        %2061 = vmatprep.subr.mxu0 0.0
        %2062 = vmatpush1.msra.mxu0 0.0
        %2063 = vmatprep.subr.mxu0 0.0
        %2064 = vmatpush1.msra.mxu0 0.0
        %2065 = vmatprep.subr.mxu0 0.0
        %2066 = vmatpush1.msra.mxu0 0.0
        %2067 = vmatprep.subr.mxu0 0.0
        %2068 = vmatpush1.msra.mxu0 0.0
        %2069 = vmatprep.subr.mxu0 0.0
        %2070 = vmatpush1.msra.mxu0 0.0
        %2071 = vmatprep.subr.mxu0 0.0
        %2072 = vmatpush1.msra.mxu0 0.0
        %2073 = vmatprep.subr.mxu0 0.0
        %2074 = vmatpush1.msra.mxu0 0.0
        %2075 = vmatprep.subr.mxu0 0.0
        %2076 = vmatpush1.msra.mxu0 0.0
        %2077 = vmatprep.subr.mxu0 0.0
        %2078 = vmatpush1.msra.mxu0 0.0
        %2079 = vmatprep.subr.mxu0 0.0
        %2080 = vmatpush1.msra.mxu0 0.0
        %2081 = vmatprep.subr.mxu0 0.0
        %2082 = vmatpush1.msra.mxu0 0.0
        %2083 = vmatprep.mubr.f32.mxu0 0.0
        %2084 = vmatmul.mubr.f32.gmra.mrb[0].mxu0 %v1870
        %v2085 = vpop.f32.mrb[0].mxu0
        %v2086 = vadd.f32 0.0, %v2085
        %v2087 = vpop.f32.mrb[0].mxu0
        %v2088 = vadd.f32 0.0, %v2087
        %2089 = vdwg.mxu0
        %v2090 = vadd.f32 %v1880, %v2015
        %v2091 = vadd.f32 %v1881, %v2017
        %v2092 = vadd.f32 %v1882, %v2086
        %v2093 = vadd.f32 %v1883, %v2088
        %v2094 = vxor.u32 %v2090, 2147483648
        %v2095 = vmul.f32 %v2094, 1.442695
        %v2096 = vpow.pop %v2095
        %v2097 = vadd.f32 %v2096, 1.0
        %v2098 = vrcp.pop %v2097
        %v2099 = vmul.f32 1.0, %v2098
        %v2100 = vxor.u32 %v2091, 2147483648
        %v2101 = vmul.f32 %v2100, 1.442695
        %v2102 = vpow.pop %v2101
        %v2103 = vadd.f32 %v2102, 1.0
        %v2104 = vrcp.pop %v2103
        %v2105 = vmul.f32 1.0, %v2104
        %v2106 = vtanh.pop %v2092
        %v2107 = vxor.u32 %v2093, 2147483648
        %v2108 = vmul.f32 %v2107, 1.442695
        %v2109 = vpow.pop %v2108
        %v2110 = vadd.f32 %v2109, 1.0
        %v2111 = vrcp.pop %v2110
        %v2112 = vmul.f32 1.0, %v2111
        %v2113 = vmul.f32 %v2105, %v1868
        %v2114 = vmul.f32 %v2099, %v2106
        %v2115 = vadd.f32 %v2113, %v2114
        %v2116 = vtanh.pop %v2115
        %v2117 = vmul.f32 %v2112, %v2116
        %s2118 = scalar_lea.vmem %s280, %s1874 [#allocation9]
        %2119 = vst [vmem:[%s2118] sm:$0xff] %v2117
        %s2120 = scalar_select %p637, 1, 6
        %s2121 = smul.u32 %s2120, 8
        %s2122 = sshra.s32 %s2121, 3
        %s2123 = sand.u32 %s2121, 7
        %s2124 = smul.u32 %s2122, 4
        %s2125 = smul.addr %s2124, 8
        %s2126 = scalar_lea.vmem [#allocation2], %s2125
        %v2127 = vld [vmem:[%s2126] sm:$0xff]
        %v2128 = vld [vmem:[%s2126 + $0x8] sm:$0xff]
        %v2129 = vld [vmem:[%s2126 + $0x10] sm:$0xff]
        %v2130 = vld [vmem:[%s2126 + $0x18] sm:$0xff]
        %v2131 = vld [vmem:[%s247] sm:$0xff]
        %v2132 = vld [vmem:[%s247 + $0x8] sm:$0xff]
        %v2133 = vld [vmem:[%s247 + $0x10] sm:$0xff]
        %v2134 = vld [vmem:[%s247 + $0x18] sm:$0xff]
        %v2135 = vld [vmem:[%s247 + $0x20] sm:$0xff]
        %v2136 = vld [vmem:[%s247 + $0x28] sm:$0xff]
        %v2137 = vld [vmem:[%s247 + $0x30] sm:$0xff]
        %v2138 = vld [vmem:[%s247 + $0x38] sm:$0xff]
        %v2139 = vld [vmem:[%s247 + $0x40] sm:$0xff]
        %v2140 = vld [vmem:[%s247 + $0x48] sm:$0xff]
        %v2141 = vld [vmem:[%s247 + $0x50] sm:$0xff]
        %v2142 = vld [vmem:[%s247 + $0x58] sm:$0xff]
        %v2143 = vld [vmem:[%s247 + $0x60] sm:$0xff]
        %v2144 = vld [vmem:[%s247 + $0x68] sm:$0xff]
        %v2145 = vld [vmem:[%s247 + $0x70] sm:$0xff]
        %v2146 = vld [vmem:[%s247 + $0x78] sm:$0xff]
        %v2147 = vld [vmem:[%s247 + $0x80] sm:$0xff]
        %v2148 = vld [vmem:[%s247 + $0x88] sm:$0xff]
        %v2149 = vld [vmem:[%s247 + $0x90] sm:$0xff]
        %v2150 = vld [vmem:[%s247 + $0x98] sm:$0xff]
        %v2151 = vld [vmem:[%s247 + $0xa0] sm:$0xff]
        %v2152 = vld [vmem:[%s247 + $0xa8] sm:$0xff]
        %v2153 = vld [vmem:[%s247 + $0xb0] sm:$0xff]
        %v2154 = vld [vmem:[%s247 + $0xb8] sm:$0xff]
        %v2155 = vld [vmem:[%s247 + $0xc0] sm:$0xff]
        %v2156 = vld [vmem:[%s247 + $0xc8] sm:$0xff]
        %v2157 = vld [vmem:[%s247 + $0xd0] sm:$0xff]
        %v2158 = vld [vmem:[%s247 + $0xd8] sm:$0xff]
        %v2159 = vld [vmem:[%s247 + $0xe0] sm:$0xff]
        %v2160 = vld [vmem:[%s247 + $0xe8] sm:$0xff]
        %v2161 = vld [vmem:[%s247 + $0xf0] sm:$0xff]
        %v2162 = vld [vmem:[%s247 + $0xf8] sm:$0xff]
        %v2163 = vld [vmem:[%s247 + $0x100] sm:$0xff]
        %v2164 = vld [vmem:[%s247 + $0x108] sm:$0xff]
        %v2165 = vld [vmem:[%s247 + $0x110] sm:$0xff]
        %v2166 = vld [vmem:[%s247 + $0x118] sm:$0xff]
        %v2167 = vld [vmem:[%s247 + $0x120] sm:$0xff]
        %v2168 = vld [vmem:[%s247 + $0x128] sm:$0xff]
        %v2169 = vld [vmem:[%s247 + $0x130] sm:$0xff]
        %v2170 = vld [vmem:[%s247 + $0x138] sm:$0xff]
        %v2171 = vld [vmem:[%s247 + $0x140] sm:$0xff]
        %v2172 = vld [vmem:[%s247 + $0x148] sm:$0xff]
        %v2173 = vld [vmem:[%s247 + $0x150] sm:$0xff]
        %v2174 = vld [vmem:[%s247 + $0x158] sm:$0xff]
        %v2175 = vld [vmem:[%s247 + $0x160] sm:$0xff]
        %v2176 = vld [vmem:[%s247 + $0x168] sm:$0xff]
        %v2177 = vld [vmem:[%s247 + $0x170] sm:$0xff]
        %v2178 = vld [vmem:[%s247 + $0x178] sm:$0xff]
        %v2179 = vld [vmem:[%s247 + $0x180] sm:$0xff]
        %v2180 = vld [vmem:[%s247 + $0x188] sm:$0xff]
        %v2181 = vld [vmem:[%s247 + $0x190] sm:$0xff]
        %v2182 = vld [vmem:[%s247 + $0x198] sm:$0xff]
        %v2183 = vld [vmem:[%s247 + $0x1a0] sm:$0xff]
        %v2184 = vld [vmem:[%s247 + $0x1a8] sm:$0xff]
        %v2185 = vld [vmem:[%s247 + $0x1b0] sm:$0xff]
        %v2186 = vld [vmem:[%s247 + $0x1b8] sm:$0xff]
        %v2187 = vld [vmem:[%s247 + $0x1c0] sm:$0xff]
        %v2188 = vld [vmem:[%s247 + $0x1c8] sm:$0xff]
        %v2189 = vld [vmem:[%s247 + $0x1d0] sm:$0xff]
        %v2190 = vld [vmem:[%s247 + $0x1d8] sm:$0xff]
        %v2191 = vld [vmem:[%s247 + $0x1e0] sm:$0xff]
        %v2192 = vld [vmem:[%s247 + $0x1e8] sm:$0xff]
        %v2193 = vld [vmem:[%s247 + $0x1f0] sm:$0xff]
        %v2194 = vld [vmem:[%s247 + $0x1f8] sm:$0xff]
        %2195 = vmatprep.subr.mxu0 %v2132
        %2196 = vmatpush1.msra.mxu0 %v2131
        %2197 = vmatprep.subr.mxu0 %v2136
        %2198 = vmatpush1.msra.mxu0 %v2135
        %2199 = vmatprep.subr.mxu0 %v2140
        %2200 = vmatpush1.msra.mxu0 %v2139
        %2201 = vmatprep.subr.mxu0 %v2144
        %2202 = vmatpush1.msra.mxu0 %v2143
        %2203 = vmatprep.subr.mxu0 %v2148
        %2204 = vmatpush1.msra.mxu0 %v2147
        %2205 = vmatprep.subr.mxu0 %v2152
        %2206 = vmatpush1.msra.mxu0 %v2151
        %2207 = vmatprep.subr.mxu0 %v2156
        %2208 = vmatpush1.msra.mxu0 %v2155
        %2209 = vmatprep.subr.mxu0 %v2160
        %2210 = vmatpush1.msra.mxu0 %v2159
        %2211 = vmatprep.subr.mxu0 %v2164
        %2212 = vmatpush1.msra.mxu0 %v2163
        %2213 = vmatprep.subr.mxu0 %v2168
        %2214 = vmatpush1.msra.mxu0 %v2167
        %2215 = vmatprep.subr.mxu0 %v2172
        %2216 = vmatpush1.msra.mxu0 %v2171
        %2217 = vmatprep.subr.mxu0 %v2176
        %2218 = vmatpush1.msra.mxu0 %v2175
        %2219 = vmatprep.subr.mxu0 %v2180
        %2220 = vmatpush1.msra.mxu0 %v2179
        %2221 = vmatprep.subr.mxu0 %v2184
        %2222 = vmatpush1.msra.mxu0 %v2183
        %2223 = vmatprep.subr.mxu0 %v2188
        %2224 = vmatpush1.msra.mxu0 %v2187
        %2225 = vmatprep.subr.mxu0 %v2192
        %2226 = vmatpush1.msra.mxu0 %v2191
        %2227 = vmatprep.subr.mxu0 0.0
        %2228 = vmatpush1.msra.mxu0 0.0
        %2229 = vmatprep.subr.mxu0 0.0
        %2230 = vmatpush1.msra.mxu0 0.0
        %2231 = vmatprep.subr.mxu0 0.0
        %2232 = vmatpush1.msra.mxu0 0.0
        %2233 = vmatprep.subr.mxu0 0.0
        %2234 = vmatpush1.msra.mxu0 0.0
        %2235 = vmatprep.subr.mxu0 0.0
        %2236 = vmatpush1.msra.mxu0 0.0
        %2237 = vmatprep.subr.mxu0 0.0
        %2238 = vmatpush1.msra.mxu0 0.0
        %2239 = vmatprep.subr.mxu0 0.0
        %2240 = vmatpush1.msra.mxu0 0.0
        %2241 = vmatprep.subr.mxu0 0.0
        %2242 = vmatpush1.msra.mxu0 0.0
        %2243 = vmatprep.subr.mxu0 0.0
        %2244 = vmatpush1.msra.mxu0 0.0
        %2245 = vmatprep.subr.mxu0 0.0
        %2246 = vmatpush1.msra.mxu0 0.0
        %2247 = vmatprep.subr.mxu0 0.0
        %2248 = vmatpush1.msra.mxu0 0.0
        %2249 = vmatprep.subr.mxu0 0.0
        %2250 = vmatpush1.msra.mxu0 0.0
        %2251 = vmatprep.subr.mxu0 0.0
        %2252 = vmatpush1.msra.mxu0 0.0
        %2253 = vmatprep.subr.mxu0 0.0
        %2254 = vmatpush1.msra.mxu0 0.0
        %2255 = vmatprep.subr.mxu0 0.0
        %2256 = vmatpush1.msra.mxu0 0.0
        %2257 = vmatprep.subr.mxu0 0.0
        %2258 = vmatpush1.msra.mxu0 0.0
        %2259 = vmatprep.mubr.f32.mxu0 0.0
        %2260 = vmatmul.mubr.f32.gmra.mrb[0].mxu0 %v2117
        %v2261 = vpop.f32.mrb[0].mxu0
        %v2262 = vadd.f32 0.0, %v2261
        %v2263 = vpop.f32.mrb[0].mxu0
        %v2264 = vadd.f32 0.0, %v2263
        %2265 = vdwg.mxu0
        %2266 = vmatprep.subr.mxu0 %v2134
        %2267 = vmatpush1.msra.mxu0 %v2133
        %2268 = vmatprep.subr.mxu0 %v2138
        %2269 = vmatpush1.msra.mxu0 %v2137
        %2270 = vmatprep.subr.mxu0 %v2142
        %2271 = vmatpush1.msra.mxu0 %v2141
        %2272 = vmatprep.subr.mxu0 %v2146
        %2273 = vmatpush1.msra.mxu0 %v2145
        %2274 = vmatprep.subr.mxu0 %v2150
        %2275 = vmatpush1.msra.mxu0 %v2149
        %2276 = vmatprep.subr.mxu0 %v2154
        %2277 = vmatpush1.msra.mxu0 %v2153
        %2278 = vmatprep.subr.mxu0 %v2158
        %2279 = vmatpush1.msra.mxu0 %v2157
        %2280 = vmatprep.subr.mxu0 %v2162
        %2281 = vmatpush1.msra.mxu0 %v2161
        %2282 = vmatprep.subr.mxu0 %v2166
        %2283 = vmatpush1.msra.mxu0 %v2165
        %2284 = vmatprep.subr.mxu0 %v2170
        %2285 = vmatpush1.msra.mxu0 %v2169
        %2286 = vmatprep.subr.mxu0 %v2174
        %2287 = vmatpush1.msra.mxu0 %v2173
        %2288 = vmatprep.subr.mxu0 %v2178
        %2289 = vmatpush1.msra.mxu0 %v2177
        %2290 = vmatprep.subr.mxu0 %v2182
        %2291 = vmatpush1.msra.mxu0 %v2181
        %2292 = vmatprep.subr.mxu0 %v2186
        %2293 = vmatpush1.msra.mxu0 %v2185
        %2294 = vmatprep.subr.mxu0 %v2190
        %2295 = vmatpush1.msra.mxu0 %v2189
        %2296 = vmatprep.subr.mxu0 %v2194
        %2297 = vmatpush1.msra.mxu0 %v2193
        %2298 = vmatprep.subr.mxu0 0.0
        %2299 = vmatpush1.msra.mxu0 0.0
        %2300 = vmatprep.subr.mxu0 0.0
        %2301 = vmatpush1.msra.mxu0 0.0
        %2302 = vmatprep.subr.mxu0 0.0
        %2303 = vmatpush1.msra.mxu0 0.0
        %2304 = vmatprep.subr.mxu0 0.0
        %2305 = vmatpush1.msra.mxu0 0.0
        %2306 = vmatprep.subr.mxu0 0.0
        %2307 = vmatpush1.msra.mxu0 0.0
        %2308 = vmatprep.subr.mxu0 0.0
        %2309 = vmatpush1.msra.mxu0 0.0
        %2310 = vmatprep.subr.mxu0 0.0
        %2311 = vmatpush1.msra.mxu0 0.0
        %2312 = vmatprep.subr.mxu0 0.0
        %2313 = vmatpush1.msra.mxu0 0.0
        %2314 = vmatprep.subr.mxu0 0.0
        %2315 = vmatpush1.msra.mxu0 0.0
        %2316 = vmatprep.subr.mxu0 0.0
        %2317 = vmatpush1.msra.mxu0 0.0
        %2318 = vmatprep.subr.mxu0 0.0
        %2319 = vmatpush1.msra.mxu0 0.0
        %2320 = vmatprep.subr.mxu0 0.0
        %2321 = vmatpush1.msra.mxu0 0.0
        %2322 = vmatprep.subr.mxu0 0.0
        %2323 = vmatpush1.msra.mxu0 0.0
        %2324 = vmatprep.subr.mxu0 0.0
        %2325 = vmatpush1.msra.mxu0 0.0
        %2326 = vmatprep.subr.mxu0 0.0
        %2327 = vmatpush1.msra.mxu0 0.0
        %2328 = vmatprep.subr.mxu0 0.0
        %2329 = vmatpush1.msra.mxu0 0.0
        %2330 = vmatprep.mubr.f32.mxu0 0.0
        %2331 = vmatmul.mubr.f32.gmra.mrb[0].mxu0 %v2117
        %v2332 = vpop.f32.mrb[0].mxu0
        %v2333 = vadd.f32 0.0, %v2332
        %v2334 = vpop.f32.mrb[0].mxu0
        %v2335 = vadd.f32 0.0, %v2334
        %2336 = vdwg.mxu0
        %v2337 = vadd.f32 %v2127, %v2262
        %v2338 = vadd.f32 %v2128, %v2264
        %v2339 = vadd.f32 %v2129, %v2333
        %v2340 = vadd.f32 %v2130, %v2335
        %v2341 = vxor.u32 %v2337, 2147483648
        %v2342 = vmul.f32 %v2341, 1.442695
        %v2343 = vpow.pop %v2342
        %v2344 = vadd.f32 %v2343, 1.0
        %v2345 = vrcp.pop %v2344
        %v2346 = vmul.f32 1.0, %v2345
        %v2347 = vxor.u32 %v2338, 2147483648
        %v2348 = vmul.f32 %v2347, 1.442695
        %v2349 = vpow.pop %v2348
        %v2350 = vadd.f32 %v2349, 1.0
        %v2351 = vrcp.pop %v2350
        %v2352 = vmul.f32 1.0, %v2351
        %v2353 = vtanh.pop %v2339
        %v2354 = vxor.u32 %v2340, 2147483648
        %v2355 = vmul.f32 %v2354, 1.442695
        %v2356 = vpow.pop %v2355
        %v2357 = vadd.f32 %v2356, 1.0
        %v2358 = vrcp.pop %v2357
        %v2359 = vmul.f32 1.0, %v2358
        %v2360 = vmul.f32 %v2352, %v2115
        %v2361 = vmul.f32 %v2346, %v2353
        %v2362 = vadd.f32 %v2360, %v2361
        %v2363 = vtanh.pop %v2362
        %v2364 = vmul.f32 %v2359, %v2363
        %s2365 = scalar_lea.vmem %s280, %s2121 [#allocation9]
        %2366 = vst [vmem:[%s2365] sm:$0xff] %v2364
        %s2367 = scalar_select %p637, 0, 7
        %s2368 = smul.u32 %s2367, 8
        %s2369 = sshra.s32 %s2368, 3
        %s2370 = sand.u32 %s2368, 7
        %s2371 = smul.u32 %s2369, 4
        %s2372 = smul.addr %s2371, 8
        %s2373 = scalar_lea.vmem [#allocation2], %s2372
        %v2374 = vld [vmem:[%s2373] sm:$0xff]
        %v2375 = vld [vmem:[%s2373 + $0x8] sm:$0xff]
        %v2376 = vld [vmem:[%s2373 + $0x10] sm:$0xff]
        %v2377 = vld [vmem:[%s2373 + $0x18] sm:$0xff]
        %v2378 = vld [vmem:[%s247] sm:$0xff]
        %v2379 = vld [vmem:[%s247 + $0x8] sm:$0xff]
        %v2380 = vld [vmem:[%s247 + $0x10] sm:$0xff]
        %v2381 = vld [vmem:[%s247 + $0x18] sm:$0xff]
        %v2382 = vld [vmem:[%s247 + $0x20] sm:$0xff]
        %v2383 = vld [vmem:[%s247 + $0x28] sm:$0xff]
        %v2384 = vld [vmem:[%s247 + $0x30] sm:$0xff]
        %v2385 = vld [vmem:[%s247 + $0x38] sm:$0xff]
        %v2386 = vld [vmem:[%s247 + $0x40] sm:$0xff]
        %v2387 = vld [vmem:[%s247 + $0x48] sm:$0xff]
        %v2388 = vld [vmem:[%s247 + $0x50] sm:$0xff]
        %v2389 = vld [vmem:[%s247 + $0x58] sm:$0xff]
        %v2390 = vld [vmem:[%s247 + $0x60] sm:$0xff]
        %v2391 = vld [vmem:[%s247 + $0x68] sm:$0xff]
        %v2392 = vld [vmem:[%s247 + $0x70] sm:$0xff]
        %v2393 = vld [vmem:[%s247 + $0x78] sm:$0xff]
        %v2394 = vld [vmem:[%s247 + $0x80] sm:$0xff]
        %v2395 = vld [vmem:[%s247 + $0x88] sm:$0xff]
        %v2396 = vld [vmem:[%s247 + $0x90] sm:$0xff]
        %v2397 = vld [vmem:[%s247 + $0x98] sm:$0xff]
        %v2398 = vld [vmem:[%s247 + $0xa0] sm:$0xff]
        %v2399 = vld [vmem:[%s247 + $0xa8] sm:$0xff]
        %v2400 = vld [vmem:[%s247 + $0xb0] sm:$0xff]
        %v2401 = vld [vmem:[%s247 + $0xb8] sm:$0xff]
        %v2402 = vld [vmem:[%s247 + $0xc0] sm:$0xff]
        %v2403 = vld [vmem:[%s247 + $0xc8] sm:$0xff]
        %v2404 = vld [vmem:[%s247 + $0xd0] sm:$0xff]
        %v2405 = vld [vmem:[%s247 + $0xd8] sm:$0xff]
        %v2406 = vld [vmem:[%s247 + $0xe0] sm:$0xff]
        %v2407 = vld [vmem:[%s247 + $0xe8] sm:$0xff]
        %v2408 = vld [vmem:[%s247 + $0xf0] sm:$0xff]
        %v2409 = vld [vmem:[%s247 + $0xf8] sm:$0xff]
        %v2410 = vld [vmem:[%s247 + $0x100] sm:$0xff]
        %v2411 = vld [vmem:[%s247 + $0x108] sm:$0xff]
        %v2412 = vld [vmem:[%s247 + $0x110] sm:$0xff]
        %v2413 = vld [vmem:[%s247 + $0x118] sm:$0xff]
        %v2414 = vld [vmem:[%s247 + $0x120] sm:$0xff]
        %v2415 = vld [vmem:[%s247 + $0x128] sm:$0xff]
        %v2416 = vld [vmem:[%s247 + $0x130] sm:$0xff]
        %v2417 = vld [vmem:[%s247 + $0x138] sm:$0xff]
        %v2418 = vld [vmem:[%s247 + $0x140] sm:$0xff]
        %v2419 = vld [vmem:[%s247 + $0x148] sm:$0xff]
        %v2420 = vld [vmem:[%s247 + $0x150] sm:$0xff]
        %v2421 = vld [vmem:[%s247 + $0x158] sm:$0xff]
        %v2422 = vld [vmem:[%s247 + $0x160] sm:$0xff]
        %v2423 = vld [vmem:[%s247 + $0x168] sm:$0xff]
        %v2424 = vld [vmem:[%s247 + $0x170] sm:$0xff]
        %v2425 = vld [vmem:[%s247 + $0x178] sm:$0xff]
        %v2426 = vld [vmem:[%s247 + $0x180] sm:$0xff]
        %v2427 = vld [vmem:[%s247 + $0x188] sm:$0xff]
        %v2428 = vld [vmem:[%s247 + $0x190] sm:$0xff]
        %v2429 = vld [vmem:[%s247 + $0x198] sm:$0xff]
        %v2430 = vld [vmem:[%s247 + $0x1a0] sm:$0xff]
        %v2431 = vld [vmem:[%s247 + $0x1a8] sm:$0xff]
        %v2432 = vld [vmem:[%s247 + $0x1b0] sm:$0xff]
        %v2433 = vld [vmem:[%s247 + $0x1b8] sm:$0xff]
        %v2434 = vld [vmem:[%s247 + $0x1c0] sm:$0xff]
        %v2435 = vld [vmem:[%s247 + $0x1c8] sm:$0xff]
        %v2436 = vld [vmem:[%s247 + $0x1d0] sm:$0xff]
        %v2437 = vld [vmem:[%s247 + $0x1d8] sm:$0xff]
        %v2438 = vld [vmem:[%s247 + $0x1e0] sm:$0xff]
        %v2439 = vld [vmem:[%s247 + $0x1e8] sm:$0xff]
        %v2440 = vld [vmem:[%s247 + $0x1f0] sm:$0xff]
        %v2441 = vld [vmem:[%s247 + $0x1f8] sm:$0xff]
        %2442 = vmatprep.subr.mxu0 %v2379
        %2443 = vmatpush1.msra.mxu0 %v2378
        %2444 = vmatprep.subr.mxu0 %v2383
        %2445 = vmatpush1.msra.mxu0 %v2382
        %2446 = vmatprep.subr.mxu0 %v2387
        %2447 = vmatpush1.msra.mxu0 %v2386
        %2448 = vmatprep.subr.mxu0 %v2391
        %2449 = vmatpush1.msra.mxu0 %v2390
        %2450 = vmatprep.subr.mxu0 %v2395
        %2451 = vmatpush1.msra.mxu0 %v2394
        %2452 = vmatprep.subr.mxu0 %v2399
        %2453 = vmatpush1.msra.mxu0 %v2398
        %2454 = vmatprep.subr.mxu0 %v2403
        %2455 = vmatpush1.msra.mxu0 %v2402
        %2456 = vmatprep.subr.mxu0 %v2407
        %2457 = vmatpush1.msra.mxu0 %v2406
        %2458 = vmatprep.subr.mxu0 %v2411
        %2459 = vmatpush1.msra.mxu0 %v2410
        %2460 = vmatprep.subr.mxu0 %v2415
        %2461 = vmatpush1.msra.mxu0 %v2414
        %2462 = vmatprep.subr.mxu0 %v2419
        %2463 = vmatpush1.msra.mxu0 %v2418
        %2464 = vmatprep.subr.mxu0 %v2423
        %2465 = vmatpush1.msra.mxu0 %v2422
        %2466 = vmatprep.subr.mxu0 %v2427
        %2467 = vmatpush1.msra.mxu0 %v2426
        %2468 = vmatprep.subr.mxu0 %v2431
        %2469 = vmatpush1.msra.mxu0 %v2430
        %2470 = vmatprep.subr.mxu0 %v2435
        %2471 = vmatpush1.msra.mxu0 %v2434
        %2472 = vmatprep.subr.mxu0 %v2439
        %2473 = vmatpush1.msra.mxu0 %v2438
        %2474 = vmatprep.subr.mxu0 0.0
        %2475 = vmatpush1.msra.mxu0 0.0
        %2476 = vmatprep.subr.mxu0 0.0
        %2477 = vmatpush1.msra.mxu0 0.0
        %2478 = vmatprep.subr.mxu0 0.0
        %2479 = vmatpush1.msra.mxu0 0.0
        %2480 = vmatprep.subr.mxu0 0.0
        %2481 = vmatpush1.msra.mxu0 0.0
        %2482 = vmatprep.subr.mxu0 0.0
        %2483 = vmatpush1.msra.mxu0 0.0
        %2484 = vmatprep.subr.mxu0 0.0
        %2485 = vmatpush1.msra.mxu0 0.0
        %2486 = vmatprep.subr.mxu0 0.0
        %2487 = vmatpush1.msra.mxu0 0.0
        %2488 = vmatprep.subr.mxu0 0.0
        %2489 = vmatpush1.msra.mxu0 0.0
        %2490 = vmatprep.subr.mxu0 0.0
        %2491 = vmatpush1.msra.mxu0 0.0
        %2492 = vmatprep.subr.mxu0 0.0
        %2493 = vmatpush1.msra.mxu0 0.0
        %2494 = vmatprep.subr.mxu0 0.0
        %2495 = vmatpush1.msra.mxu0 0.0
        %2496 = vmatprep.subr.mxu0 0.0
        %2497 = vmatpush1.msra.mxu0 0.0
        %2498 = vmatprep.subr.mxu0 0.0
        %2499 = vmatpush1.msra.mxu0 0.0
        %2500 = vmatprep.subr.mxu0 0.0
        %2501 = vmatpush1.msra.mxu0 0.0
        %2502 = vmatprep.subr.mxu0 0.0
        %2503 = vmatpush1.msra.mxu0 0.0
        %2504 = vmatprep.subr.mxu0 0.0
        %2505 = vmatpush1.msra.mxu0 0.0
        %2506 = vmatprep.mubr.f32.mxu0 0.0
        %2507 = vmatmul.mubr.f32.gmra.mrb[0].mxu0 %v2364
        %v2508 = vpop.f32.mrb[0].mxu0
        %v2509 = vadd.f32 0.0, %v2508
        %v2510 = vpop.f32.mrb[0].mxu0
        %v2511 = vadd.f32 0.0, %v2510
        %2512 = vdwg.mxu0
        %2513 = vmatprep.subr.mxu0 %v2381
        %2514 = vmatpush1.msra.mxu0 %v2380
        %2515 = vmatprep.subr.mxu0 %v2385
        %2516 = vmatpush1.msra.mxu0 %v2384
        %2517 = vmatprep.subr.mxu0 %v2389
        %2518 = vmatpush1.msra.mxu0 %v2388
        %2519 = vmatprep.subr.mxu0 %v2393
        %2520 = vmatpush1.msra.mxu0 %v2392
        %2521 = vmatprep.subr.mxu0 %v2397
        %2522 = vmatpush1.msra.mxu0 %v2396
        %2523 = vmatprep.subr.mxu0 %v2401
        %2524 = vmatpush1.msra.mxu0 %v2400
        %2525 = vmatprep.subr.mxu0 %v2405
        %2526 = vmatpush1.msra.mxu0 %v2404
        %2527 = vmatprep.subr.mxu0 %v2409
        %2528 = vmatpush1.msra.mxu0 %v2408
        %2529 = vmatprep.subr.mxu0 %v2413
        %2530 = vmatpush1.msra.mxu0 %v2412
        %2531 = vmatprep.subr.mxu0 %v2417
        %2532 = vmatpush1.msra.mxu0 %v2416
        %2533 = vmatprep.subr.mxu0 %v2421
        %2534 = vmatpush1.msra.mxu0 %v2420
        %2535 = vmatprep.subr.mxu0 %v2425
        %2536 = vmatpush1.msra.mxu0 %v2424
        %2537 = vmatprep.subr.mxu0 %v2429
        %2538 = vmatpush1.msra.mxu0 %v2428
        %2539 = vmatprep.subr.mxu0 %v2433
        %2540 = vmatpush1.msra.mxu0 %v2432
        %2541 = vmatprep.subr.mxu0 %v2437
        %2542 = vmatpush1.msra.mxu0 %v2436
        %2543 = vmatprep.subr.mxu0 %v2441
        %2544 = vmatpush1.msra.mxu0 %v2440
        %2545 = vmatprep.subr.mxu0 0.0
        %2546 = vmatpush1.msra.mxu0 0.0
        %2547 = vmatprep.subr.mxu0 0.0
        %2548 = vmatpush1.msra.mxu0 0.0
        %2549 = vmatprep.subr.mxu0 0.0
        %2550 = vmatpush1.msra.mxu0 0.0
        %2551 = vmatprep.subr.mxu0 0.0
        %2552 = vmatpush1.msra.mxu0 0.0
        %2553 = vmatprep.subr.mxu0 0.0
        %2554 = vmatpush1.msra.mxu0 0.0
        %2555 = vmatprep.subr.mxu0 0.0
        %2556 = vmatpush1.msra.mxu0 0.0
        %2557 = vmatprep.subr.mxu0 0.0
        %2558 = vmatpush1.msra.mxu0 0.0
        %2559 = vmatprep.subr.mxu0 0.0
        %2560 = vmatpush1.msra.mxu0 0.0
        %2561 = vmatprep.subr.mxu0 0.0
        %2562 = vmatpush1.msra.mxu0 0.0
        %2563 = vmatprep.subr.mxu0 0.0
        %2564 = vmatpush1.msra.mxu0 0.0
        %2565 = vmatprep.subr.mxu0 0.0
        %2566 = vmatpush1.msra.mxu0 0.0
        %2567 = vmatprep.subr.mxu0 0.0
        %2568 = vmatpush1.msra.mxu0 0.0
        %2569 = vmatprep.subr.mxu0 0.0
        %2570 = vmatpush1.msra.mxu0 0.0
        %2571 = vmatprep.subr.mxu0 0.0
        %2572 = vmatpush1.msra.mxu0 0.0
        %2573 = vmatprep.subr.mxu0 0.0
        %2574 = vmatpush1.msra.mxu0 0.0
        %2575 = vmatprep.subr.mxu0 0.0
        %2576 = vmatpush1.msra.mxu0 0.0
        %2577 = vmatprep.mubr.f32.mxu0 0.0
        %2578 = vmatmul.mubr.f32.gmra.mrb[0].mxu0 %v2364
        %v2579 = vpop.f32.mrb[0].mxu0
        %v2580 = vadd.f32 0.0, %v2579
        %v2581 = vpop.f32.mrb[0].mxu0
        %v2582 = vadd.f32 0.0, %v2581
        %2583 = vdwg.mxu0
        %v2584 = vadd.f32 %v2374, %v2509
        %v2585 = vadd.f32 %v2375, %v2511
        %v2586 = vadd.f32 %v2376, %v2580
        %v2587 = vadd.f32 %v2377, %v2582
        %v2588 = vxor.u32 %v2584, 2147483648
        %v2589 = vmul.f32 %v2588, 1.442695
        %v2590 = vpow.pop %v2589
        %v2591 = vadd.f32 %v2590, 1.0
        %v2592 = vrcp.pop %v2591
        %v2593 = vmul.f32 1.0, %v2592
        %v2594 = vxor.u32 %v2585, 2147483648
        %v2595 = vmul.f32 %v2594, 1.442695
        %v2596 = vpow.pop %v2595
        %v2597 = vadd.f32 %v2596, 1.0
        %v2598 = vrcp.pop %v2597
        %v2599 = vmul.f32 1.0, %v2598
        %v2600 = vtanh.pop %v2586
        %v2601 = vxor.u32 %v2587, 2147483648
        %v2602 = vmul.f32 %v2601, 1.442695
        %v2603 = vpow.pop %v2602
        %v2604 = vadd.f32 %v2603, 1.0
        %v2605 = vrcp.pop %v2604
        %v2606 = vmul.f32 1.0, %v2605
        %v2607 = vmul.f32 %v2599, %v2362
        %v2608 = vmul.f32 %v2593, %v2600
        %v2609 = vadd.f32 %v2607, %v2608
        %v2610 = vtanh.pop %v2609
        %v2611 = vmul.f32 %v2606, %v2610
        %s2612 = scalar_lea.vmem %s280, %s2368 [#allocation9]
        %2613 = vst [vmem:[%s2612] sm:$0xff] %v2611
        %s2614 = sand.u32 %s129, 1
        %s2615 = scalar_lea.sflag [#allocation5], %s2614
        %s2616 = sand.u32 %s129, 1
        %s2617 = smul.addr %s2616, 64
        %s2618 = scalar_lea.vmem [#allocation9], %s2617
        // Predicated region
        $region49: #{tpu_custom_call.1} parent=35 // pred_check
          %p2619 = pneg %p139
        $region50: #{tpu_custom_call.1} parent=35 // pred_check_branch
          %2621 = sbr.rel (%p2619) target = $region52
        $region51: #{tpu_custom_call.1} parent=35 // pred_region
          %s2623 = ssub.s32 1024, 1024
          %2624 = vsyncadd %s2615, %s2623
          %s2625 = smul.addr %s22, 8
          %s2626 = smul.addr %s2625, 128
          %s2627 = scalar_lea.hbm %s4, %s2626
          %s2628 = sshll.u32 %s2618, 4
          %s2629 = int_to_ptr.vmem [resolvable:$true] %s2628
          %2634 = dma.vmem_to_hbm [thread:$0]  %s2629, 1024, %s2627, %s2615, 128, 128, 8
        $region52: #{tpu_custom_call.1} parent=35 // pred_fallthru
          _
      $region36: #{tpu_custom_call.1} parent=5 // pred_fallthru
        _
      %p2635 = scmp.le.s32.totalorder 2, %s17
      // Predicated region
      $region53: #{tpu_custom_call.1} parent=5 // pred_check
        %p2636 = pneg %p2635
      $region54: #{tpu_custom_call.1} parent=5 // pred_check_branch
        %2638 = sbr.rel (%p2636) target = $region56
      $region55: #{tpu_custom_call.1} parent=5 // pred_region
        %s2639 = ssub.s32 %s17, 2
        // Predicated region
        $region57: #{tpu_custom_call.1} parent=55 // pred_check
          %p2640 = pneg %p145
        $region58: #{tpu_custom_call.1} parent=55 // pred_check_branch
          %2642 = sbr.rel (%p2640) target = $region60
        $region59: #{tpu_custom_call.1} parent=55 // pred_region
          %s2643 = sand.u32 %s130, 1
          %s2644 = scalar_lea.sflag [#allocation5], %s2643
          %s2645 = sand.u32 %s130, 1
          %s2646 = smul.addr %s2645, 64
          %s2647 = scalar_lea.vmem [#allocation9], %s2646
          %2648 = dma.done %s2644, 1024
        $region60: #{tpu_custom_call.1} parent=55 // pred_fallthru
          _
      $region56: #{tpu_custom_call.1} parent=5 // pred_fallthru
        _
    $region6: #{tpu_custom_call.1} parent=1 // loop_footer
      %s21 = sadd.s32 1, %s17
    $region7: #{tpu_custom_call.1} parent=1 // loop_footer_branch
      %16 = sbr.rel target = $region3
    $region8: #{tpu_custom_call.1} parent=1 // loop_exit
      _
    %2649 = vsyncpa [#allocation4], 1
    %s2650 = scalar_lea.sflag [#allocation4], 1
    %2651 = vsyncpa %s2650, 1
    %2652 = vsyncpa [#allocation7], 1
    %s2653 = scalar_lea.sflag [#allocation7], 1
    %2654 = vsyncpa %s2653, 1
    %2655 = vsyncpa [#allocation5], 1
    %s2656 = scalar_lea.sflag [#allocation5], 1
    %2657 = vsyncpa %s2656, 1

</llo_original>
